<compile_context>
chip_gen: v7x
topology: tpu7x:2x2x1
jax: 0.10.0
libtpu: 0.0.40
codegen_flags: <defaults>
</compile_context>

<pallas_src>
import functools
import math

import jax
import jax.numpy as jnp
from jax.experimental import pallas as pl
from jax.experimental.pallas import tpu as pltpu


def _cdiv(a, b):
    return -(-a // b)


def _round_up(x, m):
    return _cdiv(x, m) * m


def _device_kind():
    try:
        return jax.devices()[0].device_kind.lower()
    except Exception:
        return ""


def _num_tensorcores(kind):
    # v5e / v6e expose 1 TensorCore per chip; v7x exposes 2.
    return 2 if "v7" in kind else 1


def _mxu_row_target(kind):
    # v5e MXU is 128-wide; v6e / v7x MXUs are 256-wide.
    return 128 if "v5" in kind else 256


# ------------------------------ Pallas kernel -------------------------------
def _mcg_kernel(s_ref, c_ref, sw_ref, sb_ref, cw_ref, cb_ref,
                out_s_ref, out_c_ref, *,
                n_blocks, n_layers, t_valid, agg_mode, identity_c_mlp,
                running_mean_mode, alpha, beta):
    """One batch-tile of the full MCGBlock forward, fully VMEM-resident."""
    tb, T, Dp = s_ref.shape            # T is the (sublane-padded) set size
    rm_s = s_ref[...]                  # (tb, T, Dp) f32  running_mean_s
    rm_c = c_ref[...]                  # (tb, 1, Dp) f32  running_mean_c

    # Static row-validity mask — only materialized when T was padded.
    if t_valid < T:
        row_ids = jax.lax.broadcasted_iota(jnp.int32, (1, T, Dp), 1)
        valid_rows = row_ids < t_valid
    else:
        valid_rows = None

    def run_mlp(x2d, w_ref, b_ref, blk):
        # NormalMLP: Linear -> (ReLU) -> ... -> Linear.  Weights stacked along
        # the leading dim as (n_blocks*n_layers, Dp, Dp) in bf16; biases f32.
        h = x2d
        for l in range(n_layers):
            idx = blk * n_layers + l
            h = jnp.dot(h.astype(w_ref.dtype), w_ref[idx],
                        preferred_element_type=jnp.float32)
            h = h + b_ref[idx]
            if l < n_layers - 1:
                h = jnp.maximum(h, 0.0)
        return h

    for blk in range(n_blocks):
        # ---- s_mlp over all tb*T rows of this tile (one big MXU matmul).
        # T is a multiple of 8, so this reshape is a pure sublane merge.
        s_out = run_mlp(rm_s.reshape(tb * T, Dp), sw_ref, sb_ref, blk)
        s_out = s_out.reshape(tb, T, Dp)

        # ---- c_mlp (identity for block 0 when configured) ----
        if blk == 0 and identity_c_mlp:
            c_out = rm_c
        else:
            c_out = run_mlp(rm_c.reshape(tb, Dp), cw_ref, cb_ref, blk)
            c_out = c_out.reshape(tb, 1, Dp)

        # ---- context gating + aggregation over the set (dim -2) ----
        s_out = s_out * c_out
        if agg_mode == 'max':
            g = s_out if valid_rows is None else jnp.where(valid_rows, s_out,
                                                           -jnp.inf)
            agg_c = jnp.max(g, axis=-2, keepdims=True)
        else:  # 'mean' / 'avg'
            g = s_out if valid_rows is None else jnp.where(valid_rows, s_out,
                                                           0.0)
            agg_c = jnp.sum(g, axis=-2, keepdims=True) * (1.0 / t_valid)

        # ---- running mean update (MCGBlock._compute_running_mean) ----
        i = float(blk + 1)
        if running_mean_mode == 'real':
            # (rm*i + x)/i  ==  rm + x*(1/i)   (avoids a full-tile divide)
            inv_i = 1.0 / i
            rm_s = rm_s + s_out * inv_i
            rm_c = rm_c + agg_c * inv_i
        else:  # 'sliding'
            rm_s = alpha * rm_s + beta * s_out
            rm_c = alpha * rm_c + beta * agg_c

    out_s_ref[...] = rm_s.astype(out_s_ref.dtype)
    out_c_ref[...] = rm_c.astype(out_c_ref.dtype)


# ------------------------------ module wrapper -------------------------------
class MCGBlockPallas:
    """JAX/Pallas port of MCGBlock (MLP + CGBlock stack with running means)."""

    def __init__(self, config, key):
        self._config = config
        mlp_cfg = config['block']['mlp']
        assert mlp_cfg['n_layers'] > 0
        assert mlp_cfg['n_in'] == mlp_cfg['n_out'], 'MCG requires n_in == n_out'
        # TODO(synk): BatchNorm1d / Dropout branches of MLP are not implemented
        # (disabled in config; dropout is identity at inference anyway).
        assert not mlp_cfg.get('batchnorm', False)
        self.n_blocks = config['n_blocks']
        self.n_layers = mlp_cfg['n_layers']
        self.d = mlp_cfg['n_in']
        self.dp = _round_up(self.d, 128)          # lane-dense padded feature dim
        self.identity_c_mlp = config['identity_c_mlp']
        self.agg_mode = config['agg_mode']
        assert self.agg_mode in ('max', 'mean', 'avg')
        self.running_mean_mode = config['running_mean_mode']
        self.alpha = float(config.get('alpha', 0.5))
        self.beta = float(config.get('beta', 0.5))
        if self.running_mean_mode == 'sliding':
            assert abs(self.alpha + self.beta - 1.0) < 1e-6

        nw = self.n_blocks * self.n_layers
        keys = jax.random.split(key, 2 * nw)

        def init_stack(key_list):
            # PyTorch nn.Linear default init: U(-1/sqrt(fan_in), 1/sqrt(fan_in)).
            bound = 1.0 / math.sqrt(self.d)
            ws, bs = [], []
            for k in key_list:
                kw, kb = jax.random.split(k)
                w = jax.random.uniform(kw, (self.d, self.d), jnp.float32,
                                       -bound, bound)
                b = jax.random.uniform(kb, (self.d,), jnp.float32, -bound, bound)
                wp = jnp.zeros((self.dp, self.dp), jnp.float32)
                wp = wp.at[:self.d, :self.d].set(w)
                bp = jnp.zeros((1, self.dp), jnp.float32)
                bp = bp.at[0, :self.d].set(b)
                ws.append(wp.astype(jnp.bfloat16))   # MXU operands in bf16
                bs.append(bp)                        # biases stay f32
            return jnp.stack(ws), jnp.stack(bs)

        # stacked, zero-padded weights: (n_blocks*n_layers, Dp, Dp) / (.., 1, Dp)
        self.sw, self.sb = init_stack(keys[:nw])
        self.cw, self.cb = init_stack(keys[nw:])
        # unpadded views for the pure-JAX reference (same bf16 values)
        self.sw_raw = self.sw[:, :self.d, :self.d]
        self.sb_raw = self.sb[:, 0, :self.d]
        self.cw_raw = self.cw[:, :self.d, :self.d]
        self.cb_raw = self.cb[:, 0, :self.d]

    # -------------------------------------------------------------------
    def forward_both(self, s, c=None, mask=None):
        """Returns (running_mean_s, running_mean_c) in torch layout."""
        # TODO(synk): `mask` is accepted but unused, matching CGBlock.forward;
        # torch.isfinite debug asserts are omitted.
        lead = s.shape[:-2]
        T, D = s.shape[-2], s.shape[-1]
        assert D == self.d
        B = math.prod(lead) if lead else 1
        s3 = s.reshape(B, T, D).astype(jnp.float32)

        if c is None:
            assert self.identity_c_mlp
            c3 = jnp.ones((B, 1, D), jnp.float32)
        else:
            assert not self.identity_c_mlp
            if c.ndim < s.ndim:
                c = c[..., None, :]                      # unsqueeze(-2)
            assert c.shape[-2] == 1 and c.shape[-1] == D
            c3 = c.reshape(B, 1, D).astype(jnp.float32)

        Tp = _round_up(T, 8)       # sublane-aligned set dim (f32 tile rows)
        Dp = self.dp

        kind = _device_kind()
        num_tc = _num_tensorcores(kind)
        row_target = _mxu_row_target(kind)

        # Batch tile: fill the MXU LHS (row_target rows) per dot when possible.
        tb = max(1, min(B, _cdiv(row_target, max(Tp, 1))))
        # Megacore split ONLY when the chip has 2 TCs and each core still gets
        # >= 128 LHS rows; otherwise a single well-filled step wins.
        if num_tc >= 2 and B >= 2 and B * Tp >= 2 * 128:
            tb = min(tb, _cdiv(B, 2))
        Bp = _round_up(B, tb)

        # Fast path: skip wrapper-side pad/slice HBM passes when aligned.
        needs_pad = (Bp != B) or (Tp != T) or (Dp != D)
        if needs_pad:
            sp = jnp.zeros((Bp, Tp, Dp), jnp.float32).at[:B, :T, :D].set(s3)
            cp = jnp.zeros((Bp, 1, Dp), jnp.float32).at[:B, :, :D].set(c3)
        else:
            sp, cp = s3, c3

        kern = functools.partial(
            _mcg_kernel,
            n_blocks=self.n_blocks, n_layers=self.n_layers, t_valid=T,
            agg_mode=self.agg_mode, identity_c_mlp=self.identity_c_mlp,
            running_mean_mode=self.running_mean_mode,
            alpha=self.alpha, beta=self.beta)

        # Explicit VMEM budget from the per-step footprint (tiles + weights +
        # buffering + slack for intermediates), capped per-chip.
        act_bytes = 2 * 2 * (tb * Tp * Dp + tb * Dp) * 4       # s&c in/out, 2 bufs
        wgt_bytes = ((self.sw.size + self.cw.size) * 2
                     + (self.sb.size + self.cb.size) * 4)
        tmp_bytes = 6 * tb * Tp * Dp * 4
        vmem_need = act_bytes + 2 * wgt_bytes + tmp_bytes
        vmem_cap = (48 << 20) if num_tc >= 2 else (100 << 20)
        vmem_limit = int(min(max(vmem_need, 32 << 20), vmem_cap))

        def build_call(weight_mode):
            wkw = {} if weight_mode is None else {'pipeline_mode': weight_mode}
            return pl.pallas_call(
                kern,
                out_shape=(
                    jax.ShapeDtypeStruct((Bp, Tp, Dp), jnp.float32),
                    jax.ShapeDtypeStruct((Bp, 1, Dp), jnp.float32),
                ),
                grid_spec=pltpu.PrefetchScalarGridSpec(
                    num_scalar_prefetch=0,
                    grid=(Bp // tb,),
                    in_specs=[
                        pl.BlockSpec((tb, Tp, Dp), lambda i: (i, 0, 0)),
                        pl.BlockSpec((tb, 1, Dp), lambda i: (i, 0, 0)),
                        pl.BlockSpec(self.sw.shape, lambda i: (0, 0, 0), **wkw),
                        pl.BlockSpec(self.sb.shape, lambda i: (0, 0, 0), **wkw),
                        pl.BlockSpec(self.cw.shape, lambda i: (0, 0, 0), **wkw),
                        pl.BlockSpec(self.cb.shape, lambda i: (0, 0, 0), **wkw),
                    ],
                    out_specs=[
                        pl.BlockSpec((tb, Tp, Dp), lambda i: (i, 0, 0)),
                        pl.BlockSpec((tb, 1, Dp), lambda i: (i, 0, 0)),
                    ],
                ),
                compiler_params=pltpu.CompilerParams(
                    dimension_semantics=("parallel",),
                    vmem_limit_bytes=vmem_limit),
            )

        args = (sp, cp, self.sw, self.sb, self.cw, self.cb)
        try:
            # Weight/bias block index never changes -> single-buffered.
            rm_s, rm_c = build_call(pl.Buffered(1))(*args)
        except Exception:
            # Fallback for Pallas versions without pipeline_mode support on
            # pallas_call BlockSpecs.
            rm_s, rm_c = build_call(None)(*args)

        if needs_pad:
            rm_s = rm_s[:B, :T, :D]
            rm_c = rm_c[:B, :, :D]
        rm_s = rm_s.reshape(*lead, T, D)
        rm_c = rm_c.reshape(*lead, 1, D)
        return rm_s, rm_c

    def __call__(self, s, c=None, mask=None, return_s=False):
        rm_s, rm_c = self.forward_both(s, c, mask)
        if return_s:
            return rm_s
        # NOTE: matches torch .squeeze() — for B == 1 the batch dim is also
        # squeezed away.
        return jnp.squeeze(rm_c)


# -------------------------- pure-JAX reference -------------------------------
def _ref_mlp(x, w_stack, b_stack, blk, n_layers):
    for l in range(n_layers):
        idx = blk * n_layers + l
        x = jnp.dot(x.astype(w_stack.dtype), w_stack[idx],
                    preferred_element_type=jnp.float32) + b_stack[idx]
        if l < n_layers - 1:
            x = jnp.maximum(x, 0.0)
    return x


def _ref_forward(s, c, m):
    B, T, D = s.shape
    rm_s, rm_c = s.astype(jnp.float32), c.astype(jnp.float32)
    for blk in range(m.n_blocks):
        s_new = _ref_mlp(rm_s.reshape(-1, D), m.sw_raw, m.sb_raw,
                         blk, m.n_layers).reshape(B, T, D)
        if blk == 0 and m.identity_c_mlp:
            c_new = rm_c
        else:
            c_new = _ref_mlp(rm_c.reshape(-1, D), m.cw_raw, m.cb_raw,
                             blk, m.n_layers).reshape(B, 1, D)
        s_new = s_new * c_new
        if m.agg_mode == 'max':
            agg = jnp.max(s_new, axis=-2, keepdims=True)
        else:
            agg = jnp.mean(s_new, axis=-2, keepdims=True)
        i = float(blk + 1)
        if m.running_mean_mode == 'real':
            rm_s = (rm_s * i + s_new) / i
            rm_c = (rm_c * i + agg) / i
        else:
            rm_s = m.alpha * rm_s + m.beta * s_new
            rm_c = m.alpha * rm_c + m.beta * agg
    return rm_s, rm_c


# ---------------------------------- main --------------------------------------
if __name__ == "__main__":
    root = jax.random.PRNGKey(0)
    k_a, k_b, k_c, k_sa, k_sb, k_cb, k_sc = jax.random.split(root, 7)

    # ---- Config A: D=64 (lane-padded), max agg, sliding mean, identity c_mlp.
    cfg_a = {
        'n_blocks': 3, 'identity_c_mlp': True, 'agg_mode': 'max',
        'running_mean_mode': 'sliding', 'alpha': 0.5, 'beta': 0.5,
        'block': {'mlp': {'n_layers': 2, 'n_in': 64, 'n_out': 64,
                          'batchnorm': False, 'dropout': False}},
    }
    mcg_a = MCGBlockPallas(cfg_a, k_a)
    s_a = jax.random.normal(k_sa, (4, 16, 64), jnp.float32)
    rm_s_a, rm_c_a = mcg_a.forward_both(s_a)
    jax.block_until_ready((rm_s_a, rm_c_a))
    ref_s_a, ref_c_a = _ref_forward(s_a, jnp.ones((4, 1, 64), jnp.float32), mcg_a)
    assert rm_s_a.shape == (4, 16, 64) and rm_c_a.shape == (4, 1, 64)
    assert jnp.allclose(rm_s_a, ref_s_a, atol=1e-3, rtol=1e-3)
    assert jnp.allclose(rm_c_a, ref_c_a, atol=1e-3, rtol=1e-3)

    # ---- Config B: D=128 / T=8 / B=2 (fully aligned -> wrapper fast path),
    #      mean agg, 'real' running mean, non-identity c_mlp with provided c.
    cfg_b = {
        'n_blocks': 2, 'identity_c_mlp': False, 'agg_mode': 'mean',
        'running_mean_mode': 'real',
        'block': {'mlp': {'n_layers': 2, 'n_in': 128, 'n_out': 128,
                          'batchnorm': False, 'dropout': False}},
    }
    mcg_b = MCGBlockPallas(cfg_b, k_b)
    s_b = jax.random.normal(k_sb, (2, 8, 128), jnp.float32)
    c_b = jax.random.normal(k_cb, (2, 128), jnp.float32)     # unsqueezed to (2,1,128)
    rm_s_b, rm_c_b = mcg_b.forward_both(s_b, c_b)
    jax.block_until_ready((rm_s_b, rm_c_b))
    ref_s_b, ref_c_b = _ref_forward(s_b, c_b[:, None, :], mcg_b)
    assert jnp.allclose(rm_s_b, ref_s_b, atol=1e-3, rtol=1e-3)
    assert jnp.allclose(rm_c_b, ref_c_b, atol=1e-3, rtol=1e-3)

    # ---- Config C: T=10 (padded to 16 with masked aggregation), D=64, B=3,
    #      max agg, sliding; exercised through the public __call__.
    cfg_c = {
        'n_blocks': 2, 'identity_c_mlp': True, 'agg_mode': 'max',
        'running_mean_mode': 'sliding', 'alpha': 0.5, 'beta': 0.5,
        'block': {'mlp': {'n_layers': 2, 'n_in': 64, 'n_out': 64,
                          'batchnorm': False, 'dropout': False}},
    }
    mcg_c = MCGBlockPallas(cfg_c, k_c)
    s_c = jax.random.normal(k_sc, (3, 10, 64), jnp.float32)
    out_c_c = mcg_c(s_c)                    # running_mean_c.squeeze()
    jax.block_until_ready(out_c_c)
    ref_s_c, ref_c_c = _ref_forward(s_c, jnp.ones((3, 1, 64), jnp.float32), mcg_c)
    assert out_c_c.shape == (3, 64)
    assert jnp.allclose(out_c_c, jnp.squeeze(ref_c_c), atol=1e-3, rtol=1e-3)

    print("KERNEL_OK")
</pallas_src>

<mosaic_0001>
module attributes {stable_mosaic.version = 11 : i64} {
  func.func @_mcg_kernel(%arg0: i32, %arg1: memref<4x16x128xf32, #tpu.memory_space<vmem>>, %arg2: memref<4x1x128xf32, #tpu.memory_space<vmem>>, %arg3: memref<6x128x128xbf16, #tpu.memory_space<vmem>>, %arg4: memref<6x1x128xf32, #tpu.memory_space<vmem>>, %arg5: memref<6x128x128xbf16, #tpu.memory_space<vmem>>, %arg6: memref<6x1x128xf32, #tpu.memory_space<vmem>>, %arg7: memref<4x16x128xf32, #tpu.memory_space<vmem>>, %arg8: memref<4x1x128xf32, #tpu.memory_space<vmem>>) attributes {dimension_semantics = [#tpu.dimension_semantics<parallel>], iteration_bounds = array<i64: 1>, scalar_prefetch = 0 : i64, scratch_operands = 0 : i64, tpu.core_type = #tpu.core_type<tc>, window_params = [{transform_indices = @transform_0, window_bounds = array<i64: 4, 16, 128>}, {transform_indices = @transform_1, window_bounds = array<i64: 4, 1, 128>}, {pipeline_mode = #tpu.pipeline_mode<synchronous>, transform_indices = @transform_2, window_bounds = array<i64: 6, 128, 128>}, {pipeline_mode = #tpu.pipeline_mode<synchronous>, transform_indices = @transform_3, window_bounds = array<i64: 6, 1, 128>}, {pipeline_mode = #tpu.pipeline_mode<synchronous>, transform_indices = @transform_4, window_bounds = array<i64: 6, 128, 128>}, {pipeline_mode = #tpu.pipeline_mode<synchronous>, transform_indices = @transform_5, window_bounds = array<i64: 6, 1, 128>}, {transform_indices = @transform_6, window_bounds = array<i64: 4, 16, 128>}, {transform_indices = @transform_7, window_bounds = array<i64: 4, 1, 128>}]} {
    %c0 = arith.constant 0 : index
    %c0_0 = arith.constant 0 : index
    %c0_1 = arith.constant 0 : index
    %0 = vector.load %arg1[%c0, %c0_0, %c0_1] : memref<4x16x128xf32, #tpu.memory_space<vmem>>, vector<4x16x128xf32>
    %c0_2 = arith.constant 0 : index
    %c0_3 = arith.constant 0 : index
    %c0_4 = arith.constant 0 : index
    %1 = vector.load %arg2[%c0_2, %c0_3, %c0_4] : memref<4x1x128xf32, #tpu.memory_space<vmem>>, vector<4x1x128xf32>
    %2 = vector.shape_cast %0 : vector<4x16x128xf32> to vector<64x128xf32>
    %3 = arith.truncf %2 : vector<64x128xf32> to vector<64x128xbf16>
    %c0_5 = arith.constant 0 : index
    %c0_6 = arith.constant 0 : index
    %c0_7 = arith.constant 0 : index
    %4 = vector.load %arg3[%c0_5, %c0_6, %c0_7] : memref<6x128x128xbf16, #tpu.memory_space<vmem>>, vector<1x128x128xbf16>
    %5 = vector.shape_cast %4 : vector<1x128x128xbf16> to vector<128x128xbf16>
    %cst = arith.constant dense<0.000000e+00> : vector<64x128xf32>
    %6 = tpu.matmul %3, %5, %cst {dimension_numbers = #tpu.dot_dimension_numbers<[1], [0], [0], [1], [0, 0, 1, 1], [], []>} : vector<64x128xbf16>, vector<128x128xbf16>, vector<64x128xf32> -> vector<64x128xf32>
    %c0_8 = arith.constant 0 : index
    %c0_9 = arith.constant 0 : index
    %c0_10 = arith.constant 0 : index
    %7 = vector.load %arg4[%c0_8, %c0_9, %c0_10] : memref<6x1x128xf32, #tpu.memory_space<vmem>>, vector<1x1x128xf32>
    %8 = vector.shape_cast %7 : vector<1x1x128xf32> to vector<1x128xf32>
    %9 = vector.broadcast %8 : vector<1x128xf32> to vector<64x128xf32>
    %10 = arith.addf %6, %9 : vector<64x128xf32>
    %cst_11 = arith.constant 0.000000e+00 : f32
    %11 = vector.broadcast %cst_11 : f32 to vector<64x128xf32>
    %12 = arith.maximumf %10, %11 : vector<64x128xf32>
    %13 = arith.truncf %12 : vector<64x128xf32> to vector<64x128xbf16>
    %c1 = arith.constant 1 : index
    %c0_12 = arith.constant 0 : index
    %c0_13 = arith.constant 0 : index
    %14 = vector.load %arg3[%c1, %c0_12, %c0_13] : memref<6x128x128xbf16, #tpu.memory_space<vmem>>, vector<1x128x128xbf16>
    %15 = vector.shape_cast %14 : vector<1x128x128xbf16> to vector<128x128xbf16>
    %cst_14 = arith.constant dense<0.000000e+00> : vector<64x128xf32>
    %16 = tpu.matmul %13, %15, %cst_14 {dimension_numbers = #tpu.dot_dimension_numbers<[1], [0], [0], [1], [0, 0, 1, 1], [], []>} : vector<64x128xbf16>, vector<128x128xbf16>, vector<64x128xf32> -> vector<64x128xf32>
    %c1_15 = arith.constant 1 : index
    %c0_16 = arith.constant 0 : index
    %c0_17 = arith.constant 0 : index
    %17 = vector.load %arg4[%c1_15, %c0_16, %c0_17] : memref<6x1x128xf32, #tpu.memory_space<vmem>>, vector<1x1x128xf32>
    %18 = vector.shape_cast %17 : vector<1x1x128xf32> to vector<1x128xf32>
    %19 = vector.broadcast %18 : vector<1x128xf32> to vector<64x128xf32>
    %20 = arith.addf %16, %19 : vector<64x128xf32>
    %21 = vector.shape_cast %20 : vector<64x128xf32> to vector<4x16x128xf32>
    %22 = vector.broadcast %1 : vector<4x1x128xf32> to vector<4x16x128xf32>
    %23 = arith.mulf %21, %22 : vector<4x16x128xf32>
    %cst_18 = arith.constant dense<0xFF800000> : vector<4x128xf32>
    %24 = vector.multi_reduction <maximumf>, %23, %cst_18 [1] : vector<4x16x128xf32> to vector<4x128xf32>
    %25 = vector.shape_cast %24 : vector<4x128xf32> to vector<4x1x128xf32>
    %cst_19 = arith.constant 5.000000e-01 : f32
    %26 = vector.broadcast %cst_19 : f32 to vector<4x16x128xf32>
    %27 = arith.mulf %26, %0 : vector<4x16x128xf32>
    %cst_20 = arith.constant 5.000000e-01 : f32
    %28 = vector.broadcast %cst_20 : f32 to vector<4x16x128xf32>
    %29 = arith.mulf %28, %23 : vector<4x16x128xf32>
    %30 = arith.addf %27, %29 : vector<4x16x128xf32>
    %cst_21 = arith.constant 5.000000e-01 : f32
    %31 = vector.broadcast %cst_21 : f32 to vector<4x1x128xf32>
    %32 = arith.mulf %31, %1 : vector<4x1x128xf32>
    %cst_22 = arith.constant 5.000000e-01 : f32
    %33 = vector.broadcast %cst_22 : f32 to vector<4x1x128xf32>
    %34 = arith.mulf %33, %25 : vector<4x1x128xf32>
    %35 = arith.addf %32, %34 : vector<4x1x128xf32>
    %36 = vector.shape_cast %30 : vector<4x16x128xf32> to vector<64x128xf32>
    %37 = arith.truncf %36 : vector<64x128xf32> to vector<64x128xbf16>
    %c2 = arith.constant 2 : index
    %c0_23 = arith.constant 0 : index
    %c0_24 = arith.constant 0 : index
    %38 = vector.load %arg3[%c2, %c0_23, %c0_24] : memref<6x128x128xbf16, #tpu.memory_space<vmem>>, vector<1x128x128xbf16>
    %39 = vector.shape_cast %38 : vector<1x128x128xbf16> to vector<128x128xbf16>
    %cst_25 = arith.constant dense<0.000000e+00> : vector<64x128xf32>
    %40 = tpu.matmul %37, %39, %cst_25 {dimension_numbers = #tpu.dot_dimension_numbers<[1], [0], [0], [1], [0, 0, 1, 1], [], []>} : vector<64x128xbf16>, vector<128x128xbf16>, vector<64x128xf32> -> vector<64x128xf32>
    %c2_26 = arith.constant 2 : index
    %c0_27 = arith.constant 0 : index
    %c0_28 = arith.constant 0 : index
    %41 = vector.load %arg4[%c2_26, %c0_27, %c0_28] : memref<6x1x128xf32, #tpu.memory_space<vmem>>, vector<1x1x128xf32>
    %42 = vector.shape_cast %41 : vector<1x1x128xf32> to vector<1x128xf32>
    %43 = vector.broadcast %42 : vector<1x128xf32> to vector<64x128xf32>
    %44 = arith.addf %40, %43 : vector<64x128xf32>
    %cst_29 = arith.constant 0.000000e+00 : f32
    %45 = vector.broadcast %cst_29 : f32 to vector<64x128xf32>
    %46 = arith.maximumf %44, %45 : vector<64x128xf32>
    %47 = arith.truncf %46 : vector<64x128xf32> to vector<64x128xbf16>
    %c3 = arith.constant 3 : index
    %c0_30 = arith.constant 0 : index
    %c0_31 = arith.constant 0 : index
    %48 = vector.load %arg3[%c3, %c0_30, %c0_31] : memref<6x128x128xbf16, #tpu.memory_space<vmem>>, vector<1x128x128xbf16>
    %49 = vector.shape_cast %48 : vector<1x128x128xbf16> to vector<128x128xbf16>
    %cst_32 = arith.constant dense<0.000000e+00> : vector<64x128xf32>
    %50 = tpu.matmul %47, %49, %cst_32 {dimension_numbers = #tpu.dot_dimension_numbers<[1], [0], [0], [1], [0, 0, 1, 1], [], []>} : vector<64x128xbf16>, vector<128x128xbf16>, vector<64x128xf32> -> vector<64x128xf32>
    %c3_33 = arith.constant 3 : index
    %c0_34 = arith.constant 0 : index
    %c0_35 = arith.constant 0 : index
    %51 = vector.load %arg4[%c3_33, %c0_34, %c0_35] : memref<6x1x128xf32, #tpu.memory_space<vmem>>, vector<1x1x128xf32>
    %52 = vector.shape_cast %51 : vector<1x1x128xf32> to vector<1x128xf32>
    %53 = vector.broadcast %52 : vector<1x128xf32> to vector<64x128xf32>
    %54 = arith.addf %50, %53 : vector<64x128xf32>
    %55 = vector.shape_cast %54 : vector<64x128xf32> to vector<4x16x128xf32>
    %56 = vector.shape_cast %35 : vector<4x1x128xf32> to vector<4x128xf32>
    %57 = arith.truncf %56 : vector<4x128xf32> to vector<4x128xbf16>
    %c2_36 = arith.constant 2 : index
    %c0_37 = arith.constant 0 : index
    %c0_38 = arith.constant 0 : index
    %58 = vector.load %arg5[%c2_36, %c0_37, %c0_38] : memref<6x128x128xbf16, #tpu.memory_space<vmem>>, vector<1x128x128xbf16>
    %59 = vector.shape_cast %58 : vector<1x128x128xbf16> to vector<128x128xbf16>
    %cst_39 = arith.constant dense<0.000000e+00> : vector<4x128xf32>
    %60 = tpu.matmul %57, %59, %cst_39 {dimension_numbers = #tpu.dot_dimension_numbers<[1], [0], [0], [1], [0, 0, 1, 1], [], []>} : vector<4x128xbf16>, vector<128x128xbf16>, vector<4x128xf32> -> vector<4x128xf32>
    %c2_40 = arith.constant 2 : index
    %c0_41 = arith.constant 0 : index
    %c0_42 = arith.constant 0 : index
    %61 = vector.load %arg6[%c2_40, %c0_41, %c0_42] : memref<6x1x128xf32, #tpu.memory_space<vmem>>, vector<1x1x128xf32>
    %62 = vector.shape_cast %61 : vector<1x1x128xf32> to vector<1x128xf32>
    %63 = vector.broadcast %62 : vector<1x128xf32> to vector<4x128xf32>
    %64 = arith.addf %60, %63 : vector<4x128xf32>
    %cst_43 = arith.constant 0.000000e+00 : f32
    %65 = vector.broadcast %cst_43 : f32 to vector<4x128xf32>
    %66 = arith.maximumf %64, %65 : vector<4x128xf32>
    %67 = arith.truncf %66 : vector<4x128xf32> to vector<4x128xbf16>
    %c3_44 = arith.constant 3 : index
    %c0_45 = arith.constant 0 : index
    %c0_46 = arith.constant 0 : index
    %68 = vector.load %arg5[%c3_44, %c0_45, %c0_46] : memref<6x128x128xbf16, #tpu.memory_space<vmem>>, vector<1x128x128xbf16>
    %69 = vector.shape_cast %68 : vector<1x128x128xbf16> to vector<128x128xbf16>
    %cst_47 = arith.constant dense<0.000000e+00> : vector<4x128xf32>
    %70 = tpu.matmul %67, %69, %cst_47 {dimension_numbers = #tpu.dot_dimension_numbers<[1], [0], [0], [1], [0, 0, 1, 1], [], []>} : vector<4x128xbf16>, vector<128x128xbf16>, vector<4x128xf32> -> vector<4x128xf32>
    %c3_48 = arith.constant 3 : index
    %c0_49 = arith.constant 0 : index
    %c0_50 = arith.constant 0 : index
    %71 = vector.load %arg6[%c3_48, %c0_49, %c0_50] : memref<6x1x128xf32, #tpu.memory_space<vmem>>, vector<1x1x128xf32>
    %72 = vector.shape_cast %71 : vector<1x1x128xf32> to vector<1x128xf32>
    %73 = vector.broadcast %72 : vector<1x128xf32> to vector<4x128xf32>
    %74 = arith.addf %70, %73 : vector<4x128xf32>
    %75 = vector.shape_cast %74 : vector<4x128xf32> to vector<4x1x128xf32>
    %76 = vector.broadcast %75 : vector<4x1x128xf32> to vector<4x16x128xf32>
    %77 = arith.mulf %55, %76 : vector<4x16x128xf32>
    %cst_51 = arith.constant dense<0xFF800000> : vector<4x128xf32>
    %78 = vector.multi_reduction <maximumf>, %77, %cst_51 [1] : vector<4x16x128xf32> to vector<4x128xf32>
    %79 = vector.shape_cast %78 : vector<4x128xf32> to vector<4x1x128xf32>
    %cst_52 = arith.constant 5.000000e-01 : f32
    %80 = vector.broadcast %cst_52 : f32 to vector<4x16x128xf32>
    %81 = arith.mulf %80, %30 : vector<4x16x128xf32>
    %cst_53 = arith.constant 5.000000e-01 : f32
    %82 = vector.broadcast %cst_53 : f32 to vector<4x16x128xf32>
    %83 = arith.mulf %82, %77 : vector<4x16x128xf32>
    %84 = arith.addf %81, %83 : vector<4x16x128xf32>
    %cst_54 = arith.constant 5.000000e-01 : f32
    %85 = vector.broadcast %cst_54 : f32 to vector<4x1x128xf32>
    %86 = arith.mulf %85, %35 : vector<4x1x128xf32>
    %cst_55 = arith.constant 5.000000e-01 : f32
    %87 = vector.broadcast %cst_55 : f32 to vector<4x1x128xf32>
    %88 = arith.mulf %87, %79 : vector<4x1x128xf32>
    %89 = arith.addf %86, %88 : vector<4x1x128xf32>
    %90 = vector.shape_cast %84 : vector<4x16x128xf32> to vector<64x128xf32>
    %91 = arith.truncf %90 : vector<64x128xf32> to vector<64x128xbf16>
    %c4 = arith.constant 4 : index
    %c0_56 = arith.constant 0 : index
    %c0_57 = arith.constant 0 : index
    %92 = vector.load %arg3[%c4, %c0_56, %c0_57] : memref<6x128x128xbf16, #tpu.memory_space<vmem>>, vector<1x128x128xbf16>
    %93 = vector.shape_cast %92 : vector<1x128x128xbf16> to vector<128x128xbf16>
    %cst_58 = arith.constant dense<0.000000e+00> : vector<64x128xf32>
    %94 = tpu.matmul %91, %93, %cst_58 {dimension_numbers = #tpu.dot_dimension_numbers<[1], [0], [0], [1], [0, 0, 1, 1], [], []>} : vector<64x128xbf16>, vector<128x128xbf16>, vector<64x128xf32> -> vector<64x128xf32>
    %c4_59 = arith.constant 4 : index
    %c0_60 = arith.constant 0 : index
    %c0_61 = arith.constant 0 : index
    %95 = vector.load %arg4[%c4_59, %c0_60, %c0_61] : memref<6x1x128xf32, #tpu.memory_space<vmem>>, vector<1x1x128xf32>
    %96 = vector.shape_cast %95 : vector<1x1x128xf32> to vector<1x128xf32>
    %97 = vector.broadcast %96 : vector<1x128xf32> to vector<64x128xf32>
    %98 = arith.addf %94, %97 : vector<64x128xf32>
    %cst_62 = arith.constant 0.000000e+00 : f32
    %99 = vector.broadcast %cst_62 : f32 to vector<64x128xf32>
    %100 = arith.maximumf %98, %99 : vector<64x128xf32>
    %101 = arith.truncf %100 : vector<64x128xf32> to vector<64x128xbf16>
    %c5 = arith.constant 5 : index
    %c0_63 = arith.constant 0 : index
    %c0_64 = arith.constant 0 : index
    %102 = vector.load %arg3[%c5, %c0_63, %c0_64] : memref<6x128x128xbf16, #tpu.memory_space<vmem>>, vector<1x128x128xbf16>
    %103 = vector.shape_cast %102 : vector<1x128x128xbf16> to vector<128x128xbf16>
    %cst_65 = arith.constant dense<0.000000e+00> : vector<64x128xf32>
    %104 = tpu.matmul %101, %103, %cst_65 {dimension_numbers = #tpu.dot_dimension_numbers<[1], [0], [0], [1], [0, 0, 1, 1], [], []>} : vector<64x128xbf16>, vector<128x128xbf16>, vector<64x128xf32> -> vector<64x128xf32>
    %c5_66 = arith.constant 5 : index
    %c0_67 = arith.constant 0 : index
    %c0_68 = arith.constant 0 : index
    %105 = vector.load %arg4[%c5_66, %c0_67, %c0_68] : memref<6x1x128xf32, #tpu.memory_space<vmem>>, vector<1x1x128xf32>
    %106 = vector.shape_cast %105 : vector<1x1x128xf32> to vector<1x128xf32>
    %107 = vector.broadcast %106 : vector<1x128xf32> to vector<64x128xf32>
    %108 = arith.addf %104, %107 : vector<64x128xf32>
    %109 = vector.shape_cast %108 : vector<64x128xf32> to vector<4x16x128xf32>
    %110 = vector.shape_cast %89 : vector<4x1x128xf32> to vector<4x128xf32>
    %111 = arith.truncf %110 : vector<4x128xf32> to vector<4x128xbf16>
    %c4_69 = arith.constant 4 : index
    %c0_70 = arith.constant 0 : index
    %c0_71 = arith.constant 0 : index
    %112 = vector.load %arg5[%c4_69, %c0_70, %c0_71] : memref<6x128x128xbf16, #tpu.memory_space<vmem>>, vector<1x128x128xbf16>
    %113 = vector.shape_cast %112 : vector<1x128x128xbf16> to vector<128x128xbf16>
    %cst_72 = arith.constant dense<0.000000e+00> : vector<4x128xf32>
    %114 = tpu.matmul %111, %113, %cst_72 {dimension_numbers = #tpu.dot_dimension_numbers<[1], [0], [0], [1], [0, 0, 1, 1], [], []>} : vector<4x128xbf16>, vector<128x128xbf16>, vector<4x128xf32> -> vector<4x128xf32>
    %c4_73 = arith.constant 4 : index
    %c0_74 = arith.constant 0 : index
    %c0_75 = arith.constant 0 : index
    %115 = vector.load %arg6[%c4_73, %c0_74, %c0_75] : memref<6x1x128xf32, #tpu.memory_space<vmem>>, vector<1x1x128xf32>
    %116 = vector.shape_cast %115 : vector<1x1x128xf32> to vector<1x128xf32>
    %117 = vector.broadcast %116 : vector<1x128xf32> to vector<4x128xf32>
    %118 = arith.addf %114, %117 : vector<4x128xf32>
    %cst_76 = arith.constant 0.000000e+00 : f32
    %119 = vector.broadcast %cst_76 : f32 to vector<4x128xf32>
    %120 = arith.maximumf %118, %119 : vector<4x128xf32>
    %121 = arith.truncf %120 : vector<4x128xf32> to vector<4x128xbf16>
    %c5_77 = arith.constant 5 : index
    %c0_78 = arith.constant 0 : index
    %c0_79 = arith.constant 0 : index
    %122 = vector.load %arg5[%c5_77, %c0_78, %c0_79] : memref<6x128x128xbf16, #tpu.memory_space<vmem>>, vector<1x128x128xbf16>
    %123 = vector.shape_cast %122 : vector<1x128x128xbf16> to vector<128x128xbf16>
    %cst_80 = arith.constant dense<0.000000e+00> : vector<4x128xf32>
    %124 = tpu.matmul %121, %123, %cst_80 {dimension_numbers = #tpu.dot_dimension_numbers<[1], [0], [0], [1], [0, 0, 1, 1], [], []>} : vector<4x128xbf16>, vector<128x128xbf16>, vector<4x128xf32> -> vector<4x128xf32>
    %c5_81 = arith.constant 5 : index
    %c0_82 = arith.constant 0 : index
    %c0_83 = arith.constant 0 : index
    %125 = vector.load %arg6[%c5_81, %c0_82, %c0_83] : memref<6x1x128xf32, #tpu.memory_space<vmem>>, vector<1x1x128xf32>
    %126 = vector.shape_cast %125 : vector<1x1x128xf32> to vector<1x128xf32>
    %127 = vector.broadcast %126 : vector<1x128xf32> to vector<4x128xf32>
    %128 = arith.addf %124, %127 : vector<4x128xf32>
    %129 = vector.shape_cast %128 : vector<4x128xf32> to vector<4x1x128xf32>
    %130 = vector.broadcast %129 : vector<4x1x128xf32> to vector<4x16x128xf32>
    %131 = arith.mulf %109, %130 : vector<4x16x128xf32>
    %cst_84 = arith.constant dense<0xFF800000> : vector<4x128xf32>
    %132 = vector.multi_reduction <maximumf>, %131, %cst_84 [1] : vector<4x16x128xf32> to vector<4x128xf32>
    %133 = vector.shape_cast %132 : vector<4x128xf32> to vector<4x1x128xf32>
    %cst_85 = arith.constant 5.000000e-01 : f32
    %134 = vector.broadcast %cst_85 : f32 to vector<4x16x128xf32>
    %135 = arith.mulf %134, %84 : vector<4x16x128xf32>
    %cst_86 = arith.constant 5.000000e-01 : f32
    %136 = vector.broadcast %cst_86 : f32 to vector<4x16x128xf32>
    %137 = arith.mulf %136, %131 : vector<4x16x128xf32>
    %138 = arith.addf %135, %137 : vector<4x16x128xf32>
    %cst_87 = arith.constant 5.000000e-01 : f32
    %139 = vector.broadcast %cst_87 : f32 to vector<4x1x128xf32>
    %140 = arith.mulf %139, %89 : vector<4x1x128xf32>
    %cst_88 = arith.constant 5.000000e-01 : f32
    %141 = vector.broadcast %cst_88 : f32 to vector<4x1x128xf32>
    %142 = arith.mulf %141, %133 : vector<4x1x128xf32>
    %143 = arith.addf %140, %142 : vector<4x1x128xf32>
    %c0_89 = arith.constant 0 : index
    %c0_90 = arith.constant 0 : index
    %c0_91 = arith.constant 0 : index
    %144 = vector.load %arg7[%c0_89, %c0_90, %c0_91] : memref<4x16x128xf32, #tpu.memory_space<vmem>>, vector<4x16x128xf32>
    tpu.vector_store %arg7[%c0_89, %c0_90, %c0_91], %138 {strides = array<i32>} : memref<4x16x128xf32, #tpu.memory_space<vmem>>, vector<4x16x128xf32>,
    %c0_92 = arith.constant 0 : index
    %c0_93 = arith.constant 0 : index
    %c0_94 = arith.constant 0 : index
    %145 = vector.load %arg8[%c0_92, %c0_93, %c0_94] : memref<4x1x128xf32, #tpu.memory_space<vmem>>, vector<4x1x128xf32>
    tpu.vector_store %arg8[%c0_92, %c0_93, %c0_94], %143 {strides = array<i32>} : memref<4x1x128xf32, #tpu.memory_space<vmem>>, vector<4x1x128xf32>,
    return
  }
  func.func @transform_0(%arg0: i32) -> (i32, i32, i32) {
    %c0_i32 = arith.constant 0 : i32
    %c0_i32_0 = arith.constant 0 : i32
    %c0_i32_1 = arith.constant 0 : i32
    return %arg0, %c0_i32, %c0_i32_0 : i32, i32, i32
  }
  func.func @transform_1(%arg0: i32) -> (i32, i32, i32) {
    %c0_i32 = arith.constant 0 : i32
    %c0_i32_0 = arith.constant 0 : i32
    %c0_i32_1 = arith.constant 0 : i32
    return %arg0, %c0_i32, %c0_i32_0 : i32, i32, i32
  }
  func.func @transform_2(%arg0: i32) -> (i32, i32, i32) {
    %c0_i32 = arith.constant 0 : i32
    %c0_i32_0 = arith.constant 0 : i32
    %c0_i32_1 = arith.constant 0 : i32
    %c0_i32_2 = arith.constant 0 : i32
    return %c0_i32, %c0_i32_0, %c0_i32_1 : i32, i32, i32
  }
  func.func @transform_3(%arg0: i32) -> (i32, i32, i32) {
    %c0_i32 = arith.constant 0 : i32
    %c0_i32_0 = arith.constant 0 : i32
    %c0_i32_1 = arith.constant 0 : i32
    %c0_i32_2 = arith.constant 0 : i32
    return %c0_i32, %c0_i32_0, %c0_i32_1 : i32, i32, i32
  }
  func.func @transform_4(%arg0: i32) -> (i32, i32, i32) {
    %c0_i32 = arith.constant 0 : i32
    %c0_i32_0 = arith.constant 0 : i32
    %c0_i32_1 = arith.constant 0 : i32
    %c0_i32_2 = arith.constant 0 : i32
    return %c0_i32, %c0_i32_0, %c0_i32_1 : i32, i32, i32
  }
  func.func @transform_5(%arg0: i32) -> (i32, i32, i32) {
    %c0_i32 = arith.constant 0 : i32
    %c0_i32_0 = arith.constant 0 : i32
    %c0_i32_1 = arith.constant 0 : i32
    %c0_i32_2 = arith.constant 0 : i32
    return %c0_i32, %c0_i32_0, %c0_i32_1 : i32, i32, i32
  }
  func.func @transform_6(%arg0: i32) -> (i32, i32, i32) {
    %c0_i32 = arith.constant 0 : i32
    %c0_i32_0 = arith.constant 0 : i32
    %c0_i32_1 = arith.constant 0 : i32
    return %arg0, %c0_i32, %c0_i32_0 : i32, i32, i32
  }
  func.func @transform_7(%arg0: i32) -> (i32, i32, i32) {
    %c0_i32 = arith.constant 0 : i32
    %c0_i32_0 = arith.constant 0 : i32
    %c0_i32_1 = arith.constant 0 : i32
    return %arg0, %c0_i32, %c0_i32_0 : i32, i32, i32
  }
}

module attributes {stable_mosaic.version = 11 : i64} {
  func.func @_mcg_kernel(%arg0: i32, %arg1: memref<4x16x128xf32, #tpu.memory_space<vmem>>, %arg2: memref<4x1x128xf32, #tpu.memory_space<vmem>>, %arg3: memref<6x128x128xbf16, #tpu.memory_space<vmem>>, %arg4: memref<6x1x128xf32, #tpu.memory_space<vmem>>, %arg5: memref<6x128x128xbf16, #tpu.memory_space<vmem>>, %arg6: memref<6x1x128xf32, #tpu.memory_space<vmem>>, %arg7: memref<4x16x128xf32, #tpu.memory_space<vmem>>, %arg8: memref<4x1x128xf32, #tpu.memory_space<vmem>>) attributes {dimension_semantics = [#tpu.dimension_semantics<parallel>], iteration_bounds = array<i64: 1>, scalar_prefetch = 0 : i64, scratch_operands = 0 : i64, tpu.core_type = #tpu.core_type<tc>, window_params = [{transform_indices = @transform_0, window_bounds = array<i64: 4, 16, 128>}, {transform_indices = @transform_1, window_bounds = array<i64: 4, 1, 128>}, {pipeline_mode = #tpu.pipeline_mode<synchronous>, transform_indices = @transform_2, window_bounds = array<i64: 6, 128, 128>}, {pipeline_mode = #tpu.pipeline_mode<synchronous>, transform_indices = @transform_3, window_bounds = array<i64: 6, 1, 128>}, {pipeline_mode = #tpu.pipeline_mode<synchronous>, transform_indices = @transform_4, window_bounds = array<i64: 6, 128, 128>}, {pipeline_mode = #tpu.pipeline_mode<synchronous>, transform_indices = @transform_5, window_bounds = array<i64: 6, 1, 128>}, {transform_indices = @transform_6, window_bounds = array<i64: 4, 16, 128>}, {transform_indices = @transform_7, window_bounds = array<i64: 4, 1, 128>}]} {
    %c0 = arith.constant 0 : index
    %c0_0 = arith.constant 0 : index
    %c0_1 = arith.constant 0 : index
    %0 = vector.load %arg1[%c0, %c0_0, %c0_1] : memref<4x16x128xf32, #tpu.memory_space<vmem>>, vector<4x16x128xf32>
    %c0_2 = arith.constant 0 : index
    %c0_3 = arith.constant 0 : index
    %c0_4 = arith.constant 0 : index
    %1 = vector.load %arg2[%c0_2, %c0_3, %c0_4] : memref<4x1x128xf32, #tpu.memory_space<vmem>>, vector<4x1x128xf32>
    %2 = vector.shape_cast %0 : vector<4x16x128xf32> to vector<64x128xf32>
    %3 = arith.truncf %2 : vector<64x128xf32> to vector<64x128xbf16>
    %c0_5 = arith.constant 0 : index
    %c0_6 = arith.constant 0 : index
    %c0_7 = arith.constant 0 : index
    %4 = vector.load %arg3[%c0_5, %c0_6, %c0_7] : memref<6x128x128xbf16, #tpu.memory_space<vmem>>, vector<1x128x128xbf16>
    %5 = vector.shape_cast %4 : vector<1x128x128xbf16> to vector<128x128xbf16>
    %cst = arith.constant dense<0.000000e+00> : vector<64x128xf32>
    %6 = tpu.matmul %3, %5, %cst {dimension_numbers = #tpu.dot_dimension_numbers<[1], [0], [0], [1], [0, 0, 1, 1], [], []>} : vector<64x128xbf16>, vector<128x128xbf16>, vector<64x128xf32> -> vector<64x128xf32>
    %c0_8 = arith.constant 0 : index
    %c0_9 = arith.constant 0 : index
    %c0_10 = arith.constant 0 : index
    %7 = vector.load %arg4[%c0_8, %c0_9, %c0_10] : memref<6x1x128xf32, #tpu.memory_space<vmem>>, vector<1x1x128xf32>
    %8 = vector.shape_cast %7 : vector<1x1x128xf32> to vector<1x128xf32>
    %9 = vector.broadcast %8 : vector<1x128xf32> to vector<64x128xf32>
    %10 = arith.addf %6, %9 : vector<64x128xf32>
    %cst_11 = arith.constant 0.000000e+00 : f32
    %11 = vector.broadcast %cst_11 : f32 to vector<64x128xf32>
    %12 = arith.maximumf %10, %11 : vector<64x128xf32>
    %13 = arith.truncf %12 : vector<64x128xf32> to vector<64x128xbf16>
    %c1 = arith.constant 1 : index
    %c0_12 = arith.constant 0 : index
    %c0_13 = arith.constant 0 : index
    %14 = vector.load %arg3[%c1, %c0_12, %c0_13] : memref<6x128x128xbf16, #tpu.memory_space<vmem>>, vector<1x128x128xbf16>
    %15 = vector.shape_cast %14 : vector<1x128x128xbf16> to vector<128x128xbf16>
    %cst_14 = arith.constant dense<0.000000e+00> : vector<64x128xf32>
    %16 = tpu.matmul %13, %15, %cst_14 {dimension_numbers = #tpu.dot_dimension_numbers<[1], [0], [0], [1], [0, 0, 1, 1], [], []>} : vector<64x128xbf16>, vector<128x128xbf16>, vector<64x128xf32> -> vector<64x128xf32>
    %c1_15 = arith.constant 1 : index
    %c0_16 = arith.constant 0 : index
    %c0_17 = arith.constant 0 : index
    %17 = vector.load %arg4[%c1_15, %c0_16, %c0_17] : memref<6x1x128xf32, #tpu.memory_space<vmem>>, vector<1x1x128xf32>
    %18 = vector.shape_cast %17 : vector<1x1x128xf32> to vector<1x128xf32>
    %19 = vector.broadcast %18 : vector<1x128xf32> to vector<64x128xf32>
    %20 = arith.addf %16, %19 : vector<64x128xf32>
    %21 = vector.shape_cast %20 : vector<64x128xf32> to vector<4x16x128xf32>
    %22 = vector.broadcast %1 : vector<4x1x128xf32> to vector<4x16x128xf32>
    %23 = arith.mulf %21, %22 : vector<4x16x128xf32>
    %cst_18 = arith.constant dense<0xFF800000> : vector<4x128xf32>
    %24 = vector.multi_reduction <maximumf>, %23, %cst_18 [1] : vector<4x16x128xf32> to vector<4x128xf32>
    %25 = vector.shape_cast %24 : vector<4x128xf32> to vector<4x1x128xf32>
    %cst_19 = arith.constant 5.000000e-01 : f32
    %26 = vector.broadcast %cst_19 : f32 to vector<4x16x128xf32>
    %27 = arith.mulf %26, %0 : vector<4x16x128xf32>
    %cst_20 = arith.constant 5.000000e-01 : f32
    %28 = vector.broadcast %cst_20 : f32 to vector<4x16x128xf32>
    %29 = arith.mulf %28, %23 : vector<4x16x128xf32>
    %30 = arith.addf %27, %29 : vector<4x16x128xf32>
    %cst_21 = arith.constant 5.000000e-01 : f32
    %31 = vector.broadcast %cst_21 : f32 to vector<4x1x128xf32>
    %32 = arith.mulf %31, %1 : vector<4x1x128xf32>
    %cst_22 = arith.constant 5.000000e-01 : f32
    %33 = vector.broadcast %cst_22 : f32 to vector<4x1x128xf32>
    %34 = arith.mulf %33, %25 : vector<4x1x128xf32>
    %35 = arith.addf %32, %34 : vector<4x1x128xf32>
    %36 = vector.shape_cast %30 : vector<4x16x128xf32> to vector<64x128xf32>
    %37 = arith.truncf %36 : vector<64x128xf32> to vector<64x128xbf16>
    %c2 = arith.constant 2 : index
    %c0_23 = arith.constant 0 : index
    %c0_24 = arith.constant 0 : index
    %38 = vector.load %arg3[%c2, %c0_23, %c0_24] : memref<6x128x128xbf16, #tpu.memory_space<vmem>>, vector<1x128x128xbf16>
    %39 = vector.shape_cast %38 : vector<1x128x128xbf16> to vector<128x128xbf16>
    %cst_25 = arith.constant dense<0.000000e+00> : vector<64x128xf32>
    %40 = tpu.matmul %37, %39, %cst_25 {dimension_numbers = #tpu.dot_dimension_numbers<[1], [0], [0], [1], [0, 0, 1, 1], [], []>} : vector<64x128xbf16>, vector<128x128xbf16>, vector<64x128xf32> -> vector<64x128xf32>
    %c2_26 = arith.constant 2 : index
    %c0_27 = arith.constant 0 : index
    %c0_28 = arith.constant 0 : index
    %41 = vector.load %arg4[%c2_26, %c0_27, %c0_28] : memref<6x1x128xf32, #tpu.memory_space<vmem>>, vector<1x1x128xf32>
    %42 = vector.shape_cast %41 : vector<1x1x128xf32> to vector<1x128xf32>
    %43 = vector.broadcast %42 : vector<1x128xf32> to vector<64x128xf32>
    %44 = arith.addf %40, %43 : vector<64x128xf32>
    %cst_29 = arith.constant 0.000000e+00 : f32
    %45 = vector.broadcast %cst_29 : f32 to vector<64x128xf32>
    %46 = arith.maximumf %44, %45 : vector<64x128xf32>
    %47 = arith.truncf %46 : vector<64x128xf32> to vector<64x128xbf16>
    %c3 = arith.constant 3 : index
    %c0_30 = arith.constant 0 : index
    %c0_31 = arith.constant 0 : index
    %48 = vector.load %arg3[%c3, %c0_30, %c0_31] : memref<6x128x128xbf16, #tpu.memory_space<vmem>>, vector<1x128x128xbf16>
    %49 = vector.shape_cast %48 : vector<1x128x128xbf16> to vector<128x128xbf16>
    %cst_32 = arith.constant dense<0.000000e+00> : vector<64x128xf32>
    %50 = tpu.matmul %47, %49, %cst_32 {dimension_numbers = #tpu.dot_dimension_numbers<[1], [0], [0], [1], [0, 0, 1, 1], [], []>} : vector<64x128xbf16>, vector<128x128xbf16>, vector<64x128xf32> -> vector<64x128xf32>
    %c3_33 = arith.constant 3 : index
    %c0_34 = arith.constant 0 : index
    %c0_35 = arith.constant 0 : index
    %51 = vector.load %arg4[%c3_33, %c0_34, %c0_35] : memref<6x1x128xf32, #tpu.memory_space<vmem>>, vector<1x1x128xf32>
    %52 = vector.shape_cast %51 : vector<1x1x128xf32> to vector<1x128xf32>
    %53 = vector.broadcast %52 : vector<1x128xf32> to vector<64x128xf32>
    %54 = arith.addf %50, %53 : vector<64x128xf32>
    %55 = vector.shape_cast %54 : vector<64x128xf32> to vector<4x16x128xf32>
    %56 = vector.shape_cast %35 : vector<4x1x128xf32> to vector<4x128xf32>
    %57 = arith.truncf %56 : vector<4x128xf32> to vector<4x128xbf16>
    %c2_36 = arith.constant 2 : index
    %c0_37 = arith.constant 0 : index
    %c0_38 = arith.constant 0 : index
    %58 = vector.load %arg5[%c2_36, %c0_37, %c0_38] : memref<6x128x128xbf16, #tpu.memory_space<vmem>>, vector<1x128x128xbf16>
    %59 = vector.shape_cast %58 : vector<1x128x128xbf16> to vector<128x128xbf16>
    %cst_39 = arith.constant dense<0.000000e+00> : vector<4x128xf32>
    %60 = tpu.matmul %57, %59, %cst_39 {dimension_numbers = #tpu.dot_dimension_numbers<[1], [0], [0], [1], [0, 0, 1, 1], [], []>} : vector<4x128xbf16>, vector<128x128xbf16>, vector<4x128xf32> -> vector<4x128xf32>
    %c2_40 = arith.constant 2 : index
    %c0_41 = arith.constant 0 : index
    %c0_42 = arith.constant 0 : index
    %61 = vector.load %arg6[%c2_40, %c0_41, %c0_42] : memref<6x1x128xf32, #tpu.memory_space<vmem>>, vector<1x1x128xf32>
    %62 = vector.shape_cast %61 : vector<1x1x128xf32> to vector<1x128xf32>
    %63 = vector.broadcast %62 : vector<1x128xf32> to vector<4x128xf32>
    %64 = arith.addf %60, %63 : vector<4x128xf32>
    %cst_43 = arith.constant 0.000000e+00 : f32
    %65 = vector.broadcast %cst_43 : f32 to vector<4x128xf32>
    %66 = arith.maximumf %64, %65 : vector<4x128xf32>
    %67 = arith.truncf %66 : vector<4x128xf32> to vector<4x128xbf16>
    %c3_44 = arith.constant 3 : index
    %c0_45 = arith.constant 0 : index
    %c0_46 = arith.constant 0 : index
    %68 = vector.load %arg5[%c3_44, %c0_45, %c0_46] : memref<6x128x128xbf16, #tpu.memory_space<vmem>>, vector<1x128x128xbf16>
    %69 = vector.shape_cast %68 : vector<1x128x128xbf16> to vector<128x128xbf16>
    %cst_47 = arith.constant dense<0.000000e+00> : vector<4x128xf32>
    %70 = tpu.matmul %67, %69, %cst_47 {dimension_numbers = #tpu.dot_dimension_numbers<[1], [0], [0], [1], [0, 0, 1, 1], [], []>} : vector<4x128xbf16>, vector<128x128xbf16>, vector<4x128xf32> -> vector<4x128xf32>
    %c3_48 = arith.constant 3 : index
    %c0_49 = arith.constant 0 : index
    %c0_50 = arith.constant 0 : index
    %71 = vector.load %arg6[%c3_48, %c0_49, %c0_50] : memref<6x1x128xf32, #tpu.memory_space<vmem>>, vector<1x1x128xf32>
    %72 = vector.shape_cast %71 : vector<1x1x128xf32> to vector<1x128xf32>
    %73 = vector.broadcast %72 : vector<1x128xf32> to vector<4x128xf32>
    %74 = arith.addf %70, %73 : vector<4x128xf32>
    %75 = vector.shape_cast %74 : vector<4x128xf32> to vector<4x1x128xf32>
    %76 = vector.broadcast %75 : vector<4x1x128xf32> to vector<4x16x128xf32>
    %77 = arith.mulf %55, %76 : vector<4x16x128xf32>
    %cst_51 = arith.constant dense<0xFF800000> : vector<4x128xf32>
    %78 = vector.multi_reduction <maximumf>, %77, %cst_51 [1] : vector<4x16x128xf32> to vector<4x128xf32>
    %79 = vector.shape_cast %78 : vector<4x128xf32> to vector<4x1x128xf32>
    %cst_52 = arith.constant 5.000000e-01 : f32
    %80 = vector.broadcast %cst_52 : f32 to vector<4x16x128xf32>
    %81 = arith.mulf %80, %30 : vector<4x16x128xf32>
    %cst_53 = arith.constant 5.000000e-01 : f32
    %82 = vector.broadcast %cst_53 : f32 to vector<4x16x128xf32>
    %83 = arith.mulf %82, %77 : vector<4x16x128xf32>
    %84 = arith.addf %81, %83 : vector<4x16x128xf32>
    %cst_54 = arith.constant 5.000000e-01 : f32
    %85 = vector.broadcast %cst_54 : f32 to vector<4x1x128xf32>
    %86 = arith.mulf %85, %35 : vector<4x1x128xf32>
    %cst_55 = arith.constant 5.000000e-01 : f32
    %87 = vector.broadcast %cst_55 : f32 to vector<4x1x128xf32>
    %88 = arith.mulf %87, %79 : vector<4x1x128xf32>
    %89 = arith.addf %86, %88 : vector<4x1x128xf32>
    %90 = vector.shape_cast %84 : vector<4x16x128xf32> to vector<64x128xf32>
    %91 = arith.truncf %90 : vector<64x128xf32> to vector<64x128xbf16>
    %c4 = arith.constant 4 : index
    %c0_56 = arith.constant 0 : index
    %c0_57 = arith.constant 0 : index
    %92 = vector.load %arg3[%c4, %c0_56, %c0_57] : memref<6x128x128xbf16, #tpu.memory_space<vmem>>, vector<1x128x128xbf16>
    %93 = vector.shape_cast %92 : vector<1x128x128xbf16> to vector<128x128xbf16>
    %cst_58 = arith.constant dense<0.000000e+00> : vector<64x128xf32>
    %94 = tpu.matmul %91, %93, %cst_58 {dimension_numbers = #tpu.dot_dimension_numbers<[1], [0], [0], [1], [0, 0, 1, 1], [], []>} : vector<64x128xbf16>, vector<128x128xbf16>, vector<64x128xf32> -> vector<64x128xf32>
    %c4_59 = arith.constant 4 : index
    %c0_60 = arith.constant 0 : index
    %c0_61 = arith.constant 0 : index
    %95 = vector.load %arg4[%c4_59, %c0_60, %c0_61] : memref<6x1x128xf32, #tpu.memory_space<vmem>>, vector<1x1x128xf32>
    %96 = vector.shape_cast %95 : vector<1x1x128xf32> to vector<1x128xf32>
    %97 = vector.broadcast %96 : vector<1x128xf32> to vector<64x128xf32>
    %98 = arith.addf %94, %97 : vector<64x128xf32>
    %cst_62 = arith.constant 0.000000e+00 : f32
    %99 = vector.broadcast %cst_62 : f32 to vector<64x128xf32>
    %100 = arith.maximumf %98, %99 : vector<64x128xf32>
    %101 = arith.truncf %100 : vector<64x128xf32> to vector<64x128xbf16>
    %c5 = arith.constant 5 : index
    %c0_63 = arith.constant 0 : index
    %c0_64 = arith.constant 0 : index
    %102 = vector.load %arg3[%c5, %c0_63, %c0_64] : memref<6x128x128xbf16, #tpu.memory_space<vmem>>, vector<1x128x128xbf16>
    %103 = vector.shape_cast %102 : vector<1x128x128xbf16> to vector<128x128xbf16>
    %cst_65 = arith.constant dense<0.000000e+00> : vector<64x128xf32>
    %104 = tpu.matmul %101, %103, %cst_65 {dimension_numbers = #tpu.dot_dimension_numbers<[1], [0], [0], [1], [0, 0, 1, 1], [], []>} : vector<64x128xbf16>, vector<128x128xbf16>, vector<64x128xf32> -> vector<64x128xf32>
    %c5_66 = arith.constant 5 : index
    %c0_67 = arith.constant 0 : index
    %c0_68 = arith.constant 0 : index
    %105 = vector.load %arg4[%c5_66, %c0_67, %c0_68] : memref<6x1x128xf32, #tpu.memory_space<vmem>>, vector<1x1x128xf32>
    %106 = vector.shape_cast %105 : vector<1x1x128xf32> to vector<1x128xf32>
    %107 = vector.broadcast %106 : vector<1x128xf32> to vector<64x128xf32>
    %108 = arith.addf %104, %107 : vector<64x128xf32>
    %109 = vector.shape_cast %108 : vector<64x128xf32> to vector<4x16x128xf32>
    %110 = vector.shape_cast %89 : vector<4x1x128xf32> to vector<4x128xf32>
    %111 = arith.truncf %110 : vector<4x128xf32> to vector<4x128xbf16>
    %c4_69 = arith.constant 4 : index
    %c0_70 = arith.constant 0 : index
    %c0_71 = arith.constant 0 : index
    %112 = vector.load %arg5[%c4_69, %c0_70, %c0_71] : memref<6x128x128xbf16, #tpu.memory_space<vmem>>, vector<1x128x128xbf16>
    %113 = vector.shape_cast %112 : vector<1x128x128xbf16> to vector<128x128xbf16>
    %cst_72 = arith.constant dense<0.000000e+00> : vector<4x128xf32>
    %114 = tpu.matmul %111, %113, %cst_72 {dimension_numbers = #tpu.dot_dimension_numbers<[1], [0], [0], [1], [0, 0, 1, 1], [], []>} : vector<4x128xbf16>, vector<128x128xbf16>, vector<4x128xf32> -> vector<4x128xf32>
    %c4_73 = arith.constant 4 : index
    %c0_74 = arith.constant 0 : index
    %c0_75 = arith.constant 0 : index
    %115 = vector.load %arg6[%c4_73, %c0_74, %c0_75] : memref<6x1x128xf32, #tpu.memory_space<vmem>>, vector<1x1x128xf32>
    %116 = vector.shape_cast %115 : vector<1x1x128xf32> to vector<1x128xf32>
    %117 = vector.broadcast %116 : vector<1x128xf32> to vector<4x128xf32>
    %118 = arith.addf %114, %117 : vector<4x128xf32>
    %cst_76 = arith.constant 0.000000e+00 : f32
    %119 = vector.broadcast %cst_76 : f32 to vector<4x128xf32>
    %120 = arith.maximumf %118, %119 : vector<4x128xf32>
    %121 = arith.truncf %120 : vector<4x128xf32> to vector<4x128xbf16>
    %c5_77 = arith.constant 5 : index
    %c0_78 = arith.constant 0 : index
    %c0_79 = arith.constant 0 : index
    %122 = vector.load %arg5[%c5_77, %c0_78, %c0_79] : memref<6x128x128xbf16, #tpu.memory_space<vmem>>, vector<1x128x128xbf16>
    %123 = vector.shape_cast %122 : vector<1x128x128xbf16> to vector<128x128xbf16>
    %cst_80 = arith.constant dense<0.000000e+00> : vector<4x128xf32>
    %124 = tpu.matmul %121, %123, %cst_80 {dimension_numbers = #tpu.dot_dimension_numbers<[1], [0], [0], [1], [0, 0, 1, 1], [], []>} : vector<4x128xbf16>, vector<128x128xbf16>, vector<4x128xf32> -> vector<4x128xf32>
    %c5_81 = arith.constant 5 : index
    %c0_82 = arith.constant 0 : index
    %c0_83 = arith.constant 0 : index
    %125 = vector.load %arg6[%c5_81, %c0_82, %c0_83] : memref<6x1x128xf32, #tpu.memory_space<vmem>>, vector<1x1x128xf32>
    %126 = vector.shape_cast %125 : vector<1x1x128xf32> to vector<1x128xf32>
    %127 = vector.broadcast %126 : vector<1x128xf32> to vector<4x128xf32>
    %128 = arith.addf %124, %127 : vector<4x128xf32>
    %129 = vector.shape_cast %128 : vector<4x128xf32> to vector<4x1x128xf32>
    %130 = vector.broadcast %129 : vector<4x1x128xf32> to vector<4x16x128xf32>
    %131 = arith.mulf %109, %130 : vector<4x16x128xf32>
    %cst_84 = arith.constant dense<0xFF800000> : vector<4x128xf32>
    %132 = vector.multi_reduction <maximumf>, %131, %cst_84 [1] : vector<4x16x128xf32> to vector<4x128xf32>
    %133 = vector.shape_cast %132 : vector<4x128xf32> to vector<4x1x128xf32>
    %cst_85 = arith.constant 5.000000e-01 : f32
    %134 = vector.broadcast %cst_85 : f32 to vector<4x16x128xf32>
    %135 = arith.mulf %134, %84 : vector<4x16x128xf32>
    %cst_86 = arith.constant 5.000000e-01 : f32
    %136 = vector.broadcast %cst_86 : f32 to vector<4x16x128xf32>
    %137 = arith.mulf %136, %131 : vector<4x16x128xf32>
    %138 = arith.addf %135, %137 : vector<4x16x128xf32>
    %cst_87 = arith.constant 5.000000e-01 : f32
    %139 = vector.broadcast %cst_87 : f32 to vector<4x1x128xf32>
    %140 = arith.mulf %139, %89 : vector<4x1x128xf32>
    %cst_88 = arith.constant 5.000000e-01 : f32
    %141 = vector.broadcast %cst_88 : f32 to vector<4x1x128xf32>
    %142 = arith.mulf %141, %133 : vector<4x1x128xf32>
    %143 = arith.addf %140, %142 : vector<4x1x128xf32>
    %c0_89 = arith.constant 0 : index
    %c0_90 = arith.constant 0 : index
    %c0_91 = arith.constant 0 : index
    %144 = vector.load %arg7[%c0_89, %c0_90, %c0_91] : memref<4x16x128xf32, #tpu.memory_space<vmem>>, vector<4x16x128xf32>
    tpu.vector_store %arg7[%c0_89, %c0_90, %c0_91], %138 {strides = array<i32>} : memref<4x16x128xf32, #tpu.memory_space<vmem>>, vector<4x16x128xf32>,
    %c0_92 = arith.constant 0 : index
    %c0_93 = arith.constant 0 : index
    %c0_94 = arith.constant 0 : index
    %145 = vector.load %arg8[%c0_92, %c0_93, %c0_94] : memref<4x1x128xf32, #tpu.memory_space<vmem>>, vector<4x1x128xf32>
    tpu.vector_store %arg8[%c0_92, %c0_93, %c0_94], %143 {strides = array<i32>} : memref<4x1x128xf32, #tpu.memory_space<vmem>>, vector<4x1x128xf32>,
    return
  }
  func.func @transform_0(%arg0: i32) -> (i32, i32, i32) {
    %c0_i32 = arith.constant 0 : i32
    %c0_i32_0 = arith.constant 0 : i32
    %c0_i32_1 = arith.constant 0 : i32
    return %arg0, %c0_i32, %c0_i32_0 : i32, i32, i32
  }
  func.func @transform_1(%arg0: i32) -> (i32, i32, i32) {
    %c0_i32 = arith.constant 0 : i32
    %c0_i32_0 = arith.constant 0 : i32
    %c0_i32_1 = arith.constant 0 : i32
    return %arg0, %c0_i32, %c0_i32_0 : i32, i32, i32
  }
  func.func @transform_2(%arg0: i32) -> (i32, i32, i32) {
    %c0_i32 = arith.constant 0 : i32
    %c0_i32_0 = arith.constant 0 : i32
    %c0_i32_1 = arith.constant 0 : i32
    %c0_i32_2 = arith.constant 0 : i32
    return %c0_i32, %c0_i32_0, %c0_i32_1 : i32, i32, i32
  }
  func.func @transform_3(%arg0: i32) -> (i32, i32, i32) {
    %c0_i32 = arith.constant 0 : i32
    %c0_i32_0 = arith.constant 0 : i32
    %c0_i32_1 = arith.constant 0 : i32
    %c0_i32_2 = arith.constant 0 : i32
    return %c0_i32, %c0_i32_0, %c0_i32_1 : i32, i32, i32
  }
  func.func @transform_4(%arg0: i32) -> (i32, i32, i32) {
    %c0_i32 = arith.constant 0 : i32
    %c0_i32_0 = arith.constant 0 : i32
    %c0_i32_1 = arith.constant 0 : i32
    %c0_i32_2 = arith.constant 0 : i32
    return %c0_i32, %c0_i32_0, %c0_i32_1 : i32, i32, i32
  }
  func.func @transform_5(%arg0: i32) -> (i32, i32, i32) {
    %c0_i32 = arith.constant 0 : i32
    %c0_i32_0 = arith.constant 0 : i32
    %c0_i32_1 = arith.constant 0 : i32
    %c0_i32_2 = arith.constant 0 : i32
    return %c0_i32, %c0_i32_0, %c0_i32_1 : i32, i32, i32
  }
  func.func @transform_6(%arg0: i32) -> (i32, i32, i32) {
    %c0_i32 = arith.constant 0 : i32
    %c0_i32_0 = arith.constant 0 : i32
    %c0_i32_1 = arith.constant 0 : i32
    return %arg0, %c0_i32, %c0_i32_0 : i32, i32, i32
  }
  func.func @transform_7(%arg0: i32) -> (i32, i32, i32) {
    %c0_i32 = arith.constant 0 : i32
    %c0_i32_0 = arith.constant 0 : i32
    %c0_i32_1 = arith.constant 0 : i32
    return %arg0, %c0_i32, %c0_i32_0 : i32, i32, i32
  }
}

</mosaic_0001>

<llo_original>
// kernel: tpu_custom_call.1
$region0: #{tpu_custom_call.1}
  #allocation0 [shape = 'u32[]', space=smem, size = 0x4, offset = 0x4, fixed_abs, tag = 'smem constant byte address 0x4 - core index']
  #allocation1 [shape = 'u32[144,128]{1,0:T(1,128)}', space=vmem, size = 0x12000, scoped, tag = 'internal scratch']
  %s0 = inlined_call_operand.hbm [shape: f32[4,16,128], index: 0, kind: input, shape index: {}]
  %s1 = inlined_call_operand.hbm [shape: f32[4,1,128], index: 1, kind: input, shape index: {}]
  %s2 = inlined_call_operand.hbm [shape: bf16[6,128,128], index: 2, kind: input, shape index: {}]
  %s3 = inlined_call_operand.vmem [shape: f32[6,1,128], index: 3, kind: input, shape index: {}]
  %s4 = inlined_call_operand.hbm [shape: bf16[6,128,128], index: 4, kind: input, shape index: {}]
  %s5 = inlined_call_operand.vmem [shape: f32[6,1,128], index: 5, kind: input, shape index: {}]
  %s6 = inlined_call_operand.hbm [shape: f32[4,16,128], index: 6, kind: output, shape index: {0}]
  %s7 = inlined_call_operand.hbm [shape: f32[4,1,128], index: 7, kind: output, shape index: {1}]
  %8 = xla_tuple %s6, %s7
  %s9 = sld [smem:[#allocation0]]
  $region58: #{tpu_custom_call.1} parent=0
    _
  %s11 = ssub.s32 1, %s9
  %s12 = scalar_select 0, %s11, %s9
  $region1: #{tpu_custom_call.1} parent=0
    #allocation2 [shape = 'u8[32768]{0}', space=vmem, size = 0x8000, scoped, tag = 'input window, operand 0, single buffered']
    #allocation3 [shape = 's32[1]{0}', space=sflag, size = 0x4, scoped, tag = 'scoped memory for tpu_custom_call.1']
    #allocation4 [shape = 's32[1]{0}', space=sflag, size = 0x4, scoped, tag = 'scoped memory for tpu_custom_call.1']
    #allocation5 [shape = 'u8[2048]{0}', space=vmem, size = 0x800, scoped, tag = 'input window, operand 1, single buffered']
    #allocation6 [shape = 's32[1]{0}', space=sflag, size = 0x4, scoped, tag = 'scoped memory for tpu_custom_call.1']
    #allocation7 [shape = 'u8[196608]{0}', space=vmem, size = 0x30000, scoped, tag = 'input window, operand 2, single buffered']
    #allocation8 [shape = 'u8[196608]{0}', space=vmem, size = 0x30000, scoped, tag = 'input window, operand 4, single buffered']
    #allocation9 [shape = 's32[1]{0}', space=sflag, size = 0x4, scoped, tag = 'scoped memory for tpu_custom_call.1']
    #allocation10 [shape = 'u8[32768]{0}', space=vmem, size = 0x8000, scoped, tag = 'output window, operand 0, single buffered']
    #allocation11 [shape = 'u8[2048]{0}', space=vmem, size = 0x800, scoped, tag = 'output window, operand 1, single buffered']
    #allocation12 [shape = 's32[1]{0}', space=sflag, size = 0x4, scoped, tag = 'scoped memory for tpu_custom_call.1']
    %13 = vsyncpa [#allocation3], 0
    %14 = vsyncpa [#allocation6], 0
    %15 = vsyncpa [#allocation9], 0
    %16 = vsyncpa [#allocation4], 0
    %17 = vsyncpa [#allocation12], 0
    // Predicated region
    $region2: #{tpu_custom_call.1} parent=1 // pred_check
      _
    $region3: #{tpu_custom_call.1} parent=1 // pred_check_branch
      %19 = sbr.rel (0) target = $region5
    $region4: #{tpu_custom_call.1} parent=1 // pred_region
      %s21 = ssub.s32 1024, 1024
      %22 = vsyncadd [#allocation3], %s21
      %s23 = sshll.u32 [#allocation2], 4
      %s24 = int_to_ptr.vmem [resolvable:$true] %s23
      %29 = dma.hbm_to_vmem [thread:$0]  %s0, 1024, %s24, [#allocation3], 128, 128, 8
    $region5: #{tpu_custom_call.1} parent=1 // pred_fallthru
      _
    // Predicated region
    $region6: #{tpu_custom_call.1} parent=1 // pred_check
      _
    $region7: #{tpu_custom_call.1} parent=1 // pred_check_branch
      %31 = sbr.rel (0) target = $region9
    $region8: #{tpu_custom_call.1} parent=1 // pred_region
      %s33 = ssub.s32 64, 64
      %34 = vsyncadd [#allocation6], %s33
      %s35 = sshll.u32 [#allocation5], 4
      %s36 = int_to_ptr.vmem [resolvable:$true] %s35
      %41 = dma.hbm_to_vmem [thread:$0]  %s1, 64, %s36, [#allocation6], 16, 16, 1
    $region9: #{tpu_custom_call.1} parent=1 // pred_fallthru
      _
    // Predicated region
    $region10: #{tpu_custom_call.1} parent=1 // pred_check
      _
    $region11: #{tpu_custom_call.1} parent=1 // pred_check_branch
      %43 = sbr.rel (0) target = $region13
    $region12: #{tpu_custom_call.1} parent=1 // pred_region
      %s45 = ssub.s32 6144, 6144
      %46 = vsyncadd [#allocation6], %s45
      %s47 = sshll.u32 [#allocation7], 4
      %s48 = int_to_ptr.vmem [resolvable:$true] %s47
      %53 = dma.hbm_to_vmem [thread:$0]  %s2, 6144, %s48, [#allocation6], 64, 64, 4
    $region13: #{tpu_custom_call.1} parent=1 // pred_fallthru
      _
    // Predicated region
    $region14: #{tpu_custom_call.1} parent=1 // pred_check
      _
    $region15: #{tpu_custom_call.1} parent=1 // pred_check_branch
      %55 = sbr.rel (0) target = $region17
    $region16: #{tpu_custom_call.1} parent=1 // pred_region
      _
    $region17: #{tpu_custom_call.1} parent=1 // pred_fallthru
      _
    // Predicated region
    $region18: #{tpu_custom_call.1} parent=1 // pred_check
      _
    $region19: #{tpu_custom_call.1} parent=1 // pred_check_branch
      %57 = sbr.rel (0) target = $region21
    $region20: #{tpu_custom_call.1} parent=1 // pred_region
      %s59 = ssub.s32 6144, 6144
      %60 = vsyncadd [#allocation9], %s59
      %s61 = sshll.u32 [#allocation8], 4
      %s62 = int_to_ptr.vmem [resolvable:$true] %s61
      %67 = dma.hbm_to_vmem [thread:$0]  %s4, 6144, %s62, [#allocation9], 64, 64, 4
    $region21: #{tpu_custom_call.1} parent=1 // pred_fallthru
      _
    // Predicated region
    $region22: #{tpu_custom_call.1} parent=1 // pred_check
      _
    $region23: #{tpu_custom_call.1} parent=1 // pred_check_branch
      %69 = sbr.rel (0) target = $region25
    $region24: #{tpu_custom_call.1} parent=1 // pred_region
      _
    $region25: #{tpu_custom_call.1} parent=1 // pred_fallthru
      _
    // Predicated region
    $region26: #{tpu_custom_call.1} parent=1 // pred_check
      _
    $region27: #{tpu_custom_call.1} parent=1 // pred_check_branch
      %71 = sbr.rel (0) target = $region29
    $region28: #{tpu_custom_call.1} parent=1 // pred_region
      %72 = dma.done [#allocation3], 1024
    $region29: #{tpu_custom_call.1} parent=1 // pred_fallthru
      _
    // Predicated region
    $region30: #{tpu_custom_call.1} parent=1 // pred_check
      _
    $region31: #{tpu_custom_call.1} parent=1 // pred_check_branch
      %74 = sbr.rel (0) target = $region33
    $region32: #{tpu_custom_call.1} parent=1 // pred_region
      %75 = dma.done [#allocation6], 64
    $region33: #{tpu_custom_call.1} parent=1 // pred_fallthru
      _
    // Predicated region
    $region34: #{tpu_custom_call.1} parent=1 // pred_check
      _
    $region35: #{tpu_custom_call.1} parent=1 // pred_check_branch
      %77 = sbr.rel (0) target = $region37
    $region36: #{tpu_custom_call.1} parent=1 // pred_region
      %78 = dma.done [#allocation6], 6144
    $region37: #{tpu_custom_call.1} parent=1 // pred_fallthru
      _
    // Predicated region
    $region38: #{tpu_custom_call.1} parent=1 // pred_check
      _
    $region39: #{tpu_custom_call.1} parent=1 // pred_check_branch
      %80 = sbr.rel (0) target = $region41
    $region40: #{tpu_custom_call.1} parent=1 // pred_region
      %81 = dma.done [#allocation9], 6144
    $region41: #{tpu_custom_call.1} parent=1 // pred_fallthru
      _
    %v83 = vld [vmem:[#allocation2] sm:$0xff]
    %v84 = vld [vmem:[#allocation2 + $0x8] sm:$0xff]
    %v85 = vld [vmem:[#allocation2 + $0x10] sm:$0xff]
    %v86 = vld [vmem:[#allocation2 + $0x18] sm:$0xff]
    %v87 = vld [vmem:[#allocation2 + $0x20] sm:$0xff]
    %v88 = vld [vmem:[#allocation2 + $0x28] sm:$0xff]
    %v89 = vld [vmem:[#allocation2 + $0x30] sm:$0xff]
    %v90 = vld [vmem:[#allocation2 + $0x38] sm:$0xff]
    %v91 = vld [vmem:[#allocation5] sm:$0x1]
    %v92 = vld [vmem:[#allocation5 + $0x1] sm:$0x1]
    %v93 = vld [vmem:[#allocation5 + $0x2] sm:$0x1]
    %v94 = vld [vmem:[#allocation5 + $0x3] sm:$0x1]
    %v95 = vpack.c.bf16 %v84, %v83
    %v96 = vpack.c.bf16 %v86, %v85
    %v97 = vpack.c.bf16 %v88, %v87
    %v98 = vpack.c.bf16 %v90, %v89
    %v99 = vld [vmem:[#allocation7] sm:$0xf]
    %v100 = vld [vmem:[#allocation7 + $0x4] sm:$0xf]
    %v101 = vld [vmem:[#allocation7 + $0x8] sm:$0xf]
    %v102 = vld [vmem:[#allocation7 + $0xc] sm:$0xf]
    %v103 = vld [vmem:[#allocation7 + $0x10] sm:$0xf]
    %v104 = vld [vmem:[#allocation7 + $0x14] sm:$0xf]
    %v105 = vld [vmem:[#allocation7 + $0x18] sm:$0xf]
    %v106 = vld [vmem:[#allocation7 + $0x1c] sm:$0xf]
    %v107 = vld [vmem:[#allocation7 + $0x20] sm:$0xf]
    %v108 = vld [vmem:[#allocation7 + $0x24] sm:$0xf]
    %v109 = vld [vmem:[#allocation7 + $0x28] sm:$0xf]
    %v110 = vld [vmem:[#allocation7 + $0x2c] sm:$0xf]
    %v111 = vld [vmem:[#allocation7 + $0x30] sm:$0xf]
    %v112 = vld [vmem:[#allocation7 + $0x34] sm:$0xf]
    %v113 = vld [vmem:[#allocation7 + $0x38] sm:$0xf]
    %v114 = vld [vmem:[#allocation7 + $0x3c] sm:$0xf]
    %v115 = vld [vmem:[%s3] sm:$0x1]
    %v117 = vlaneseq
    %v118 = vshrl.u32 %v117, 7
    %v119 = vsub.s32 0, %v118
    %v120 = vrot.slane %v115, %v119
    %v138 = vunpack.c.l.b16 %v99
    %v139 = vunpack.c.l.b16 %v100
    %v140 = vunpack.c.l.b16 %v101
    %v141 = vunpack.c.l.b16 %v102
    %v142 = vunpack.c.l.b16 %v103
    %v143 = vunpack.c.l.b16 %v104
    %v144 = vunpack.c.l.b16 %v105
    %v145 = vunpack.c.l.b16 %v106
    %v146 = vunpack.c.l.b16 %v107
    %v147 = vunpack.c.l.b16 %v108
    %v148 = vunpack.c.l.b16 %v109
    %v149 = vunpack.c.l.b16 %v110
    %v150 = vunpack.c.l.b16 %v111
    %v151 = vunpack.c.l.b16 %v112
    %v152 = vunpack.c.l.b16 %v113
    %v153 = vunpack.c.l.b16 %v114
    %v154 = vpack.c.b16 %v139, %v138
    %v155 = vpack.c.b16 %v141, %v140
    %v156 = vpack.c.b16 %v143, %v142
    %v157 = vpack.c.b16 %v145, %v144
    %v158 = vpack.c.b16 %v147, %v146
    %v159 = vpack.c.b16 %v149, %v148
    %v160 = vpack.c.b16 %v151, %v150
    %v161 = vpack.c.b16 %v153, %v152
    %170 = vmatprep.subr.bf16.mxu0 0
    %171 = vmatpush1.bf16.msra.mxu0 %v154
    %172 = vmatprep.subr.bf16.mxu0 0
    %173 = vmatpush1.bf16.msra.mxu0 %v155
    %174 = vmatprep.subr.bf16.mxu0 0
    %175 = vmatpush1.bf16.msra.mxu0 %v156
    %176 = vmatprep.subr.bf16.mxu0 0
    %177 = vmatpush1.bf16.msra.mxu0 %v157
    %178 = vmatprep.subr.bf16.mxu0 0
    %179 = vmatpush1.bf16.msra.mxu0 %v158
    %180 = vmatprep.subr.bf16.mxu0 0
    %181 = vmatpush1.bf16.msra.mxu0 %v159
    %182 = vmatprep.subr.bf16.mxu0 0
    %183 = vmatpush1.bf16.msra.mxu0 %v160
    %184 = vmatprep.subr.bf16.mxu0 0
    %185 = vmatpush1.bf16.msra.mxu0 %v161
    %186 = vmatprep.subr.bf16.mxu0 0
    %187 = vmatpush1.bf16.msra.mxu0 0
    %188 = vmatprep.subr.bf16.mxu0 0
    %189 = vmatpush1.bf16.msra.mxu0 0
    %190 = vmatprep.subr.bf16.mxu0 0
    %191 = vmatpush1.bf16.msra.mxu0 0
    %192 = vmatprep.subr.bf16.mxu0 0
    %193 = vmatpush1.bf16.msra.mxu0 0
    %194 = vmatprep.subr.bf16.mxu0 0
    %195 = vmatpush1.bf16.msra.mxu0 0
    %196 = vmatprep.subr.bf16.mxu0 0
    %197 = vmatpush1.bf16.msra.mxu0 0
    %198 = vmatprep.subr.bf16.mxu0 0
    %199 = vmatpush1.bf16.msra.mxu0 0
    %200 = vmatprep.subr.bf16.mxu0 0
    %201 = vmatpush1.bf16.msra.mxu0 0
    %202 = vmatprep.mubr.bf16.mxu0 0
    %203 = vmatmul.mubr.bf16.gmra.mrb[0].mxu0 %v95
    %v204 = vpop.f32.mrb[0].mxu0
    %v205 = vadd.f32 %v120, %v204
    %v206 = vpop.f32.mrb[0].mxu0
    %v207 = vpop.f32.mrb[0].mxu0
    %v208 = vadd.f32 %v120, %v207
    %v209 = vpop.f32.mrb[0].mxu0
    %210 = vmatprep.mubr.bf16.mxu0 0
    %211 = vmatmul.mubr.bf16.gmra.mrb[0].mxu0 %v96
    %v212 = vpop.f32.mrb[0].mxu0
    %v213 = vadd.f32 %v120, %v212
    %v214 = vpop.f32.mrb[0].mxu0
    %v215 = vpop.f32.mrb[0].mxu0
    %v216 = vadd.f32 %v120, %v215
    %v217 = vpop.f32.mrb[0].mxu0
    %218 = vmatprep.mubr.bf16.mxu0 0
    %219 = vmatmul.mubr.bf16.gmra.mrb[0].mxu0 %v97
    %v220 = vpop.f32.mrb[0].mxu0
    %v221 = vadd.f32 %v120, %v220
    %v222 = vpop.f32.mrb[0].mxu0
    %v223 = vpop.f32.mrb[0].mxu0
    %v224 = vadd.f32 %v120, %v223
    %v225 = vpop.f32.mrb[0].mxu0
    %226 = vmatprep.mubr.bf16.mxu0 0
    %227 = vmatmul.mubr.bf16.gmra.mrb[0].mxu0 %v98
    %v228 = vpop.f32.mrb[0].mxu0
    %v229 = vadd.f32 %v120, %v228
    %v230 = vpop.f32.mrb[0].mxu0
    %v231 = vpop.f32.mrb[0].mxu0
    %v232 = vadd.f32 %v120, %v231
    %v233 = vpop.f32.mrb[0].mxu0
    %234 = vdwg.mxu0
    %v235 = vmax.f32 %v205, 0.0
    %v236 = vmax.f32 %v208, 0.0
    %v237 = vmax.f32 %v213, 0.0
    %v238 = vmax.f32 %v216, 0.0
    %v239 = vmax.f32 %v221, 0.0
    %v240 = vmax.f32 %v224, 0.0
    %v241 = vmax.f32 %v229, 0.0
    %v242 = vmax.f32 %v232, 0.0
    %v243 = vpack.c.bf16 %v236, %v235
    %v244 = vpack.c.bf16 %v238, %v237
    %v245 = vpack.c.bf16 %v240, %v239
    %v246 = vpack.c.bf16 %v242, %v241
    %s247 = scalar_lea.vmem [#allocation7], 64
    %v248 = vld [vmem:[%s247] sm:$0xf]
    %v249 = vld [vmem:[%s247 + $0x4] sm:$0xf]
    %v250 = vld [vmem:[%s247 + $0x8] sm:$0xf]
    %v251 = vld [vmem:[%s247 + $0xc] sm:$0xf]
    %v252 = vld [vmem:[%s247 + $0x10] sm:$0xf]
    %v253 = vld [vmem:[%s247 + $0x14] sm:$0xf]
    %v254 = vld [vmem:[%s247 + $0x18] sm:$0xf]
    %v255 = vld [vmem:[%s247 + $0x1c] sm:$0xf]
    %v256 = vld [vmem:[%s247 + $0x20] sm:$0xf]
    %v257 = vld [vmem:[%s247 + $0x24] sm:$0xf]
    %v258 = vld [vmem:[%s247 + $0x28] sm:$0xf]
    %v259 = vld [vmem:[%s247 + $0x2c] sm:$0xf]
    %v260 = vld [vmem:[%s247 + $0x30] sm:$0xf]
    %v261 = vld [vmem:[%s247 + $0x34] sm:$0xf]
    %v262 = vld [vmem:[%s247 + $0x38] sm:$0xf]
    %v263 = vld [vmem:[%s247 + $0x3c] sm:$0xf]
    %s264 = scalar_lea.vmem %s3, 1
    %v265 = vld [vmem:[%s264] sm:$0x1]
    %v267 = vlaneseq
    %v268 = vshrl.u32 %v267, 7
    %v269 = vsub.s32 0, %v268
    %v270 = vrot.slane %v265, %v269
    %v288 = vunpack.c.l.b16 %v248
    %v289 = vunpack.c.l.b16 %v249
    %v290 = vunpack.c.l.b16 %v250
    %v291 = vunpack.c.l.b16 %v251
    %v292 = vunpack.c.l.b16 %v252
    %v293 = vunpack.c.l.b16 %v253
    %v294 = vunpack.c.l.b16 %v254
    %v295 = vunpack.c.l.b16 %v255
    %v296 = vunpack.c.l.b16 %v256
    %v297 = vunpack.c.l.b16 %v257
    %v298 = vunpack.c.l.b16 %v258
    %v299 = vunpack.c.l.b16 %v259
    %v300 = vunpack.c.l.b16 %v260
    %v301 = vunpack.c.l.b16 %v261
    %v302 = vunpack.c.l.b16 %v262
    %v303 = vunpack.c.l.b16 %v263
    %v304 = vpack.c.b16 %v289, %v288
    %v305 = vpack.c.b16 %v291, %v290
    %v306 = vpack.c.b16 %v293, %v292
    %v307 = vpack.c.b16 %v295, %v294
    %v308 = vpack.c.b16 %v297, %v296
    %v309 = vpack.c.b16 %v299, %v298
    %v310 = vpack.c.b16 %v301, %v300
    %v311 = vpack.c.b16 %v303, %v302
    %320 = vmatprep.subr.bf16.mxu0 0
    %321 = vmatpush1.bf16.msra.mxu0 %v304
    %322 = vmatprep.subr.bf16.mxu0 0
    %323 = vmatpush1.bf16.msra.mxu0 %v305
    %324 = vmatprep.subr.bf16.mxu0 0
    %325 = vmatpush1.bf16.msra.mxu0 %v306
    %326 = vmatprep.subr.bf16.mxu0 0
    %327 = vmatpush1.bf16.msra.mxu0 %v307
    %328 = vmatprep.subr.bf16.mxu0 0
    %329 = vmatpush1.bf16.msra.mxu0 %v308
    %330 = vmatprep.subr.bf16.mxu0 0
    %331 = vmatpush1.bf16.msra.mxu0 %v309
    %332 = vmatprep.subr.bf16.mxu0 0
    %333 = vmatpush1.bf16.msra.mxu0 %v310
    %334 = vmatprep.subr.bf16.mxu0 0
    %335 = vmatpush1.bf16.msra.mxu0 %v311
    %336 = vmatprep.subr.bf16.mxu0 0
    %337 = vmatpush1.bf16.msra.mxu0 0
    %338 = vmatprep.subr.bf16.mxu0 0
    %339 = vmatpush1.bf16.msra.mxu0 0
    %340 = vmatprep.subr.bf16.mxu0 0
    %341 = vmatpush1.bf16.msra.mxu0 0
    %342 = vmatprep.subr.bf16.mxu0 0
    %343 = vmatpush1.bf16.msra.mxu0 0
    %344 = vmatprep.subr.bf16.mxu0 0
    %345 = vmatpush1.bf16.msra.mxu0 0
    %346 = vmatprep.subr.bf16.mxu0 0
    %347 = vmatpush1.bf16.msra.mxu0 0
    %348 = vmatprep.subr.bf16.mxu0 0
    %349 = vmatpush1.bf16.msra.mxu0 0
    %350 = vmatprep.subr.bf16.mxu0 0
    %351 = vmatpush1.bf16.msra.mxu0 0
    %352 = vmatprep.mubr.bf16.mxu0 0
    %353 = vmatmul.mubr.bf16.gmra.mrb[0].mxu0 %v243
    %v354 = vpop.f32.mrb[0].mxu0
    %v355 = vadd.f32 %v270, %v354
    %v356 = vpop.f32.mrb[0].mxu0
    %v357 = vpop.f32.mrb[0].mxu0
    %v358 = vadd.f32 %v270, %v357
    %v359 = vpop.f32.mrb[0].mxu0
    %360 = vmatprep.mubr.bf16.mxu0 0
    %361 = vmatmul.mubr.bf16.gmra.mrb[0].mxu0 %v244
    %v362 = vpop.f32.mrb[0].mxu0
    %v363 = vadd.f32 %v270, %v362
    %v364 = vpop.f32.mrb[0].mxu0
    %v365 = vpop.f32.mrb[0].mxu0
    %v366 = vadd.f32 %v270, %v365
    %v367 = vpop.f32.mrb[0].mxu0
    %368 = vmatprep.mubr.bf16.mxu0 0
    %369 = vmatmul.mubr.bf16.gmra.mrb[0].mxu0 %v245
    %v370 = vpop.f32.mrb[0].mxu0
    %v371 = vadd.f32 %v270, %v370
    %v372 = vpop.f32.mrb[0].mxu0
    %v373 = vpop.f32.mrb[0].mxu0
    %v374 = vadd.f32 %v270, %v373
    %v375 = vpop.f32.mrb[0].mxu0
    %376 = vmatprep.mubr.bf16.mxu0 0
    %377 = vmatmul.mubr.bf16.gmra.mrb[0].mxu0 %v246
    %v378 = vpop.f32.mrb[0].mxu0
    %v379 = vadd.f32 %v270, %v378
    %v380 = vpop.f32.mrb[0].mxu0
    %v381 = vpop.f32.mrb[0].mxu0
    %v382 = vadd.f32 %v270, %v381
    %v383 = vpop.f32.mrb[0].mxu0
    %384 = vdwg.mxu0
    %v389 = vlaneseq
    %v390 = vshrl.u32 %v389, 7
    %v391 = vsub.s32 0, %v390
    %v392 = vrot.slane %v91, %v391
    %v393 = vlaneseq
    %v394 = vshrl.u32 %v393, 7
    %v395 = vsub.s32 0, %v394
    %v396 = vrot.slane %v92, %v395
    %v397 = vlaneseq
    %v398 = vshrl.u32 %v397, 7
    %v399 = vsub.s32 0, %v398
    %v400 = vrot.slane %v93, %v399
    %v401 = vlaneseq
    %v402 = vshrl.u32 %v401, 7
    %v403 = vsub.s32 0, %v402
    %v404 = vrot.slane %v94, %v403
    %v409 = vmul.f32 %v355, %v392
    %v410 = vmul.f32 %v358, %v392
    %v411 = vmul.f32 %v363, %v396
    %v412 = vmul.f32 %v366, %v396
    %v413 = vmul.f32 %v371, %v400
    %v414 = vmul.f32 %v374, %v400
    %v415 = vmul.f32 %v379, %v404
    %v416 = vmul.f32 %v382, %v404
    %v417 = vmax.f32 %v409, %v410
    %v418 = vrot.slane %v417, 4
    %v419 = vmax.f32 %v417, %v418
    %v420 = vrot.slane %v419, 2
    %v421 = vmax.f32 %v419, %v420
    %v422 = vrot.slane %v421, 1
    %v423 = vmax.f32 %v421, %v422
    %v424 = vmax.f32 %v411, %v412
    %v425 = vrot.slane %v424, 4
    %v426 = vmax.f32 %v424, %v425
    %v427 = vrot.slane %v426, 2
    %v428 = vmax.f32 %v426, %v427
    %v429 = vrot.slane %v428, 1
    %v430 = vmax.f32 %v428, %v429
    %v431 = vmax.f32 %v413, %v414
    %v432 = vrot.slane %v431, 4
    %v433 = vmax.f32 %v431, %v432
    %v434 = vrot.slane %v433, 2
    %v435 = vmax.f32 %v433, %v434
    %v436 = vrot.slane %v435, 1
    %v437 = vmax.f32 %v435, %v436
    %v438 = vmax.f32 %v415, %v416
    %v439 = vrot.slane %v438, 4
    %v440 = vmax.f32 %v438, %v439
    %v441 = vrot.slane %v440, 2
    %v442 = vmax.f32 %v440, %v441
    %v443 = vrot.slane %v442, 1
    %v444 = vmax.f32 %v442, %v443
    %v445 = vmul.f32 %v83, 0.5
    %v446 = vmul.f32 %v84, 0.5
    %v447 = vmul.f32 %v85, 0.5
    %v448 = vmul.f32 %v86, 0.5
    %v449 = vmul.f32 %v87, 0.5
    %v450 = vmul.f32 %v88, 0.5
    %v451 = vmul.f32 %v89, 0.5
    %v452 = vmul.f32 %v90, 0.5
    %v453 = vmul.f32 %v409, 0.5
    %v454 = vmul.f32 %v410, 0.5
    %v455 = vmul.f32 %v411, 0.5
    %v456 = vmul.f32 %v412, 0.5
    %v457 = vmul.f32 %v413, 0.5
    %v458 = vmul.f32 %v414, 0.5
    %v459 = vmul.f32 %v415, 0.5
    %v460 = vmul.f32 %v416, 0.5
    %v461 = vadd.f32 %v445, %v453
    %v462 = vadd.f32 %v446, %v454
    %v463 = vadd.f32 %v447, %v455
    %v464 = vadd.f32 %v448, %v456
    %v465 = vadd.f32 %v449, %v457
    %v466 = vadd.f32 %v450, %v458
    %v467 = vadd.f32 %v451, %v459
    %v468 = vadd.f32 %v452, %v460
    %v469 = vmul.f32 %v91, 0.5
    %v470 = vmul.f32 %v92, 0.5
    %v471 = vmul.f32 %v93, 0.5
    %v472 = vmul.f32 %v94, 0.5
    %v473 = vmul.f32 %v423, 0.5
    %v474 = vmul.f32 %v430, 0.5
    %v475 = vmul.f32 %v437, 0.5
    %v476 = vmul.f32 %v444, 0.5
    %v477 = vadd.f32 %v469, %v473
    %v478 = vadd.f32 %v470, %v474
    %v479 = vadd.f32 %v471, %v475
    %v480 = vadd.f32 %v472, %v476
    %v481 = vpack.c.bf16 %v462, %v461
    %v482 = vpack.c.bf16 %v464, %v463
    %v483 = vpack.c.bf16 %v466, %v465
    %v484 = vpack.c.bf16 %v468, %v467
    %s485 = scalar_lea.vmem [#allocation7], 128
    %v486 = vld [vmem:[%s485] sm:$0xf]
    %v487 = vld [vmem:[%s485 + $0x4] sm:$0xf]
    %v488 = vld [vmem:[%s485 + $0x8] sm:$0xf]
    %v489 = vld [vmem:[%s485 + $0xc] sm:$0xf]
    %v490 = vld [vmem:[%s485 + $0x10] sm:$0xf]
    %v491 = vld [vmem:[%s485 + $0x14] sm:$0xf]
    %v492 = vld [vmem:[%s485 + $0x18] sm:$0xf]
    %v493 = vld [vmem:[%s485 + $0x1c] sm:$0xf]
    %v494 = vld [vmem:[%s485 + $0x20] sm:$0xf]
    %v495 = vld [vmem:[%s485 + $0x24] sm:$0xf]
    %v496 = vld [vmem:[%s485 + $0x28] sm:$0xf]
    %v497 = vld [vmem:[%s485 + $0x2c] sm:$0xf]
    %v498 = vld [vmem:[%s485 + $0x30] sm:$0xf]
    %v499 = vld [vmem:[%s485 + $0x34] sm:$0xf]
    %v500 = vld [vmem:[%s485 + $0x38] sm:$0xf]
    %v501 = vld [vmem:[%s485 + $0x3c] sm:$0xf]
    %s502 = scalar_lea.vmem %s3, 2
    %v503 = vld [vmem:[%s502] sm:$0x1]
    %v505 = vlaneseq
    %v506 = vshrl.u32 %v505, 7
    %v507 = vsub.s32 0, %v506
    %v508 = vrot.slane %v503, %v507
    %v526 = vunpack.c.l.b16 %v486
    %v527 = vunpack.c.l.b16 %v487
    %v528 = vunpack.c.l.b16 %v488
    %v529 = vunpack.c.l.b16 %v489
    %v530 = vunpack.c.l.b16 %v490
    %v531 = vunpack.c.l.b16 %v491
    %v532 = vunpack.c.l.b16 %v492
    %v533 = vunpack.c.l.b16 %v493
    %v534 = vunpack.c.l.b16 %v494
    %v535 = vunpack.c.l.b16 %v495
    %v536 = vunpack.c.l.b16 %v496
    %v537 = vunpack.c.l.b16 %v497
    %v538 = vunpack.c.l.b16 %v498
    %v539 = vunpack.c.l.b16 %v499
    %v540 = vunpack.c.l.b16 %v500
    %v541 = vunpack.c.l.b16 %v501
    %v542 = vpack.c.b16 %v527, %v526
    %v543 = vpack.c.b16 %v529, %v528
    %v544 = vpack.c.b16 %v531, %v530
    %v545 = vpack.c.b16 %v533, %v532
    %v546 = vpack.c.b16 %v535, %v534
    %v547 = vpack.c.b16 %v537, %v536
    %v548 = vpack.c.b16 %v539, %v538
    %v549 = vpack.c.b16 %v541, %v540
    %558 = vmatprep.subr.bf16.mxu0 0
    %559 = vmatpush1.bf16.msra.mxu0 %v542
    %560 = vmatprep.subr.bf16.mxu0 0
    %561 = vmatpush1.bf16.msra.mxu0 %v543
    %562 = vmatprep.subr.bf16.mxu0 0
    %563 = vmatpush1.bf16.msra.mxu0 %v544
    %564 = vmatprep.subr.bf16.mxu0 0
    %565 = vmatpush1.bf16.msra.mxu0 %v545
    %566 = vmatprep.subr.bf16.mxu0 0
    %567 = vmatpush1.bf16.msra.mxu0 %v546
    %568 = vmatprep.subr.bf16.mxu0 0
    %569 = vmatpush1.bf16.msra.mxu0 %v547
    %570 = vmatprep.subr.bf16.mxu0 0
    %571 = vmatpush1.bf16.msra.mxu0 %v548
    %572 = vmatprep.subr.bf16.mxu0 0
    %573 = vmatpush1.bf16.msra.mxu0 %v549
    %574 = vmatprep.subr.bf16.mxu0 0
    %575 = vmatpush1.bf16.msra.mxu0 0
    %576 = vmatprep.subr.bf16.mxu0 0
    %577 = vmatpush1.bf16.msra.mxu0 0
    %578 = vmatprep.subr.bf16.mxu0 0
    %579 = vmatpush1.bf16.msra.mxu0 0
    %580 = vmatprep.subr.bf16.mxu0 0
    %581 = vmatpush1.bf16.msra.mxu0 0
    %582 = vmatprep.subr.bf16.mxu0 0
    %583 = vmatpush1.bf16.msra.mxu0 0
    %584 = vmatprep.subr.bf16.mxu0 0
    %585 = vmatpush1.bf16.msra.mxu0 0
    %586 = vmatprep.subr.bf16.mxu0 0
    %587 = vmatpush1.bf16.msra.mxu0 0
    %588 = vmatprep.subr.bf16.mxu0 0
    %589 = vmatpush1.bf16.msra.mxu0 0
    %590 = vmatprep.mubr.bf16.mxu0 0
    %591 = vmatmul.mubr.bf16.gmra.mrb[0].mxu0 %v481
    %v592 = vpop.f32.mrb[0].mxu0
    %v593 = vadd.f32 %v508, %v592
    %v594 = vpop.f32.mrb[0].mxu0
    %v595 = vpop.f32.mrb[0].mxu0
    %v596 = vadd.f32 %v508, %v595
    %v597 = vpop.f32.mrb[0].mxu0
    %598 = vmatprep.mubr.bf16.mxu0 0
    %599 = vmatmul.mubr.bf16.gmra.mrb[0].mxu0 %v482
    %v600 = vpop.f32.mrb[0].mxu0
    %v601 = vadd.f32 %v508, %v600
    %v602 = vpop.f32.mrb[0].mxu0
    %v603 = vpop.f32.mrb[0].mxu0
    %v604 = vadd.f32 %v508, %v603
    %v605 = vpop.f32.mrb[0].mxu0
    %606 = vmatprep.mubr.bf16.mxu0 0
    %607 = vmatmul.mubr.bf16.gmra.mrb[0].mxu0 %v483
    %v608 = vpop.f32.mrb[0].mxu0
    %v609 = vadd.f32 %v508, %v608
    %v610 = vpop.f32.mrb[0].mxu0
    %v611 = vpop.f32.mrb[0].mxu0
    %v612 = vadd.f32 %v508, %v611
    %v613 = vpop.f32.mrb[0].mxu0
    %614 = vmatprep.mubr.bf16.mxu0 0
    %615 = vmatmul.mubr.bf16.gmra.mrb[0].mxu0 %v484
    %v616 = vpop.f32.mrb[0].mxu0
    %v617 = vadd.f32 %v508, %v616
    %v618 = vpop.f32.mrb[0].mxu0
    %v619 = vpop.f32.mrb[0].mxu0
    %v620 = vadd.f32 %v508, %v619
    %v621 = vpop.f32.mrb[0].mxu0
    %622 = vdwg.mxu0
    %v623 = vmax.f32 %v593, 0.0
    %v624 = vmax.f32 %v596, 0.0
    %v625 = vmax.f32 %v601, 0.0
    %v626 = vmax.f32 %v604, 0.0
    %v627 = vmax.f32 %v609, 0.0
    %v628 = vmax.f32 %v612, 0.0
    %v629 = vmax.f32 %v617, 0.0
    %v630 = vmax.f32 %v620, 0.0
    %v631 = vpack.c.bf16 %v624, %v623
    %v632 = vpack.c.bf16 %v626, %v625
    %v633 = vpack.c.bf16 %v628, %v627
    %v634 = vpack.c.bf16 %v630, %v629
    %s635 = scalar_lea.vmem [#allocation7], 192
    %v636 = vld [vmem:[%s635] sm:$0xf]
    %v637 = vld [vmem:[%s635 + $0x4] sm:$0xf]
    %v638 = vld [vmem:[%s635 + $0x8] sm:$0xf]
    %v639 = vld [vmem:[%s635 + $0xc] sm:$0xf]
    %v640 = vld [vmem:[%s635 + $0x10] sm:$0xf]
    %v641 = vld [vmem:[%s635 + $0x14] sm:$0xf]
    %v642 = vld [vmem:[%s635 + $0x18] sm:$0xf]
    %v643 = vld [vmem:[%s635 + $0x1c] sm:$0xf]
    %v644 = vld [vmem:[%s635 + $0x20] sm:$0xf]
    %v645 = vld [vmem:[%s635 + $0x24] sm:$0xf]
    %v646 = vld [vmem:[%s635 + $0x28] sm:$0xf]
    %v647 = vld [vmem:[%s635 + $0x2c] sm:$0xf]
    %v648 = vld [vmem:[%s635 + $0x30] sm:$0xf]
    %v649 = vld [vmem:[%s635 + $0x34] sm:$0xf]
    %v650 = vld [vmem:[%s635 + $0x38] sm:$0xf]
    %v651 = vld [vmem:[%s635 + $0x3c] sm:$0xf]
    %s652 = scalar_lea.vmem %s3, 3
    %v653 = vld [vmem:[%s652] sm:$0x1]
    %v655 = vlaneseq
    %v656 = vshrl.u32 %v655, 7
    %v657 = vsub.s32 0, %v656
    %v658 = vrot.slane %v653, %v657
    %v676 = vunpack.c.l.b16 %v636
    %v677 = vunpack.c.l.b16 %v637
    %v678 = vunpack.c.l.b16 %v638
    %v679 = vunpack.c.l.b16 %v639
    %v680 = vunpack.c.l.b16 %v640
    %v681 = vunpack.c.l.b16 %v641
    %v682 = vunpack.c.l.b16 %v642
    %v683 = vunpack.c.l.b16 %v643
    %v684 = vunpack.c.l.b16 %v644
    %v685 = vunpack.c.l.b16 %v645
    %v686 = vunpack.c.l.b16 %v646
    %v687 = vunpack.c.l.b16 %v647
    %v688 = vunpack.c.l.b16 %v648
    %v689 = vunpack.c.l.b16 %v649
    %v690 = vunpack.c.l.b16 %v650
    %v691 = vunpack.c.l.b16 %v651
    %v692 = vpack.c.b16 %v677, %v676
    %v693 = vpack.c.b16 %v679, %v678
    %v694 = vpack.c.b16 %v681, %v680
    %v695 = vpack.c.b16 %v683, %v682
    %v696 = vpack.c.b16 %v685, %v684
    %v697 = vpack.c.b16 %v687, %v686
    %v698 = vpack.c.b16 %v689, %v688
    %v699 = vpack.c.b16 %v691, %v690
    %708 = vmatprep.subr.bf16.mxu0 0
    %709 = vmatpush1.bf16.msra.mxu0 %v692
    %710 = vmatprep.subr.bf16.mxu0 0
    %711 = vmatpush1.bf16.msra.mxu0 %v693
    %712 = vmatprep.subr.bf16.mxu0 0
    %713 = vmatpush1.bf16.msra.mxu0 %v694
    %714 = vmatprep.subr.bf16.mxu0 0
    %715 = vmatpush1.bf16.msra.mxu0 %v695
    %716 = vmatprep.subr.bf16.mxu0 0
    %717 = vmatpush1.bf16.msra.mxu0 %v696
    %718 = vmatprep.subr.bf16.mxu0 0
    %719 = vmatpush1.bf16.msra.mxu0 %v697
    %720 = vmatprep.subr.bf16.mxu0 0
    %721 = vmatpush1.bf16.msra.mxu0 %v698
    %722 = vmatprep.subr.bf16.mxu0 0
    %723 = vmatpush1.bf16.msra.mxu0 %v699
    %724 = vmatprep.subr.bf16.mxu0 0
    %725 = vmatpush1.bf16.msra.mxu0 0
    %726 = vmatprep.subr.bf16.mxu0 0
    %727 = vmatpush1.bf16.msra.mxu0 0
    %728 = vmatprep.subr.bf16.mxu0 0
    %729 = vmatpush1.bf16.msra.mxu0 0
    %730 = vmatprep.subr.bf16.mxu0 0
    %731 = vmatpush1.bf16.msra.mxu0 0
    %732 = vmatprep.subr.bf16.mxu0 0
    %733 = vmatpush1.bf16.msra.mxu0 0
    %734 = vmatprep.subr.bf16.mxu0 0
    %735 = vmatpush1.bf16.msra.mxu0 0
    %736 = vmatprep.subr.bf16.mxu0 0
    %737 = vmatpush1.bf16.msra.mxu0 0
    %738 = vmatprep.subr.bf16.mxu0 0
    %739 = vmatpush1.bf16.msra.mxu0 0
    %740 = vmatprep.mubr.bf16.mxu0 0
    %741 = vmatmul.mubr.bf16.gmra.mrb[0].mxu0 %v631
    %v742 = vpop.f32.mrb[0].mxu0
    %v743 = vadd.f32 %v658, %v742
    %v744 = vpop.f32.mrb[0].mxu0
    %v745 = vpop.f32.mrb[0].mxu0
    %v746 = vadd.f32 %v658, %v745
    %v747 = vpop.f32.mrb[0].mxu0
    %748 = vmatprep.mubr.bf16.mxu0 0
    %749 = vmatmul.mubr.bf16.gmra.mrb[0].mxu0 %v632
    %v750 = vpop.f32.mrb[0].mxu0
    %v751 = vadd.f32 %v658, %v750
    %v752 = vpop.f32.mrb[0].mxu0
    %v753 = vpop.f32.mrb[0].mxu0
    %v754 = vadd.f32 %v658, %v753
    %v755 = vpop.f32.mrb[0].mxu0
    %756 = vmatprep.mubr.bf16.mxu0 0
    %757 = vmatmul.mubr.bf16.gmra.mrb[0].mxu0 %v633
    %v758 = vpop.f32.mrb[0].mxu0
    %v759 = vadd.f32 %v658, %v758
    %v760 = vpop.f32.mrb[0].mxu0
    %v761 = vpop.f32.mrb[0].mxu0
    %v762 = vadd.f32 %v658, %v761
    %v763 = vpop.f32.mrb[0].mxu0
    %764 = vmatprep.mubr.bf16.mxu0 0
    %765 = vmatmul.mubr.bf16.gmra.mrb[0].mxu0 %v634
    %v766 = vpop.f32.mrb[0].mxu0
    %v767 = vadd.f32 %v658, %v766
    %v768 = vpop.f32.mrb[0].mxu0
    %v769 = vpop.f32.mrb[0].mxu0
    %v770 = vadd.f32 %v658, %v769
    %v771 = vpop.f32.mrb[0].mxu0
    %772 = vdwg.mxu0
    %v773 = vpack.c.bf16 %v477, %v477
    %v774 = vpack.c.bf16 %v478, %v478
    %v775 = vpack.c.bf16 %v479, %v479
    %v776 = vpack.c.bf16 %v480, %v480
    %s777 = scalar_lea.vmem [#allocation8], 128
    %v778 = vld [vmem:[%s777] sm:$0xf]
    %v779 = vld [vmem:[%s777 + $0x4] sm:$0xf]
    %v780 = vld [vmem:[%s777 + $0x8] sm:$0xf]
    %v781 = vld [vmem:[%s777 + $0xc] sm:$0xf]
    %v782 = vld [vmem:[%s777 + $0x10] sm:$0xf]
    %v783 = vld [vmem:[%s777 + $0x14] sm:$0xf]
    %v784 = vld [vmem:[%s777 + $0x18] sm:$0xf]
    %v785 = vld [vmem:[%s777 + $0x1c] sm:$0xf]
    %v786 = vld [vmem:[%s777 + $0x20] sm:$0xf]
    %v787 = vld [vmem:[%s777 + $0x24] sm:$0xf]
    %v788 = vld [vmem:[%s777 + $0x28] sm:$0xf]
    %v789 = vld [vmem:[%s777 + $0x2c] sm:$0xf]
    %v790 = vld [vmem:[%s777 + $0x30] sm:$0xf]
    %v791 = vld [vmem:[%s777 + $0x34] sm:$0xf]
    %v792 = vld [vmem:[%s777 + $0x38] sm:$0xf]
    %v793 = vld [vmem:[%s777 + $0x3c] sm:$0xf]
    %s794 = scalar_lea.vmem %s5, 2
    %v795 = vld [vmem:[%s794] sm:$0x1]
    %v797 = vlaneseq
    %v798 = vshrl.u32 %v797, 7
    %v799 = vsub.s32 0, %v798
    %v800 = vrot.slane %v795, %v799
    %v806 = vunpack.c.l.b16 %v773
    %v807 = vunpack.c.l.b16 %v774
    %v808 = vunpack.c.l.b16 %v775
    %v809 = vunpack.c.l.b16 %v776
    %v810 = vrot.slane %v807, 7
    %vm811 = vcmask 1041409
    %v812 = vsel %vm811, %v810, %v806
    %v813 = vrot.slane %v808, 6
    %vm814 = vcmask 1042434
    %v815 = vsel %vm814, %v813, %v812
    %v816 = vrot.slane %v809, 5
    %vm817 = vcmask 1043459
    %v818 = vsel %vm817, %v816, %v815
    %v819 = vpack.c.b16 %v818, %v818
    %v837 = vunpack.c.l.b16 %v778
    %v838 = vunpack.c.l.b16 %v779
    %v839 = vunpack.c.l.b16 %v780
    %v840 = vunpack.c.l.b16 %v781
    %v841 = vunpack.c.l.b16 %v782
    %v842 = vunpack.c.l.b16 %v783
    %v843 = vunpack.c.l.b16 %v784
    %v844 = vunpack.c.l.b16 %v785
    %v845 = vunpack.c.l.b16 %v786
    %v846 = vunpack.c.l.b16 %v787
    %v847 = vunpack.c.l.b16 %v788
    %v848 = vunpack.c.l.b16 %v789
    %v849 = vunpack.c.l.b16 %v790
    %v850 = vunpack.c.l.b16 %v791
    %v851 = vunpack.c.l.b16 %v792
    %v852 = vunpack.c.l.b16 %v793
    %v853 = vpack.c.b16 %v838, %v837
    %v854 = vpack.c.b16 %v840, %v839
    %v855 = vpack.c.b16 %v842, %v841
    %v856 = vpack.c.b16 %v844, %v843
    %v857 = vpack.c.b16 %v846, %v845
    %v858 = vpack.c.b16 %v848, %v847
    %v859 = vpack.c.b16 %v850, %v849
    %v860 = vpack.c.b16 %v852, %v851
    %869 = vmatprep.subr.bf16.mxu0 0
    %870 = vmatpush1.bf16.msra.mxu0 %v853
    %871 = vmatprep.subr.bf16.mxu0 0
    %872 = vmatpush1.bf16.msra.mxu0 %v854
    %873 = vmatprep.subr.bf16.mxu0 0
    %874 = vmatpush1.bf16.msra.mxu0 %v855
    %875 = vmatprep.subr.bf16.mxu0 0
    %876 = vmatpush1.bf16.msra.mxu0 %v856
    %877 = vmatprep.subr.bf16.mxu0 0
    %878 = vmatpush1.bf16.msra.mxu0 %v857
    %879 = vmatprep.subr.bf16.mxu0 0
    %880 = vmatpush1.bf16.msra.mxu0 %v858
    %881 = vmatprep.subr.bf16.mxu0 0
    %882 = vmatpush1.bf16.msra.mxu0 %v859
    %883 = vmatprep.subr.bf16.mxu0 0
    %884 = vmatpush1.bf16.msra.mxu0 %v860
    %885 = vmatprep.subr.bf16.mxu0 0
    %886 = vmatpush1.bf16.msra.mxu0 0
    %887 = vmatprep.subr.bf16.mxu0 0
    %888 = vmatpush1.bf16.msra.mxu0 0
    %889 = vmatprep.subr.bf16.mxu0 0
    %890 = vmatpush1.bf16.msra.mxu0 0
    %891 = vmatprep.subr.bf16.mxu0 0
    %892 = vmatpush1.bf16.msra.mxu0 0
    %893 = vmatprep.subr.bf16.mxu0 0
    %894 = vmatpush1.bf16.msra.mxu0 0
    %895 = vmatprep.subr.bf16.mxu0 0
    %896 = vmatpush1.bf16.msra.mxu0 0
    %897 = vmatprep.subr.bf16.mxu0 0
    %898 = vmatpush1.bf16.msra.mxu0 0
    %899 = vmatprep.subr.bf16.mxu0 0
    %900 = vmatpush1.bf16.msra.mxu0 0
    %901 = vmatprep.mubr.bf16.mxu0 0
    %902 = vmatmul.mubr.bf16.gmra.mrb[0].mxu0 %v819
    %v903 = vpop.f32.mrb[0].mxu0
    %v904 = vadd.f32 %v800, %v903
    %v905 = vpop.f32.mrb[0].mxu0
    %v906 = vpop.f32.mrb[0].mxu0
    %v907 = vpop.f32.mrb[0].mxu0
    %908 = vdwg.mxu0
    %v909 = vmax.f32 %v904, 0.0
    %v910 = vpack.c.bf16 %v909, %v909
    %s911 = scalar_lea.vmem [#allocation8], 192
    %v912 = vld [vmem:[%s911] sm:$0xf]
    %v913 = vld [vmem:[%s911 + $0x4] sm:$0xf]
    %v914 = vld [vmem:[%s911 + $0x8] sm:$0xf]
    %v915 = vld [vmem:[%s911 + $0xc] sm:$0xf]
    %v916 = vld [vmem:[%s911 + $0x10] sm:$0xf]
    %v917 = vld [vmem:[%s911 + $0x14] sm:$0xf]
    %v918 = vld [vmem:[%s911 + $0x18] sm:$0xf]
    %v919 = vld [vmem:[%s911 + $0x1c] sm:$0xf]
    %v920 = vld [vmem:[%s911 + $0x20] sm:$0xf]
    %v921 = vld [vmem:[%s911 + $0x24] sm:$0xf]
    %v922 = vld [vmem:[%s911 + $0x28] sm:$0xf]
    %v923 = vld [vmem:[%s911 + $0x2c] sm:$0xf]
    %v924 = vld [vmem:[%s911 + $0x30] sm:$0xf]
    %v925 = vld [vmem:[%s911 + $0x34] sm:$0xf]
    %v926 = vld [vmem:[%s911 + $0x38] sm:$0xf]
    %v927 = vld [vmem:[%s911 + $0x3c] sm:$0xf]
    %s928 = scalar_lea.vmem %s5, 3
    %v929 = vld [vmem:[%s928] sm:$0x1]
    %v931 = vlaneseq
    %v932 = vshrl.u32 %v931, 7
    %v933 = vsub.s32 0, %v932
    %v934 = vrot.slane %v929, %v933
    %v952 = vunpack.c.l.b16 %v912
    %v953 = vunpack.c.l.b16 %v913
    %v954 = vunpack.c.l.b16 %v914
    %v955 = vunpack.c.l.b16 %v915
    %v956 = vunpack.c.l.b16 %v916
    %v957 = vunpack.c.l.b16 %v917
    %v958 = vunpack.c.l.b16 %v918
    %v959 = vunpack.c.l.b16 %v919
    %v960 = vunpack.c.l.b16 %v920
    %v961 = vunpack.c.l.b16 %v921
    %v962 = vunpack.c.l.b16 %v922
    %v963 = vunpack.c.l.b16 %v923
    %v964 = vunpack.c.l.b16 %v924
    %v965 = vunpack.c.l.b16 %v925
    %v966 = vunpack.c.l.b16 %v926
    %v967 = vunpack.c.l.b16 %v927
    %v968 = vpack.c.b16 %v953, %v952
    %v969 = vpack.c.b16 %v955, %v954
    %v970 = vpack.c.b16 %v957, %v956
    %v971 = vpack.c.b16 %v959, %v958
    %v972 = vpack.c.b16 %v961, %v960
    %v973 = vpack.c.b16 %v963, %v962
    %v974 = vpack.c.b16 %v965, %v964
    %v975 = vpack.c.b16 %v967, %v966
    %984 = vmatprep.subr.bf16.mxu0 0
    %985 = vmatpush1.bf16.msra.mxu0 %v968
    %986 = vmatprep.subr.bf16.mxu0 0
    %987 = vmatpush1.bf16.msra.mxu0 %v969
    %988 = vmatprep.subr.bf16.mxu0 0
    %989 = vmatpush1.bf16.msra.mxu0 %v970
    %990 = vmatprep.subr.bf16.mxu0 0
    %991 = vmatpush1.bf16.msra.mxu0 %v971
    %992 = vmatprep.subr.bf16.mxu0 0
    %993 = vmatpush1.bf16.msra.mxu0 %v972
    %994 = vmatprep.subr.bf16.mxu0 0
    %995 = vmatpush1.bf16.msra.mxu0 %v973
    %996 = vmatprep.subr.bf16.mxu0 0
    %997 = vmatpush1.bf16.msra.mxu0 %v974
    %998 = vmatprep.subr.bf16.mxu0 0
    %999 = vmatpush1.bf16.msra.mxu0 %v975
    %1000 = vmatprep.subr.bf16.mxu0 0
    %1001 = vmatpush1.bf16.msra.mxu0 0
    %1002 = vmatprep.subr.bf16.mxu0 0
    %1003 = vmatpush1.bf16.msra.mxu0 0
    %1004 = vmatprep.subr.bf16.mxu0 0
    %1005 = vmatpush1.bf16.msra.mxu0 0
    %1006 = vmatprep.subr.bf16.mxu0 0
    %1007 = vmatpush1.bf16.msra.mxu0 0
    %1008 = vmatprep.subr.bf16.mxu0 0
    %1009 = vmatpush1.bf16.msra.mxu0 0
    %1010 = vmatprep.subr.bf16.mxu0 0
    %1011 = vmatpush1.bf16.msra.mxu0 0
    %1012 = vmatprep.subr.bf16.mxu0 0
    %1013 = vmatpush1.bf16.msra.mxu0 0
    %1014 = vmatprep.subr.bf16.mxu0 0
    %1015 = vmatpush1.bf16.msra.mxu0 0
    %1016 = vmatprep.mubr.bf16.mxu0 0
    %1017 = vmatmul.mubr.bf16.gmra.mrb[0].mxu0 %v910
    %v1018 = vpop.f32.mrb[0].mxu0
    %v1019 = vadd.f32 %v934, %v1018
    %v1020 = vpop.f32.mrb[0].mxu0
    %v1021 = vpop.f32.mrb[0].mxu0
    %v1022 = vpop.f32.mrb[0].mxu0
    %1023 = vdwg.mxu0
    %v1026 = vunpack.c.l.s4 1966171168
    %v1027 = vunpack.c.0.s8 %v1026
    %v1028 = vlaneseq
    %v1029 = vshrl.u32 %v1028, 7
    %v1030 = vsub.s32 %v1027, %v1029
    %v1031 = vrot.slane %v1019, %v1030
    %v1032 = vcombine.high %v1031, %v1031
    %v1034 = vunpack.c.l.s4 1966171168
    %v1035 = vunpack.c.0.s8 %v1034
    %v1036 = vlaneseq
    %v1037 = vshrl.u32 %v1036, 7
    %v1038 = vsub.s32 %v1035, %v1037
    %v1039 = vrot.slane %v1031, %v1038
    %v1041 = vunpack.c.l.s4 1966171168
    %v1042 = vunpack.c.0.s8 %v1041
    %v1043 = vlaneseq
    %v1044 = vshrl.u32 %v1043, 7
    %v1045 = vsub.s32 %v1042, %v1044
    %v1046 = vrot.slane %v1032, %v1045
    %v1047 = vcombine.high %v1039, %v1039
    %v1048 = vcombine.high %v1046, %v1046
    %v1049 = vlaneseq
    %v1050 = vshrl.u32 %v1049, 7
    %v1051 = vsub.s32 0, %v1050
    %v1052 = vrot.slane %v1039, %v1051
    %v1053 = vlaneseq
    %v1054 = vshrl.u32 %v1053, 7
    %v1055 = vsub.s32 0, %v1054
    %v1056 = vrot.slane %v1046, %v1055
    %v1057 = vlaneseq
    %v1058 = vshrl.u32 %v1057, 7
    %v1059 = vsub.s32 0, %v1058
    %v1060 = vrot.slane %v1047, %v1059
    %v1061 = vlaneseq
    %v1062 = vshrl.u32 %v1061, 7
    %v1063 = vsub.s32 0, %v1062
    %v1064 = vrot.slane %v1048, %v1063
    %v1069 = vmul.f32 %v743, %v1052
    %v1070 = vmul.f32 %v746, %v1052
    %v1071 = vmul.f32 %v751, %v1056
    %v1072 = vmul.f32 %v754, %v1056
    %v1073 = vmul.f32 %v759, %v1060
    %v1074 = vmul.f32 %v762, %v1060
    %v1075 = vmul.f32 %v767, %v1064
    %v1076 = vmul.f32 %v770, %v1064
    %v1077 = vmax.f32 %v1069, %v1070
    %v1078 = vrot.slane %v1077, 4
    %v1079 = vmax.f32 %v1077, %v1078
    %v1080 = vrot.slane %v1079, 2
    %v1081 = vmax.f32 %v1079, %v1080
    %v1082 = vrot.slane %v1081, 1
    %v1083 = vmax.f32 %v1081, %v1082
    %v1084 = vmax.f32 %v1071, %v1072
    %v1085 = vrot.slane %v1084, 4
    %v1086 = vmax.f32 %v1084, %v1085
    %v1087 = vrot.slane %v1086, 2
    %v1088 = vmax.f32 %v1086, %v1087
    %v1089 = vrot.slane %v1088, 1
    %v1090 = vmax.f32 %v1088, %v1089
    %v1091 = vmax.f32 %v1073, %v1074
    %v1092 = vrot.slane %v1091, 4
    %v1093 = vmax.f32 %v1091, %v1092
    %v1094 = vrot.slane %v1093, 2
    %v1095 = vmax.f32 %v1093, %v1094
    %v1096 = vrot.slane %v1095, 1
    %v1097 = vmax.f32 %v1095, %v1096
    %v1098 = vmax.f32 %v1075, %v1076
    %v1099 = vrot.slane %v1098, 4
    %v1100 = vmax.f32 %v1098, %v1099
    %v1101 = vrot.slane %v1100, 2
    %v1102 = vmax.f32 %v1100, %v1101
    %v1103 = vrot.slane %v1102, 1
    %v1104 = vmax.f32 %v1102, %v1103
    %v1105 = vmul.f32 %v461, 0.5
    %v1106 = vmul.f32 %v462, 0.5
    %v1107 = vmul.f32 %v463, 0.5
    %v1108 = vmul.f32 %v464, 0.5
    %v1109 = vmul.f32 %v465, 0.5
    %v1110 = vmul.f32 %v466, 0.5
    %v1111 = vmul.f32 %v467, 0.5
    %v1112 = vmul.f32 %v468, 0.5
    %v1113 = vmul.f32 %v1069, 0.5
    %v1114 = vmul.f32 %v1070, 0.5
    %v1115 = vmul.f32 %v1071, 0.5
    %v1116 = vmul.f32 %v1072, 0.5
    %v1117 = vmul.f32 %v1073, 0.5
    %v1118 = vmul.f32 %v1074, 0.5
    %v1119 = vmul.f32 %v1075, 0.5
    %v1120 = vmul.f32 %v1076, 0.5
    %v1121 = vadd.f32 %v1105, %v1113
    %v1122 = vadd.f32 %v1106, %v1114
    %v1123 = vadd.f32 %v1107, %v1115
    %v1124 = vadd.f32 %v1108, %v1116
    %v1125 = vadd.f32 %v1109, %v1117
    %v1126 = vadd.f32 %v1110, %v1118
    %v1127 = vadd.f32 %v1111, %v1119
    %v1128 = vadd.f32 %v1112, %v1120
    %v1129 = vmul.f32 %v477, 0.5
    %v1130 = vmul.f32 %v478, 0.5
    %v1131 = vmul.f32 %v479, 0.5
    %v1132 = vmul.f32 %v480, 0.5
    %v1133 = vmul.f32 %v1083, 0.5
    %v1134 = vmul.f32 %v1090, 0.5
    %v1135 = vmul.f32 %v1097, 0.5
    %v1136 = vmul.f32 %v1104, 0.5
    %v1137 = vadd.f32 %v1129, %v1133
    %v1138 = vadd.f32 %v1130, %v1134
    %v1139 = vadd.f32 %v1131, %v1135
    %v1140 = vadd.f32 %v1132, %v1136
    %v1141 = vpack.c.bf16 %v1122, %v1121
    %v1142 = vpack.c.bf16 %v1124, %v1123
    %v1143 = vpack.c.bf16 %v1126, %v1125
    %v1144 = vpack.c.bf16 %v1128, %v1127
    %s1145 = scalar_lea.vmem [#allocation7], 256
    %v1146 = vld [vmem:[%s1145] sm:$0xf]
    %v1147 = vld [vmem:[%s1145 + $0x4] sm:$0xf]
    %v1148 = vld [vmem:[%s1145 + $0x8] sm:$0xf]
    %v1149 = vld [vmem:[%s1145 + $0xc] sm:$0xf]
    %v1150 = vld [vmem:[%s1145 + $0x10] sm:$0xf]
    %v1151 = vld [vmem:[%s1145 + $0x14] sm:$0xf]
    %v1152 = vld [vmem:[%s1145 + $0x18] sm:$0xf]
    %v1153 = vld [vmem:[%s1145 + $0x1c] sm:$0xf]
    %v1154 = vld [vmem:[%s1145 + $0x20] sm:$0xf]
    %v1155 = vld [vmem:[%s1145 + $0x24] sm:$0xf]
    %v1156 = vld [vmem:[%s1145 + $0x28] sm:$0xf]
    %v1157 = vld [vmem:[%s1145 + $0x2c] sm:$0xf]
    %v1158 = vld [vmem:[%s1145 + $0x30] sm:$0xf]
    %v1159 = vld [vmem:[%s1145 + $0x34] sm:$0xf]
    %v1160 = vld [vmem:[%s1145 + $0x38] sm:$0xf]
    %v1161 = vld [vmem:[%s1145 + $0x3c] sm:$0xf]
    %s1162 = scalar_lea.vmem %s3, 4
    %v1163 = vld [vmem:[%s1162] sm:$0x1]
    %v1165 = vlaneseq
    %v1166 = vshrl.u32 %v1165, 7
    %v1167 = vsub.s32 0, %v1166
    %v1168 = vrot.slane %v1163, %v1167
    %v1186 = vunpack.c.l.b16 %v1146
    %v1187 = vunpack.c.l.b16 %v1147
    %v1188 = vunpack.c.l.b16 %v1148
    %v1189 = vunpack.c.l.b16 %v1149
    %v1190 = vunpack.c.l.b16 %v1150
    %v1191 = vunpack.c.l.b16 %v1151
    %v1192 = vunpack.c.l.b16 %v1152
    %v1193 = vunpack.c.l.b16 %v1153
    %v1194 = vunpack.c.l.b16 %v1154
    %v1195 = vunpack.c.l.b16 %v1155
    %v1196 = vunpack.c.l.b16 %v1156
    %v1197 = vunpack.c.l.b16 %v1157
    %v1198 = vunpack.c.l.b16 %v1158
    %v1199 = vunpack.c.l.b16 %v1159
    %v1200 = vunpack.c.l.b16 %v1160
    %v1201 = vunpack.c.l.b16 %v1161
    %v1202 = vpack.c.b16 %v1187, %v1186
    %v1203 = vpack.c.b16 %v1189, %v1188
    %v1204 = vpack.c.b16 %v1191, %v1190
    %v1205 = vpack.c.b16 %v1193, %v1192
    %v1206 = vpack.c.b16 %v1195, %v1194
    %v1207 = vpack.c.b16 %v1197, %v1196
    %v1208 = vpack.c.b16 %v1199, %v1198
    %v1209 = vpack.c.b16 %v1201, %v1200
    %1218 = vmatprep.subr.bf16.mxu0 0
    %1219 = vmatpush1.bf16.msra.mxu0 %v1202
    %1220 = vmatprep.subr.bf16.mxu0 0
    %1221 = vmatpush1.bf16.msra.mxu0 %v1203
    %1222 = vmatprep.subr.bf16.mxu0 0
    %1223 = vmatpush1.bf16.msra.mxu0 %v1204
    %1224 = vmatprep.subr.bf16.mxu0 0
    %1225 = vmatpush1.bf16.msra.mxu0 %v1205
    %1226 = vmatprep.subr.bf16.mxu0 0
    %1227 = vmatpush1.bf16.msra.mxu0 %v1206
    %1228 = vmatprep.subr.bf16.mxu0 0
    %1229 = vmatpush1.bf16.msra.mxu0 %v1207
    %1230 = vmatprep.subr.bf16.mxu0 0
    %1231 = vmatpush1.bf16.msra.mxu0 %v1208
    %1232 = vmatprep.subr.bf16.mxu0 0
    %1233 = vmatpush1.bf16.msra.mxu0 %v1209
    %1234 = vmatprep.subr.bf16.mxu0 0
    %1235 = vmatpush1.bf16.msra.mxu0 0
    %1236 = vmatprep.subr.bf16.mxu0 0
    %1237 = vmatpush1.bf16.msra.mxu0 0
    %1238 = vmatprep.subr.bf16.mxu0 0
    %1239 = vmatpush1.bf16.msra.mxu0 0
    %1240 = vmatprep.subr.bf16.mxu0 0
    %1241 = vmatpush1.bf16.msra.mxu0 0
    %1242 = vmatprep.subr.bf16.mxu0 0
    %1243 = vmatpush1.bf16.msra.mxu0 0
    %1244 = vmatprep.subr.bf16.mxu0 0
    %1245 = vmatpush1.bf16.msra.mxu0 0
    %1246 = vmatprep.subr.bf16.mxu0 0
    %1247 = vmatpush1.bf16.msra.mxu0 0
    %1248 = vmatprep.subr.bf16.mxu0 0
    %1249 = vmatpush1.bf16.msra.mxu0 0
    %1250 = vmatprep.mubr.bf16.mxu0 0
    %1251 = vmatmul.mubr.bf16.gmra.mrb[0].mxu0 %v1141
    %v1252 = vpop.f32.mrb[0].mxu0
    %v1253 = vadd.f32 %v1168, %v1252
    %v1254 = vpop.f32.mrb[0].mxu0
    %v1255 = vpop.f32.mrb[0].mxu0
    %v1256 = vadd.f32 %v1168, %v1255
    %v1257 = vpop.f32.mrb[0].mxu0
    %1258 = vmatprep.mubr.bf16.mxu0 0
    %1259 = vmatmul.mubr.bf16.gmra.mrb[0].mxu0 %v1142
    %v1260 = vpop.f32.mrb[0].mxu0
    %v1261 = vadd.f32 %v1168, %v1260
    %v1262 = vpop.f32.mrb[0].mxu0
    %v1263 = vpop.f32.mrb[0].mxu0
    %v1264 = vadd.f32 %v1168, %v1263
    %v1265 = vpop.f32.mrb[0].mxu0
    %1266 = vmatprep.mubr.bf16.mxu0 0
    %1267 = vmatmul.mubr.bf16.gmra.mrb[0].mxu0 %v1143
    %v1268 = vpop.f32.mrb[0].mxu0
    %v1269 = vadd.f32 %v1168, %v1268
    %v1270 = vpop.f32.mrb[0].mxu0
    %v1271 = vpop.f32.mrb[0].mxu0
    %v1272 = vadd.f32 %v1168, %v1271
    %v1273 = vpop.f32.mrb[0].mxu0
    %1274 = vmatprep.mubr.bf16.mxu0 0
    %1275 = vmatmul.mubr.bf16.gmra.mrb[0].mxu0 %v1144
    %v1276 = vpop.f32.mrb[0].mxu0
    %v1277 = vadd.f32 %v1168, %v1276
    %v1278 = vpop.f32.mrb[0].mxu0
    %v1279 = vpop.f32.mrb[0].mxu0
    %v1280 = vadd.f32 %v1168, %v1279
    %v1281 = vpop.f32.mrb[0].mxu0
    %1282 = vdwg.mxu0
    %v1283 = vmax.f32 %v1253, 0.0
    %v1284 = vmax.f32 %v1256, 0.0
    %v1285 = vmax.f32 %v1261, 0.0
    %v1286 = vmax.f32 %v1264, 0.0
    %v1287 = vmax.f32 %v1269, 0.0
    %v1288 = vmax.f32 %v1272, 0.0
    %v1289 = vmax.f32 %v1277, 0.0
    %v1290 = vmax.f32 %v1280, 0.0
    %v1291 = vpack.c.bf16 %v1284, %v1283
    %v1292 = vpack.c.bf16 %v1286, %v1285
    %v1293 = vpack.c.bf16 %v1288, %v1287
    %v1294 = vpack.c.bf16 %v1290, %v1289
    %s1295 = scalar_lea.vmem [#allocation7], 320
    %v1296 = vld [vmem:[%s1295] sm:$0xf]
    %v1297 = vld [vmem:[%s1295 + $0x4] sm:$0xf]
    %v1298 = vld [vmem:[%s1295 + $0x8] sm:$0xf]
    %v1299 = vld [vmem:[%s1295 + $0xc] sm:$0xf]
    %v1300 = vld [vmem:[%s1295 + $0x10] sm:$0xf]
    %v1301 = vld [vmem:[%s1295 + $0x14] sm:$0xf]
    %v1302 = vld [vmem:[%s1295 + $0x18] sm:$0xf]
    %v1303 = vld [vmem:[%s1295 + $0x1c] sm:$0xf]
    %v1304 = vld [vmem:[%s1295 + $0x20] sm:$0xf]
    %v1305 = vld [vmem:[%s1295 + $0x24] sm:$0xf]
    %v1306 = vld [vmem:[%s1295 + $0x28] sm:$0xf]
    %v1307 = vld [vmem:[%s1295 + $0x2c] sm:$0xf]
    %v1308 = vld [vmem:[%s1295 + $0x30] sm:$0xf]
    %v1309 = vld [vmem:[%s1295 + $0x34] sm:$0xf]
    %v1310 = vld [vmem:[%s1295 + $0x38] sm:$0xf]
    %v1311 = vld [vmem:[%s1295 + $0x3c] sm:$0xf]
    %s1312 = scalar_lea.vmem %s3, 5
    %v1313 = vld [vmem:[%s1312] sm:$0x1]
    %v1315 = vlaneseq
    %v1316 = vshrl.u32 %v1315, 7
    %v1317 = vsub.s32 0, %v1316
    %v1318 = vrot.slane %v1313, %v1317
    %v1336 = vunpack.c.l.b16 %v1296
    %v1337 = vunpack.c.l.b16 %v1297
    %v1338 = vunpack.c.l.b16 %v1298
    %v1339 = vunpack.c.l.b16 %v1299
    %v1340 = vunpack.c.l.b16 %v1300
    %v1341 = vunpack.c.l.b16 %v1301
    %v1342 = vunpack.c.l.b16 %v1302
    %v1343 = vunpack.c.l.b16 %v1303
    %v1344 = vunpack.c.l.b16 %v1304
    %v1345 = vunpack.c.l.b16 %v1305
    %v1346 = vunpack.c.l.b16 %v1306
    %v1347 = vunpack.c.l.b16 %v1307
    %v1348 = vunpack.c.l.b16 %v1308
    %v1349 = vunpack.c.l.b16 %v1309
    %v1350 = vunpack.c.l.b16 %v1310
    %v1351 = vunpack.c.l.b16 %v1311
    %v1352 = vpack.c.b16 %v1337, %v1336
    %v1353 = vpack.c.b16 %v1339, %v1338
    %v1354 = vpack.c.b16 %v1341, %v1340
    %v1355 = vpack.c.b16 %v1343, %v1342
    %v1356 = vpack.c.b16 %v1345, %v1344
    %v1357 = vpack.c.b16 %v1347, %v1346
    %v1358 = vpack.c.b16 %v1349, %v1348
    %v1359 = vpack.c.b16 %v1351, %v1350
    %1368 = vmatprep.subr.bf16.mxu0 0
    %1369 = vmatpush1.bf16.msra.mxu0 %v1352
    %1370 = vmatprep.subr.bf16.mxu0 0
    %1371 = vmatpush1.bf16.msra.mxu0 %v1353
    %1372 = vmatprep.subr.bf16.mxu0 0
    %1373 = vmatpush1.bf16.msra.mxu0 %v1354
    %1374 = vmatprep.subr.bf16.mxu0 0
    %1375 = vmatpush1.bf16.msra.mxu0 %v1355
    %1376 = vmatprep.subr.bf16.mxu0 0
    %1377 = vmatpush1.bf16.msra.mxu0 %v1356
    %1378 = vmatprep.subr.bf16.mxu0 0
    %1379 = vmatpush1.bf16.msra.mxu0 %v1357
    %1380 = vmatprep.subr.bf16.mxu0 0
    %1381 = vmatpush1.bf16.msra.mxu0 %v1358
    %1382 = vmatprep.subr.bf16.mxu0 0
    %1383 = vmatpush1.bf16.msra.mxu0 %v1359
    %1384 = vmatprep.subr.bf16.mxu0 0
    %1385 = vmatpush1.bf16.msra.mxu0 0
    %1386 = vmatprep.subr.bf16.mxu0 0
    %1387 = vmatpush1.bf16.msra.mxu0 0
    %1388 = vmatprep.subr.bf16.mxu0 0
    %1389 = vmatpush1.bf16.msra.mxu0 0
    %1390 = vmatprep.subr.bf16.mxu0 0
    %1391 = vmatpush1.bf16.msra.mxu0 0
    %1392 = vmatprep.subr.bf16.mxu0 0
    %1393 = vmatpush1.bf16.msra.mxu0 0
    %1394 = vmatprep.subr.bf16.mxu0 0
    %1395 = vmatpush1.bf16.msra.mxu0 0
    %1396 = vmatprep.subr.bf16.mxu0 0
    %1397 = vmatpush1.bf16.msra.mxu0 0
    %1398 = vmatprep.subr.bf16.mxu0 0
    %1399 = vmatpush1.bf16.msra.mxu0 0
    %1400 = vmatprep.mubr.bf16.mxu0 0
    %1401 = vmatmul.mubr.bf16.gmra.mrb[0].mxu0 %v1291
    %v1402 = vpop.f32.mrb[0].mxu0
    %v1403 = vadd.f32 %v1318, %v1402
    %v1404 = vpop.f32.mrb[0].mxu0
    %v1405 = vpop.f32.mrb[0].mxu0
    %v1406 = vadd.f32 %v1318, %v1405
    %v1407 = vpop.f32.mrb[0].mxu0
    %1408 = vmatprep.mubr.bf16.mxu0 0
    %1409 = vmatmul.mubr.bf16.gmra.mrb[0].mxu0 %v1292
    %v1410 = vpop.f32.mrb[0].mxu0
    %v1411 = vadd.f32 %v1318, %v1410
    %v1412 = vpop.f32.mrb[0].mxu0
    %v1413 = vpop.f32.mrb[0].mxu0
    %v1414 = vadd.f32 %v1318, %v1413
    %v1415 = vpop.f32.mrb[0].mxu0
    %1416 = vmatprep.mubr.bf16.mxu0 0
    %1417 = vmatmul.mubr.bf16.gmra.mrb[0].mxu0 %v1293
    %v1418 = vpop.f32.mrb[0].mxu0
    %v1419 = vadd.f32 %v1318, %v1418
    %v1420 = vpop.f32.mrb[0].mxu0
    %v1421 = vpop.f32.mrb[0].mxu0
    %v1422 = vadd.f32 %v1318, %v1421
    %v1423 = vpop.f32.mrb[0].mxu0
    %1424 = vmatprep.mubr.bf16.mxu0 0
    %1425 = vmatmul.mubr.bf16.gmra.mrb[0].mxu0 %v1294
    %v1426 = vpop.f32.mrb[0].mxu0
    %v1427 = vadd.f32 %v1318, %v1426
    %v1428 = vpop.f32.mrb[0].mxu0
    %v1429 = vpop.f32.mrb[0].mxu0
    %v1430 = vadd.f32 %v1318, %v1429
    %v1431 = vpop.f32.mrb[0].mxu0
    %1432 = vdwg.mxu0
    %v1433 = vpack.c.bf16 %v1137, %v1137
    %v1434 = vpack.c.bf16 %v1138, %v1138
    %v1435 = vpack.c.bf16 %v1139, %v1139
    %v1436 = vpack.c.bf16 %v1140, %v1140
    %s1437 = scalar_lea.vmem [#allocation8], 256
    %v1438 = vld [vmem:[%s1437] sm:$0xf]
    %v1439 = vld [vmem:[%s1437 + $0x4] sm:$0xf]
    %v1440 = vld [vmem:[%s1437 + $0x8] sm:$0xf]
    %v1441 = vld [vmem:[%s1437 + $0xc] sm:$0xf]
    %v1442 = vld [vmem:[%s1437 + $0x10] sm:$0xf]
    %v1443 = vld [vmem:[%s1437 + $0x14] sm:$0xf]
    %v1444 = vld [vmem:[%s1437 + $0x18] sm:$0xf]
    %v1445 = vld [vmem:[%s1437 + $0x1c] sm:$0xf]
    %v1446 = vld [vmem:[%s1437 + $0x20] sm:$0xf]
    %v1447 = vld [vmem:[%s1437 + $0x24] sm:$0xf]
    %v1448 = vld [vmem:[%s1437 + $0x28] sm:$0xf]
    %v1449 = vld [vmem:[%s1437 + $0x2c] sm:$0xf]
    %v1450 = vld [vmem:[%s1437 + $0x30] sm:$0xf]
    %v1451 = vld [vmem:[%s1437 + $0x34] sm:$0xf]
    %v1452 = vld [vmem:[%s1437 + $0x38] sm:$0xf]
    %v1453 = vld [vmem:[%s1437 + $0x3c] sm:$0xf]
    %s1454 = scalar_lea.vmem %s5, 4
    %v1455 = vld [vmem:[%s1454] sm:$0x1]
    %v1457 = vlaneseq
    %v1458 = vshrl.u32 %v1457, 7
    %v1459 = vsub.s32 0, %v1458
    %v1460 = vrot.slane %v1455, %v1459
    %v1466 = vunpack.c.l.b16 %v1433
    %v1467 = vunpack.c.l.b16 %v1434
    %v1468 = vunpack.c.l.b16 %v1435
    %v1469 = vunpack.c.l.b16 %v1436
    %v1470 = vrot.slane %v1467, 7
    %v1471 = vsel %vm811, %v1470, %v1466
    %v1472 = vrot.slane %v1468, 6
    %v1473 = vsel %vm814, %v1472, %v1471
    %v1474 = vrot.slane %v1469, 5
    %v1475 = vsel %vm817, %v1474, %v1473
    %v1476 = vpack.c.b16 %v1475, %v1475
    %v1494 = vunpack.c.l.b16 %v1438
    %v1495 = vunpack.c.l.b16 %v1439
    %v1496 = vunpack.c.l.b16 %v1440
    %v1497 = vunpack.c.l.b16 %v1441
    %v1498 = vunpack.c.l.b16 %v1442
    %v1499 = vunpack.c.l.b16 %v1443
    %v1500 = vunpack.c.l.b16 %v1444
    %v1501 = vunpack.c.l.b16 %v1445
    %v1502 = vunpack.c.l.b16 %v1446
    %v1503 = vunpack.c.l.b16 %v1447
    %v1504 = vunpack.c.l.b16 %v1448
    %v1505 = vunpack.c.l.b16 %v1449
    %v1506 = vunpack.c.l.b16 %v1450
    %v1507 = vunpack.c.l.b16 %v1451
    %v1508 = vunpack.c.l.b16 %v1452
    %v1509 = vunpack.c.l.b16 %v1453
    %v1510 = vpack.c.b16 %v1495, %v1494
    %v1511 = vpack.c.b16 %v1497, %v1496
    %v1512 = vpack.c.b16 %v1499, %v1498
    %v1513 = vpack.c.b16 %v1501, %v1500
    %v1514 = vpack.c.b16 %v1503, %v1502
    %v1515 = vpack.c.b16 %v1505, %v1504
    %v1516 = vpack.c.b16 %v1507, %v1506
    %v1517 = vpack.c.b16 %v1509, %v1508
    %1526 = vmatprep.subr.bf16.mxu0 0
    %1527 = vmatpush1.bf16.msra.mxu0 %v1510
    %1528 = vmatprep.subr.bf16.mxu0 0
    %1529 = vmatpush1.bf16.msra.mxu0 %v1511
    %1530 = vmatprep.subr.bf16.mxu0 0
    %1531 = vmatpush1.bf16.msra.mxu0 %v1512
    %1532 = vmatprep.subr.bf16.mxu0 0
    %1533 = vmatpush1.bf16.msra.mxu0 %v1513
    %1534 = vmatprep.subr.bf16.mxu0 0
    %1535 = vmatpush1.bf16.msra.mxu0 %v1514
    %1536 = vmatprep.subr.bf16.mxu0 0
    %1537 = vmatpush1.bf16.msra.mxu0 %v1515
    %1538 = vmatprep.subr.bf16.mxu0 0
    %1539 = vmatpush1.bf16.msra.mxu0 %v1516
    %1540 = vmatprep.subr.bf16.mxu0 0
    %1541 = vmatpush1.bf16.msra.mxu0 %v1517
    %1542 = vmatprep.subr.bf16.mxu0 0
    %1543 = vmatpush1.bf16.msra.mxu0 0
    %1544 = vmatprep.subr.bf16.mxu0 0
    %1545 = vmatpush1.bf16.msra.mxu0 0
    %1546 = vmatprep.subr.bf16.mxu0 0
    %1547 = vmatpush1.bf16.msra.mxu0 0
    %1548 = vmatprep.subr.bf16.mxu0 0
    %1549 = vmatpush1.bf16.msra.mxu0 0
    %1550 = vmatprep.subr.bf16.mxu0 0
    %1551 = vmatpush1.bf16.msra.mxu0 0
    %1552 = vmatprep.subr.bf16.mxu0 0
    %1553 = vmatpush1.bf16.msra.mxu0 0
    %1554 = vmatprep.subr.bf16.mxu0 0
    %1555 = vmatpush1.bf16.msra.mxu0 0
    %1556 = vmatprep.subr.bf16.mxu0 0
    %1557 = vmatpush1.bf16.msra.mxu0 0
    %1558 = vmatprep.mubr.bf16.mxu0 0
    %1559 = vmatmul.mubr.bf16.gmra.mrb[0].mxu0 %v1476
    %v1560 = vpop.f32.mrb[0].mxu0
    %v1561 = vadd.f32 %v1460, %v1560
    %v1562 = vpop.f32.mrb[0].mxu0
    %v1563 = vpop.f32.mrb[0].mxu0
    %v1564 = vpop.f32.mrb[0].mxu0
    %1565 = vdwg.mxu0
    %v1566 = vmax.f32 %v1561, 0.0
    %v1567 = vpack.c.bf16 %v1566, %v1566
    %s1568 = scalar_lea.vmem [#allocation8], 320
    %v1569 = vld [vmem:[%s1568] sm:$0xf]
    %v1570 = vld [vmem:[%s1568 + $0x4] sm:$0xf]
    %v1571 = vld [vmem:[%s1568 + $0x8] sm:$0xf]
    %v1572 = vld [vmem:[%s1568 + $0xc] sm:$0xf]
    %v1573 = vld [vmem:[%s1568 + $0x10] sm:$0xf]
    %v1574 = vld [vmem:[%s1568 + $0x14] sm:$0xf]
    %v1575 = vld [vmem:[%s1568 + $0x18] sm:$0xf]
    %v1576 = vld [vmem:[%s1568 + $0x1c] sm:$0xf]
    %v1577 = vld [vmem:[%s1568 + $0x20] sm:$0xf]
    %v1578 = vld [vmem:[%s1568 + $0x24] sm:$0xf]
    %v1579 = vld [vmem:[%s1568 + $0x28] sm:$0xf]
    %v1580 = vld [vmem:[%s1568 + $0x2c] sm:$0xf]
    %v1581 = vld [vmem:[%s1568 + $0x30] sm:$0xf]
    %v1582 = vld [vmem:[%s1568 + $0x34] sm:$0xf]
    %v1583 = vld [vmem:[%s1568 + $0x38] sm:$0xf]
    %v1584 = vld [vmem:[%s1568 + $0x3c] sm:$0xf]
    %s1585 = scalar_lea.vmem %s5, 5
    %v1586 = vld [vmem:[%s1585] sm:$0x1]
    %v1588 = vlaneseq
    %v1589 = vshrl.u32 %v1588, 7
    %v1590 = vsub.s32 0, %v1589
    %v1591 = vrot.slane %v1586, %v1590
    %v1609 = vunpack.c.l.b16 %v1569
    %v1610 = vunpack.c.l.b16 %v1570
    %v1611 = vunpack.c.l.b16 %v1571
    %v1612 = vunpack.c.l.b16 %v1572
    %v1613 = vunpack.c.l.b16 %v1573
    %v1614 = vunpack.c.l.b16 %v1574
    %v1615 = vunpack.c.l.b16 %v1575
    %v1616 = vunpack.c.l.b16 %v1576
    %v1617 = vunpack.c.l.b16 %v1577
    %v1618 = vunpack.c.l.b16 %v1578
    %v1619 = vunpack.c.l.b16 %v1579
    %v1620 = vunpack.c.l.b16 %v1580
    %v1621 = vunpack.c.l.b16 %v1581
    %v1622 = vunpack.c.l.b16 %v1582
    %v1623 = vunpack.c.l.b16 %v1583
    %v1624 = vunpack.c.l.b16 %v1584
    %v1625 = vpack.c.b16 %v1610, %v1609
    %v1626 = vpack.c.b16 %v1612, %v1611
    %v1627 = vpack.c.b16 %v1614, %v1613
    %v1628 = vpack.c.b16 %v1616, %v1615
    %v1629 = vpack.c.b16 %v1618, %v1617
    %v1630 = vpack.c.b16 %v1620, %v1619
    %v1631 = vpack.c.b16 %v1622, %v1621
    %v1632 = vpack.c.b16 %v1624, %v1623
    %1641 = vmatprep.subr.bf16.mxu0 0
    %1642 = vmatpush1.bf16.msra.mxu0 %v1625
    %1643 = vmatprep.subr.bf16.mxu0 0
    %1644 = vmatpush1.bf16.msra.mxu0 %v1626
    %1645 = vmatprep.subr.bf16.mxu0 0
    %1646 = vmatpush1.bf16.msra.mxu0 %v1627
    %1647 = vmatprep.subr.bf16.mxu0 0
    %1648 = vmatpush1.bf16.msra.mxu0 %v1628
    %1649 = vmatprep.subr.bf16.mxu0 0
    %1650 = vmatpush1.bf16.msra.mxu0 %v1629
    %1651 = vmatprep.subr.bf16.mxu0 0
    %1652 = vmatpush1.bf16.msra.mxu0 %v1630
    %1653 = vmatprep.subr.bf16.mxu0 0
    %1654 = vmatpush1.bf16.msra.mxu0 %v1631
    %1655 = vmatprep.subr.bf16.mxu0 0
    %1656 = vmatpush1.bf16.msra.mxu0 %v1632
    %1657 = vmatprep.subr.bf16.mxu0 0
    %1658 = vmatpush1.bf16.msra.mxu0 0
    %1659 = vmatprep.subr.bf16.mxu0 0
    %1660 = vmatpush1.bf16.msra.mxu0 0
    %1661 = vmatprep.subr.bf16.mxu0 0
    %1662 = vmatpush1.bf16.msra.mxu0 0
    %1663 = vmatprep.subr.bf16.mxu0 0
    %1664 = vmatpush1.bf16.msra.mxu0 0
    %1665 = vmatprep.subr.bf16.mxu0 0
    %1666 = vmatpush1.bf16.msra.mxu0 0
    %1667 = vmatprep.subr.bf16.mxu0 0
    %1668 = vmatpush1.bf16.msra.mxu0 0
    %1669 = vmatprep.subr.bf16.mxu0 0
    %1670 = vmatpush1.bf16.msra.mxu0 0
    %1671 = vmatprep.subr.bf16.mxu0 0
    %1672 = vmatpush1.bf16.msra.mxu0 0
    %1673 = vmatprep.mubr.bf16.mxu0 0
    %1674 = vmatmul.mubr.bf16.gmra.mrb[0].mxu0 %v1567
    %v1675 = vpop.f32.mrb[0].mxu0
    %v1676 = vadd.f32 %v1591, %v1675
    %v1677 = vpop.f32.mrb[0].mxu0
    %v1678 = vpop.f32.mrb[0].mxu0
    %v1679 = vpop.f32.mrb[0].mxu0
    %1680 = vdwg.mxu0
    %v1683 = vunpack.c.l.s4 1966171168
    %v1684 = vunpack.c.0.s8 %v1683
    %v1685 = vlaneseq
    %v1686 = vshrl.u32 %v1685, 7
    %v1687 = vsub.s32 %v1684, %v1686
    %v1688 = vrot.slane %v1676, %v1687
    %v1689 = vcombine.high %v1688, %v1688
    %v1691 = vunpack.c.l.s4 1966171168
    %v1692 = vunpack.c.0.s8 %v1691
    %v1693 = vlaneseq
    %v1694 = vshrl.u32 %v1693, 7
    %v1695 = vsub.s32 %v1692, %v1694
    %v1696 = vrot.slane %v1688, %v1695
    %v1698 = vunpack.c.l.s4 1966171168
    %v1699 = vunpack.c.0.s8 %v1698
    %v1700 = vlaneseq
    %v1701 = vshrl.u32 %v1700, 7
    %v1702 = vsub.s32 %v1699, %v1701
    %v1703 = vrot.slane %v1689, %v1702
    %v1704 = vcombine.high %v1696, %v1696
    %v1705 = vcombine.high %v1703, %v1703
    %v1706 = vlaneseq
    %v1707 = vshrl.u32 %v1706, 7
    %v1708 = vsub.s32 0, %v1707
    %v1709 = vrot.slane %v1696, %v1708
    %v1710 = vlaneseq
    %v1711 = vshrl.u32 %v1710, 7
    %v1712 = vsub.s32 0, %v1711
    %v1713 = vrot.slane %v1703, %v1712
    %v1714 = vlaneseq
    %v1715 = vshrl.u32 %v1714, 7
    %v1716 = vsub.s32 0, %v1715
    %v1717 = vrot.slane %v1704, %v1716
    %v1718 = vlaneseq
    %v1719 = vshrl.u32 %v1718, 7
    %v1720 = vsub.s32 0, %v1719
    %v1721 = vrot.slane %v1705, %v1720
    %v1726 = vmul.f32 %v1403, %v1709
    %v1727 = vmul.f32 %v1406, %v1709
    %v1728 = vmul.f32 %v1411, %v1713
    %v1729 = vmul.f32 %v1414, %v1713
    %v1730 = vmul.f32 %v1419, %v1717
    %v1731 = vmul.f32 %v1422, %v1717
    %v1732 = vmul.f32 %v1427, %v1721
    %v1733 = vmul.f32 %v1430, %v1721
    %v1734 = vmax.f32 %v1726, %v1727
    %v1735 = vrot.slane %v1734, 4
    %v1736 = vmax.f32 %v1734, %v1735
    %v1737 = vrot.slane %v1736, 2
    %v1738 = vmax.f32 %v1736, %v1737
    %v1739 = vrot.slane %v1738, 1
    %v1740 = vmax.f32 %v1738, %v1739
    %v1741 = vmax.f32 %v1728, %v1729
    %v1742 = vrot.slane %v1741, 4
    %v1743 = vmax.f32 %v1741, %v1742
    %v1744 = vrot.slane %v1743, 2
    %v1745 = vmax.f32 %v1743, %v1744
    %v1746 = vrot.slane %v1745, 1
    %v1747 = vmax.f32 %v1745, %v1746
    %v1748 = vmax.f32 %v1730, %v1731
    %v1749 = vrot.slane %v1748, 4
    %v1750 = vmax.f32 %v1748, %v1749
    %v1751 = vrot.slane %v1750, 2
    %v1752 = vmax.f32 %v1750, %v1751
    %v1753 = vrot.slane %v1752, 1
    %v1754 = vmax.f32 %v1752, %v1753
    %v1755 = vmax.f32 %v1732, %v1733
    %v1756 = vrot.slane %v1755, 4
    %v1757 = vmax.f32 %v1755, %v1756
    %v1758 = vrot.slane %v1757, 2
    %v1759 = vmax.f32 %v1757, %v1758
    %v1760 = vrot.slane %v1759, 1
    %v1761 = vmax.f32 %v1759, %v1760
    %v1762 = vmul.f32 %v1121, 0.5
    %v1763 = vmul.f32 %v1122, 0.5
    %v1764 = vmul.f32 %v1123, 0.5
    %v1765 = vmul.f32 %v1124, 0.5
    %v1766 = vmul.f32 %v1125, 0.5
    %v1767 = vmul.f32 %v1126, 0.5
    %v1768 = vmul.f32 %v1127, 0.5
    %v1769 = vmul.f32 %v1128, 0.5
    %v1770 = vmul.f32 %v1726, 0.5
    %v1771 = vmul.f32 %v1727, 0.5
    %v1772 = vmul.f32 %v1728, 0.5
    %v1773 = vmul.f32 %v1729, 0.5
    %v1774 = vmul.f32 %v1730, 0.5
    %v1775 = vmul.f32 %v1731, 0.5
    %v1776 = vmul.f32 %v1732, 0.5
    %v1777 = vmul.f32 %v1733, 0.5
    %v1778 = vadd.f32 %v1762, %v1770
    %v1779 = vadd.f32 %v1763, %v1771
    %v1780 = vadd.f32 %v1764, %v1772
    %v1781 = vadd.f32 %v1765, %v1773
    %v1782 = vadd.f32 %v1766, %v1774
    %v1783 = vadd.f32 %v1767, %v1775
    %v1784 = vadd.f32 %v1768, %v1776
    %v1785 = vadd.f32 %v1769, %v1777
    %v1786 = vmul.f32 %v1137, 0.5
    %v1787 = vmul.f32 %v1138, 0.5
    %v1788 = vmul.f32 %v1139, 0.5
    %v1789 = vmul.f32 %v1140, 0.5
    %v1790 = vmul.f32 %v1740, 0.5
    %v1791 = vmul.f32 %v1747, 0.5
    %v1792 = vmul.f32 %v1754, 0.5
    %v1793 = vmul.f32 %v1761, 0.5
    %v1794 = vadd.f32 %v1786, %v1790
    %v1795 = vadd.f32 %v1787, %v1791
    %v1796 = vadd.f32 %v1788, %v1792
    %v1797 = vadd.f32 %v1789, %v1793
    %1798 = vst [vmem:[#allocation10] sm:$0xff] %v1778
    %1799 = vst [vmem:[#allocation10 + $0x8] sm:$0xff] %v1779
    %1800 = vst [vmem:[#allocation10 + $0x10] sm:$0xff] %v1780
    %1801 = vst [vmem:[#allocation10 + $0x18] sm:$0xff] %v1781
    %1802 = vst [vmem:[#allocation10 + $0x20] sm:$0xff] %v1782
    %1803 = vst [vmem:[#allocation10 + $0x28] sm:$0xff] %v1783
    %1804 = vst [vmem:[#allocation10 + $0x30] sm:$0xff] %v1784
    %1805 = vst [vmem:[#allocation10 + $0x38] sm:$0xff] %v1785
    %1806 = vst [vmem:[#allocation11] sm:$0x1] %v1794
    %1807 = vst [vmem:[#allocation11 + $0x1] sm:$0x1] %v1795
    %1808 = vst [vmem:[#allocation11 + $0x2] sm:$0x1] %v1796
    %1809 = vst [vmem:[#allocation11 + $0x3] sm:$0x1] %v1797
    // Predicated region
    $region42: #{tpu_custom_call.1} parent=1 // pred_check
      _
    $region43: #{tpu_custom_call.1} parent=1 // pred_check_branch
      %1811 = sbr.rel (0) target = $region45
    $region44: #{tpu_custom_call.1} parent=1 // pred_region
      %s1813 = ssub.s32 1024, 1024
      %1814 = vsyncadd [#allocation4], %s1813
      %s1815 = sshll.u32 [#allocation10], 4
      %s1816 = int_to_ptr.vmem [resolvable:$true] %s1815
      %1821 = dma.vmem_to_hbm [thread:$0]  %s1816, 1024, %s6, [#allocation4], 128, 128, 8
    $region45: #{tpu_custom_call.1} parent=1 // pred_fallthru
      _
    // Predicated region
    $region46: #{tpu_custom_call.1} parent=1 // pred_check
      _
    $region47: #{tpu_custom_call.1} parent=1 // pred_check_branch
      %1823 = sbr.rel (0) target = $region49
    $region48: #{tpu_custom_call.1} parent=1 // pred_region
      %s1825 = ssub.s32 64, 64
      %1826 = vsyncadd [#allocation12], %s1825
      %s1827 = sshll.u32 [#allocation11], 4
      %s1828 = int_to_ptr.vmem [resolvable:$true] %s1827
      %1833 = dma.vmem_to_hbm [thread:$0]  %s1828, 64, %s7, [#allocation12], 16, 16, 1
    $region49: #{tpu_custom_call.1} parent=1 // pred_fallthru
      _
    // Predicated region
    $region50: #{tpu_custom_call.1} parent=1 // pred_check
      _
    $region51: #{tpu_custom_call.1} parent=1 // pred_check_branch
      %1835 = sbr.rel (0) target = $region53
    $region52: #{tpu_custom_call.1} parent=1 // pred_region
      %1836 = dma.done [#allocation4], 1024
    $region53: #{tpu_custom_call.1} parent=1 // pred_fallthru
      _
    // Predicated region
    $region54: #{tpu_custom_call.1} parent=1 // pred_check
      _
    $region55: #{tpu_custom_call.1} parent=1 // pred_check_branch
      %1838 = sbr.rel (0) target = $region57
    $region56: #{tpu_custom_call.1} parent=1 // pred_region
      %1839 = dma.done [#allocation12], 64
    $region57: #{tpu_custom_call.1} parent=1 // pred_fallthru
      _
    %1840 = vsyncpa [#allocation3], 1
    %1841 = vsyncpa [#allocation6], 1
    %1842 = vsyncpa [#allocation9], 1
    %1843 = vsyncpa [#allocation4], 1
    %1844 = vsyncpa [#allocation12], 1

// kernel: tpu_custom_call.1
$region0: #{tpu_custom_call.1}
  #allocation0 [shape = 'u32[]', space=smem, size = 0x4, offset = 0x4, fixed_abs, tag = 'smem constant byte address 0x4 - core index']
  #allocation1 [shape = 'u32[144,128]{1,0:T(1,128)}', space=vmem, size = 0x12000, scoped, tag = 'internal scratch']
  %s0 = inlined_call_operand.hbm [shape: f32[4,16,128], index: 0, kind: input, shape index: {}]
  %s1 = inlined_call_operand.hbm [shape: f32[4,1,128], index: 1, kind: input, shape index: {}]
  %s2 = inlined_call_operand.hbm [shape: bf16[6,128,128], index: 2, kind: input, shape index: {}]
  %s3 = inlined_call_operand.vmem [shape: f32[6,1,128], index: 3, kind: input, shape index: {}]
  %s4 = inlined_call_operand.hbm [shape: bf16[6,128,128], index: 4, kind: input, shape index: {}]
  %s5 = inlined_call_operand.vmem [shape: f32[6,1,128], index: 5, kind: input, shape index: {}]
  %s6 = inlined_call_operand.hbm [shape: f32[4,16,128], index: 6, kind: output, shape index: {0}]
  %s7 = inlined_call_operand.hbm [shape: f32[4,1,128], index: 7, kind: output, shape index: {1}]
  %8 = xla_tuple %s6, %s7
  %s9 = sld [smem:[#allocation0]]
  $region58: #{tpu_custom_call.1} parent=0
    _
  %s11 = ssub.s32 1, %s9
  %s12 = scalar_select 0, %s11, %s9
  $region1: #{tpu_custom_call.1} parent=0
    #allocation2 [shape = 'u8[32768]{0}', space=vmem, size = 0x8000, scoped, tag = 'input window, operand 0, single buffered']
    #allocation3 [shape = 's32[1]{0}', space=sflag, size = 0x4, scoped, tag = 'scoped memory for tpu_custom_call.1']
    #allocation4 [shape = 's32[1]{0}', space=sflag, size = 0x4, scoped, tag = 'scoped memory for tpu_custom_call.1']
    #allocation5 [shape = 'u8[2048]{0}', space=vmem, size = 0x800, scoped, tag = 'input window, operand 1, single buffered']
    #allocation6 [shape = 's32[1]{0}', space=sflag, size = 0x4, scoped, tag = 'scoped memory for tpu_custom_call.1']
    #allocation7 [shape = 'u8[196608]{0}', space=vmem, size = 0x30000, scoped, tag = 'input window, operand 2, single buffered']
    #allocation8 [shape = 'u8[196608]{0}', space=vmem, size = 0x30000, scoped, tag = 'input window, operand 4, single buffered']
    #allocation9 [shape = 's32[1]{0}', space=sflag, size = 0x4, scoped, tag = 'scoped memory for tpu_custom_call.1']
    #allocation10 [shape = 'u8[32768]{0}', space=vmem, size = 0x8000, scoped, tag = 'output window, operand 0, single buffered']
    #allocation11 [shape = 'u8[2048]{0}', space=vmem, size = 0x800, scoped, tag = 'output window, operand 1, single buffered']
    #allocation12 [shape = 's32[1]{0}', space=sflag, size = 0x4, scoped, tag = 'scoped memory for tpu_custom_call.1']
    %13 = vsyncpa [#allocation3], 0
    %14 = vsyncpa [#allocation6], 0
    %15 = vsyncpa [#allocation9], 0
    %16 = vsyncpa [#allocation4], 0
    %17 = vsyncpa [#allocation12], 0
    // Predicated region
    $region2: #{tpu_custom_call.1} parent=1 // pred_check
      _
    $region3: #{tpu_custom_call.1} parent=1 // pred_check_branch
      %19 = sbr.rel (0) target = $region5
    $region4: #{tpu_custom_call.1} parent=1 // pred_region
      %s21 = ssub.s32 1024, 1024
      %22 = vsyncadd [#allocation3], %s21
      %s23 = sshll.u32 [#allocation2], 4
      %s24 = int_to_ptr.vmem [resolvable:$true] %s23
      %29 = dma.hbm_to_vmem [thread:$0]  %s0, 1024, %s24, [#allocation3], 128, 128, 8
    $region5: #{tpu_custom_call.1} parent=1 // pred_fallthru
      _
    // Predicated region
    $region6: #{tpu_custom_call.1} parent=1 // pred_check
      _
    $region7: #{tpu_custom_call.1} parent=1 // pred_check_branch
      %31 = sbr.rel (0) target = $region9
    $region8: #{tpu_custom_call.1} parent=1 // pred_region
      %s33 = ssub.s32 64, 64
      %34 = vsyncadd [#allocation6], %s33
      %s35 = sshll.u32 [#allocation5], 4
      %s36 = int_to_ptr.vmem [resolvable:$true] %s35
      %41 = dma.hbm_to_vmem [thread:$0]  %s1, 64, %s36, [#allocation6], 16, 16, 1
    $region9: #{tpu_custom_call.1} parent=1 // pred_fallthru
      _
    // Predicated region
    $region10: #{tpu_custom_call.1} parent=1 // pred_check
      _
    $region11: #{tpu_custom_call.1} parent=1 // pred_check_branch
      %43 = sbr.rel (0) target = $region13
    $region12: #{tpu_custom_call.1} parent=1 // pred_region
      %s45 = ssub.s32 6144, 6144
      %46 = vsyncadd [#allocation6], %s45
      %s47 = sshll.u32 [#allocation7], 4
      %s48 = int_to_ptr.vmem [resolvable:$true] %s47
      %53 = dma.hbm_to_vmem [thread:$0]  %s2, 6144, %s48, [#allocation6], 64, 64, 4
    $region13: #{tpu_custom_call.1} parent=1 // pred_fallthru
      _
    // Predicated region
    $region14: #{tpu_custom_call.1} parent=1 // pred_check
      _
    $region15: #{tpu_custom_call.1} parent=1 // pred_check_branch
      %55 = sbr.rel (0) target = $region17
    $region16: #{tpu_custom_call.1} parent=1 // pred_region
      _
    $region17: #{tpu_custom_call.1} parent=1 // pred_fallthru
      _
    // Predicated region
    $region18: #{tpu_custom_call.1} parent=1 // pred_check
      _
    $region19: #{tpu_custom_call.1} parent=1 // pred_check_branch
      %57 = sbr.rel (0) target = $region21
    $region20: #{tpu_custom_call.1} parent=1 // pred_region
      %s59 = ssub.s32 6144, 6144
      %60 = vsyncadd [#allocation9], %s59
      %s61 = sshll.u32 [#allocation8], 4
      %s62 = int_to_ptr.vmem [resolvable:$true] %s61
      %67 = dma.hbm_to_vmem [thread:$0]  %s4, 6144, %s62, [#allocation9], 64, 64, 4
    $region21: #{tpu_custom_call.1} parent=1 // pred_fallthru
      _
    // Predicated region
    $region22: #{tpu_custom_call.1} parent=1 // pred_check
      _
    $region23: #{tpu_custom_call.1} parent=1 // pred_check_branch
      %69 = sbr.rel (0) target = $region25
    $region24: #{tpu_custom_call.1} parent=1 // pred_region
      _
    $region25: #{tpu_custom_call.1} parent=1 // pred_fallthru
      _
    // Predicated region
    $region26: #{tpu_custom_call.1} parent=1 // pred_check
      _
    $region27: #{tpu_custom_call.1} parent=1 // pred_check_branch
      %71 = sbr.rel (0) target = $region29
    $region28: #{tpu_custom_call.1} parent=1 // pred_region
      %72 = dma.done [#allocation3], 1024
    $region29: #{tpu_custom_call.1} parent=1 // pred_fallthru
      _
    // Predicated region
    $region30: #{tpu_custom_call.1} parent=1 // pred_check
      _
    $region31: #{tpu_custom_call.1} parent=1 // pred_check_branch
      %74 = sbr.rel (0) target = $region33
    $region32: #{tpu_custom_call.1} parent=1 // pred_region
      %75 = dma.done [#allocation6], 64
    $region33: #{tpu_custom_call.1} parent=1 // pred_fallthru
      _
    // Predicated region
    $region34: #{tpu_custom_call.1} parent=1 // pred_check
      _
    $region35: #{tpu_custom_call.1} parent=1 // pred_check_branch
      %77 = sbr.rel (0) target = $region37
    $region36: #{tpu_custom_call.1} parent=1 // pred_region
      %78 = dma.done [#allocation6], 6144
    $region37: #{tpu_custom_call.1} parent=1 // pred_fallthru
      _
    // Predicated region
    $region38: #{tpu_custom_call.1} parent=1 // pred_check
      _
    $region39: #{tpu_custom_call.1} parent=1 // pred_check_branch
      %80 = sbr.rel (0) target = $region41
    $region40: #{tpu_custom_call.1} parent=1 // pred_region
      %81 = dma.done [#allocation9], 6144
    $region41: #{tpu_custom_call.1} parent=1 // pred_fallthru
      _
    %v83 = vld [vmem:[#allocation2] sm:$0xff]
    %v84 = vld [vmem:[#allocation2 + $0x8] sm:$0xff]
    %v85 = vld [vmem:[#allocation2 + $0x10] sm:$0xff]
    %v86 = vld [vmem:[#allocation2 + $0x18] sm:$0xff]
    %v87 = vld [vmem:[#allocation2 + $0x20] sm:$0xff]
    %v88 = vld [vmem:[#allocation2 + $0x28] sm:$0xff]
    %v89 = vld [vmem:[#allocation2 + $0x30] sm:$0xff]
    %v90 = vld [vmem:[#allocation2 + $0x38] sm:$0xff]
    %v91 = vld [vmem:[#allocation5] sm:$0x1]
    %v92 = vld [vmem:[#allocation5 + $0x1] sm:$0x1]
    %v93 = vld [vmem:[#allocation5 + $0x2] sm:$0x1]
    %v94 = vld [vmem:[#allocation5 + $0x3] sm:$0x1]
    %v95 = vpack.c.bf16 %v84, %v83
    %v96 = vpack.c.bf16 %v86, %v85
    %v97 = vpack.c.bf16 %v88, %v87
    %v98 = vpack.c.bf16 %v90, %v89
    %v99 = vld [vmem:[#allocation7] sm:$0xf]
    %v100 = vld [vmem:[#allocation7 + $0x4] sm:$0xf]
    %v101 = vld [vmem:[#allocation7 + $0x8] sm:$0xf]
    %v102 = vld [vmem:[#allocation7 + $0xc] sm:$0xf]
    %v103 = vld [vmem:[#allocation7 + $0x10] sm:$0xf]
    %v104 = vld [vmem:[#allocation7 + $0x14] sm:$0xf]
    %v105 = vld [vmem:[#allocation7 + $0x18] sm:$0xf]
    %v106 = vld [vmem:[#allocation7 + $0x1c] sm:$0xf]
    %v107 = vld [vmem:[#allocation7 + $0x20] sm:$0xf]
    %v108 = vld [vmem:[#allocation7 + $0x24] sm:$0xf]
    %v109 = vld [vmem:[#allocation7 + $0x28] sm:$0xf]
    %v110 = vld [vmem:[#allocation7 + $0x2c] sm:$0xf]
    %v111 = vld [vmem:[#allocation7 + $0x30] sm:$0xf]
    %v112 = vld [vmem:[#allocation7 + $0x34] sm:$0xf]
    %v113 = vld [vmem:[#allocation7 + $0x38] sm:$0xf]
    %v114 = vld [vmem:[#allocation7 + $0x3c] sm:$0xf]
    %v115 = vld [vmem:[%s3] sm:$0x1]
    %v117 = vlaneseq
    %v118 = vshrl.u32 %v117, 7
    %v119 = vsub.s32 0, %v118
    %v120 = vrot.slane %v115, %v119
    %v138 = vunpack.c.l.b16 %v99
    %v139 = vunpack.c.l.b16 %v100
    %v140 = vunpack.c.l.b16 %v101
    %v141 = vunpack.c.l.b16 %v102
    %v142 = vunpack.c.l.b16 %v103
    %v143 = vunpack.c.l.b16 %v104
    %v144 = vunpack.c.l.b16 %v105
    %v145 = vunpack.c.l.b16 %v106
    %v146 = vunpack.c.l.b16 %v107
    %v147 = vunpack.c.l.b16 %v108
    %v148 = vunpack.c.l.b16 %v109
    %v149 = vunpack.c.l.b16 %v110
    %v150 = vunpack.c.l.b16 %v111
    %v151 = vunpack.c.l.b16 %v112
    %v152 = vunpack.c.l.b16 %v113
    %v153 = vunpack.c.l.b16 %v114
    %v154 = vpack.c.b16 %v139, %v138
    %v155 = vpack.c.b16 %v141, %v140
    %v156 = vpack.c.b16 %v143, %v142
    %v157 = vpack.c.b16 %v145, %v144
    %v158 = vpack.c.b16 %v147, %v146
    %v159 = vpack.c.b16 %v149, %v148
    %v160 = vpack.c.b16 %v151, %v150
    %v161 = vpack.c.b16 %v153, %v152
    %170 = vmatprep.subr.bf16.mxu0 0
    %171 = vmatpush1.bf16.msra.mxu0 %v154
    %172 = vmatprep.subr.bf16.mxu0 0
    %173 = vmatpush1.bf16.msra.mxu0 %v155
    %174 = vmatprep.subr.bf16.mxu0 0
    %175 = vmatpush1.bf16.msra.mxu0 %v156
    %176 = vmatprep.subr.bf16.mxu0 0
    %177 = vmatpush1.bf16.msra.mxu0 %v157
    %178 = vmatprep.subr.bf16.mxu0 0
    %179 = vmatpush1.bf16.msra.mxu0 %v158
    %180 = vmatprep.subr.bf16.mxu0 0
    %181 = vmatpush1.bf16.msra.mxu0 %v159
    %182 = vmatprep.subr.bf16.mxu0 0
    %183 = vmatpush1.bf16.msra.mxu0 %v160
    %184 = vmatprep.subr.bf16.mxu0 0
    %185 = vmatpush1.bf16.msra.mxu0 %v161
    %186 = vmatprep.subr.bf16.mxu0 0
    %187 = vmatpush1.bf16.msra.mxu0 0
    %188 = vmatprep.subr.bf16.mxu0 0
    %189 = vmatpush1.bf16.msra.mxu0 0
    %190 = vmatprep.subr.bf16.mxu0 0
    %191 = vmatpush1.bf16.msra.mxu0 0
    %192 = vmatprep.subr.bf16.mxu0 0
    %193 = vmatpush1.bf16.msra.mxu0 0
    %194 = vmatprep.subr.bf16.mxu0 0
    %195 = vmatpush1.bf16.msra.mxu0 0
    %196 = vmatprep.subr.bf16.mxu0 0
    %197 = vmatpush1.bf16.msra.mxu0 0
    %198 = vmatprep.subr.bf16.mxu0 0
    %199 = vmatpush1.bf16.msra.mxu0 0
    %200 = vmatprep.subr.bf16.mxu0 0
    %201 = vmatpush1.bf16.msra.mxu0 0
    %202 = vmatprep.mubr.bf16.mxu0 0
    %203 = vmatmul.mubr.bf16.gmra.mrb[0].mxu0 %v95
    %v204 = vpop.f32.mrb[0].mxu0
    %v205 = vadd.f32 %v120, %v204
    %v206 = vpop.f32.mrb[0].mxu0
    %v207 = vpop.f32.mrb[0].mxu0
    %v208 = vadd.f32 %v120, %v207
    %v209 = vpop.f32.mrb[0].mxu0
    %210 = vmatprep.mubr.bf16.mxu0 0
    %211 = vmatmul.mubr.bf16.gmra.mrb[0].mxu0 %v96
    %v212 = vpop.f32.mrb[0].mxu0
    %v213 = vadd.f32 %v120, %v212
    %v214 = vpop.f32.mrb[0].mxu0
    %v215 = vpop.f32.mrb[0].mxu0
    %v216 = vadd.f32 %v120, %v215
    %v217 = vpop.f32.mrb[0].mxu0
    %218 = vmatprep.mubr.bf16.mxu0 0
    %219 = vmatmul.mubr.bf16.gmra.mrb[0].mxu0 %v97
    %v220 = vpop.f32.mrb[0].mxu0
    %v221 = vadd.f32 %v120, %v220
    %v222 = vpop.f32.mrb[0].mxu0
    %v223 = vpop.f32.mrb[0].mxu0
    %v224 = vadd.f32 %v120, %v223
    %v225 = vpop.f32.mrb[0].mxu0
    %226 = vmatprep.mubr.bf16.mxu0 0
    %227 = vmatmul.mubr.bf16.gmra.mrb[0].mxu0 %v98
    %v228 = vpop.f32.mrb[0].mxu0
    %v229 = vadd.f32 %v120, %v228
    %v230 = vpop.f32.mrb[0].mxu0
    %v231 = vpop.f32.mrb[0].mxu0
    %v232 = vadd.f32 %v120, %v231
    %v233 = vpop.f32.mrb[0].mxu0
    %234 = vdwg.mxu0
    %v235 = vmax.f32 %v205, 0.0
    %v236 = vmax.f32 %v208, 0.0
    %v237 = vmax.f32 %v213, 0.0
    %v238 = vmax.f32 %v216, 0.0
    %v239 = vmax.f32 %v221, 0.0
    %v240 = vmax.f32 %v224, 0.0
    %v241 = vmax.f32 %v229, 0.0
    %v242 = vmax.f32 %v232, 0.0
    %v243 = vpack.c.bf16 %v236, %v235
    %v244 = vpack.c.bf16 %v238, %v237
    %v245 = vpack.c.bf16 %v240, %v239
    %v246 = vpack.c.bf16 %v242, %v241
    %s247 = scalar_lea.vmem [#allocation7], 64
    %v248 = vld [vmem:[%s247] sm:$0xf]
    %v249 = vld [vmem:[%s247 + $0x4] sm:$0xf]
    %v250 = vld [vmem:[%s247 + $0x8] sm:$0xf]
    %v251 = vld [vmem:[%s247 + $0xc] sm:$0xf]
    %v252 = vld [vmem:[%s247 + $0x10] sm:$0xf]
    %v253 = vld [vmem:[%s247 + $0x14] sm:$0xf]
    %v254 = vld [vmem:[%s247 + $0x18] sm:$0xf]
    %v255 = vld [vmem:[%s247 + $0x1c] sm:$0xf]
    %v256 = vld [vmem:[%s247 + $0x20] sm:$0xf]
    %v257 = vld [vmem:[%s247 + $0x24] sm:$0xf]
    %v258 = vld [vmem:[%s247 + $0x28] sm:$0xf]
    %v259 = vld [vmem:[%s247 + $0x2c] sm:$0xf]
    %v260 = vld [vmem:[%s247 + $0x30] sm:$0xf]
    %v261 = vld [vmem:[%s247 + $0x34] sm:$0xf]
    %v262 = vld [vmem:[%s247 + $0x38] sm:$0xf]
    %v263 = vld [vmem:[%s247 + $0x3c] sm:$0xf]
    %s264 = scalar_lea.vmem %s3, 1
    %v265 = vld [vmem:[%s264] sm:$0x1]
    %v267 = vlaneseq
    %v268 = vshrl.u32 %v267, 7
    %v269 = vsub.s32 0, %v268
    %v270 = vrot.slane %v265, %v269
    %v288 = vunpack.c.l.b16 %v248
    %v289 = vunpack.c.l.b16 %v249
    %v290 = vunpack.c.l.b16 %v250
    %v291 = vunpack.c.l.b16 %v251
    %v292 = vunpack.c.l.b16 %v252
    %v293 = vunpack.c.l.b16 %v253
    %v294 = vunpack.c.l.b16 %v254
    %v295 = vunpack.c.l.b16 %v255
    %v296 = vunpack.c.l.b16 %v256
    %v297 = vunpack.c.l.b16 %v257
    %v298 = vunpack.c.l.b16 %v258
    %v299 = vunpack.c.l.b16 %v259
    %v300 = vunpack.c.l.b16 %v260
    %v301 = vunpack.c.l.b16 %v261
    %v302 = vunpack.c.l.b16 %v262
    %v303 = vunpack.c.l.b16 %v263
    %v304 = vpack.c.b16 %v289, %v288
    %v305 = vpack.c.b16 %v291, %v290
    %v306 = vpack.c.b16 %v293, %v292
    %v307 = vpack.c.b16 %v295, %v294
    %v308 = vpack.c.b16 %v297, %v296
    %v309 = vpack.c.b16 %v299, %v298
    %v310 = vpack.c.b16 %v301, %v300
    %v311 = vpack.c.b16 %v303, %v302
    %320 = vmatprep.subr.bf16.mxu0 0
    %321 = vmatpush1.bf16.msra.mxu0 %v304
    %322 = vmatprep.subr.bf16.mxu0 0
    %323 = vmatpush1.bf16.msra.mxu0 %v305
    %324 = vmatprep.subr.bf16.mxu0 0
    %325 = vmatpush1.bf16.msra.mxu0 %v306
    %326 = vmatprep.subr.bf16.mxu0 0
    %327 = vmatpush1.bf16.msra.mxu0 %v307
    %328 = vmatprep.subr.bf16.mxu0 0
    %329 = vmatpush1.bf16.msra.mxu0 %v308
    %330 = vmatprep.subr.bf16.mxu0 0
    %331 = vmatpush1.bf16.msra.mxu0 %v309
    %332 = vmatprep.subr.bf16.mxu0 0
    %333 = vmatpush1.bf16.msra.mxu0 %v310
    %334 = vmatprep.subr.bf16.mxu0 0
    %335 = vmatpush1.bf16.msra.mxu0 %v311
    %336 = vmatprep.subr.bf16.mxu0 0
    %337 = vmatpush1.bf16.msra.mxu0 0
    %338 = vmatprep.subr.bf16.mxu0 0
    %339 = vmatpush1.bf16.msra.mxu0 0
    %340 = vmatprep.subr.bf16.mxu0 0
    %341 = vmatpush1.bf16.msra.mxu0 0
    %342 = vmatprep.subr.bf16.mxu0 0
    %343 = vmatpush1.bf16.msra.mxu0 0
    %344 = vmatprep.subr.bf16.mxu0 0
    %345 = vmatpush1.bf16.msra.mxu0 0
    %346 = vmatprep.subr.bf16.mxu0 0
    %347 = vmatpush1.bf16.msra.mxu0 0
    %348 = vmatprep.subr.bf16.mxu0 0
    %349 = vmatpush1.bf16.msra.mxu0 0
    %350 = vmatprep.subr.bf16.mxu0 0
    %351 = vmatpush1.bf16.msra.mxu0 0
    %352 = vmatprep.mubr.bf16.mxu0 0
    %353 = vmatmul.mubr.bf16.gmra.mrb[0].mxu0 %v243
    %v354 = vpop.f32.mrb[0].mxu0
    %v355 = vadd.f32 %v270, %v354
    %v356 = vpop.f32.mrb[0].mxu0
    %v357 = vpop.f32.mrb[0].mxu0
    %v358 = vadd.f32 %v270, %v357
    %v359 = vpop.f32.mrb[0].mxu0
    %360 = vmatprep.mubr.bf16.mxu0 0
    %361 = vmatmul.mubr.bf16.gmra.mrb[0].mxu0 %v244
    %v362 = vpop.f32.mrb[0].mxu0
    %v363 = vadd.f32 %v270, %v362
    %v364 = vpop.f32.mrb[0].mxu0
    %v365 = vpop.f32.mrb[0].mxu0
    %v366 = vadd.f32 %v270, %v365
    %v367 = vpop.f32.mrb[0].mxu0
    %368 = vmatprep.mubr.bf16.mxu0 0
    %369 = vmatmul.mubr.bf16.gmra.mrb[0].mxu0 %v245
    %v370 = vpop.f32.mrb[0].mxu0
    %v371 = vadd.f32 %v270, %v370
    %v372 = vpop.f32.mrb[0].mxu0
    %v373 = vpop.f32.mrb[0].mxu0
    %v374 = vadd.f32 %v270, %v373
    %v375 = vpop.f32.mrb[0].mxu0
    %376 = vmatprep.mubr.bf16.mxu0 0
    %377 = vmatmul.mubr.bf16.gmra.mrb[0].mxu0 %v246
    %v378 = vpop.f32.mrb[0].mxu0
    %v379 = vadd.f32 %v270, %v378
    %v380 = vpop.f32.mrb[0].mxu0
    %v381 = vpop.f32.mrb[0].mxu0
    %v382 = vadd.f32 %v270, %v381
    %v383 = vpop.f32.mrb[0].mxu0
    %384 = vdwg.mxu0
    %v389 = vlaneseq
    %v390 = vshrl.u32 %v389, 7
    %v391 = vsub.s32 0, %v390
    %v392 = vrot.slane %v91, %v391
    %v393 = vlaneseq
    %v394 = vshrl.u32 %v393, 7
    %v395 = vsub.s32 0, %v394
    %v396 = vrot.slane %v92, %v395
    %v397 = vlaneseq
    %v398 = vshrl.u32 %v397, 7
    %v399 = vsub.s32 0, %v398
    %v400 = vrot.slane %v93, %v399
    %v401 = vlaneseq
    %v402 = vshrl.u32 %v401, 7
    %v403 = vsub.s32 0, %v402
    %v404 = vrot.slane %v94, %v403
    %v409 = vmul.f32 %v355, %v392
    %v410 = vmul.f32 %v358, %v392
    %v411 = vmul.f32 %v363, %v396
    %v412 = vmul.f32 %v366, %v396
    %v413 = vmul.f32 %v371, %v400
    %v414 = vmul.f32 %v374, %v400
    %v415 = vmul.f32 %v379, %v404
    %v416 = vmul.f32 %v382, %v404
    %v417 = vmax.f32 %v409, %v410
    %v418 = vrot.slane %v417, 4
    %v419 = vmax.f32 %v417, %v418
    %v420 = vrot.slane %v419, 2
    %v421 = vmax.f32 %v419, %v420
    %v422 = vrot.slane %v421, 1
    %v423 = vmax.f32 %v421, %v422
    %v424 = vmax.f32 %v411, %v412
    %v425 = vrot.slane %v424, 4
    %v426 = vmax.f32 %v424, %v425
    %v427 = vrot.slane %v426, 2
    %v428 = vmax.f32 %v426, %v427
    %v429 = vrot.slane %v428, 1
    %v430 = vmax.f32 %v428, %v429
    %v431 = vmax.f32 %v413, %v414
    %v432 = vrot.slane %v431, 4
    %v433 = vmax.f32 %v431, %v432
    %v434 = vrot.slane %v433, 2
    %v435 = vmax.f32 %v433, %v434
    %v436 = vrot.slane %v435, 1
    %v437 = vmax.f32 %v435, %v436
    %v438 = vmax.f32 %v415, %v416
    %v439 = vrot.slane %v438, 4
    %v440 = vmax.f32 %v438, %v439
    %v441 = vrot.slane %v440, 2
    %v442 = vmax.f32 %v440, %v441
    %v443 = vrot.slane %v442, 1
    %v444 = vmax.f32 %v442, %v443
    %v445 = vmul.f32 %v83, 0.5
    %v446 = vmul.f32 %v84, 0.5
    %v447 = vmul.f32 %v85, 0.5
    %v448 = vmul.f32 %v86, 0.5
    %v449 = vmul.f32 %v87, 0.5
    %v450 = vmul.f32 %v88, 0.5
    %v451 = vmul.f32 %v89, 0.5
    %v452 = vmul.f32 %v90, 0.5
    %v453 = vmul.f32 %v409, 0.5
    %v454 = vmul.f32 %v410, 0.5
    %v455 = vmul.f32 %v411, 0.5
    %v456 = vmul.f32 %v412, 0.5
    %v457 = vmul.f32 %v413, 0.5
    %v458 = vmul.f32 %v414, 0.5
    %v459 = vmul.f32 %v415, 0.5
    %v460 = vmul.f32 %v416, 0.5
    %v461 = vadd.f32 %v445, %v453
    %v462 = vadd.f32 %v446, %v454
    %v463 = vadd.f32 %v447, %v455
    %v464 = vadd.f32 %v448, %v456
    %v465 = vadd.f32 %v449, %v457
    %v466 = vadd.f32 %v450, %v458
    %v467 = vadd.f32 %v451, %v459
    %v468 = vadd.f32 %v452, %v460
    %v469 = vmul.f32 %v91, 0.5
    %v470 = vmul.f32 %v92, 0.5
    %v471 = vmul.f32 %v93, 0.5
    %v472 = vmul.f32 %v94, 0.5
    %v473 = vmul.f32 %v423, 0.5
    %v474 = vmul.f32 %v430, 0.5
    %v475 = vmul.f32 %v437, 0.5
    %v476 = vmul.f32 %v444, 0.5
    %v477 = vadd.f32 %v469, %v473
    %v478 = vadd.f32 %v470, %v474
    %v479 = vadd.f32 %v471, %v475
    %v480 = vadd.f32 %v472, %v476
    %v481 = vpack.c.bf16 %v462, %v461
    %v482 = vpack.c.bf16 %v464, %v463
    %v483 = vpack.c.bf16 %v466, %v465
    %v484 = vpack.c.bf16 %v468, %v467
    %s485 = scalar_lea.vmem [#allocation7], 128
    %v486 = vld [vmem:[%s485] sm:$0xf]
    %v487 = vld [vmem:[%s485 + $0x4] sm:$0xf]
    %v488 = vld [vmem:[%s485 + $0x8] sm:$0xf]
    %v489 = vld [vmem:[%s485 + $0xc] sm:$0xf]
    %v490 = vld [vmem:[%s485 + $0x10] sm:$0xf]
    %v491 = vld [vmem:[%s485 + $0x14] sm:$0xf]
    %v492 = vld [vmem:[%s485 + $0x18] sm:$0xf]
    %v493 = vld [vmem:[%s485 + $0x1c] sm:$0xf]
    %v494 = vld [vmem:[%s485 + $0x20] sm:$0xf]
    %v495 = vld [vmem:[%s485 + $0x24] sm:$0xf]
    %v496 = vld [vmem:[%s485 + $0x28] sm:$0xf]
    %v497 = vld [vmem:[%s485 + $0x2c] sm:$0xf]
    %v498 = vld [vmem:[%s485 + $0x30] sm:$0xf]
    %v499 = vld [vmem:[%s485 + $0x34] sm:$0xf]
    %v500 = vld [vmem:[%s485 + $0x38] sm:$0xf]
    %v501 = vld [vmem:[%s485 + $0x3c] sm:$0xf]
    %s502 = scalar_lea.vmem %s3, 2
    %v503 = vld [vmem:[%s502] sm:$0x1]
    %v505 = vlaneseq
    %v506 = vshrl.u32 %v505, 7
    %v507 = vsub.s32 0, %v506
    %v508 = vrot.slane %v503, %v507
    %v526 = vunpack.c.l.b16 %v486
    %v527 = vunpack.c.l.b16 %v487
    %v528 = vunpack.c.l.b16 %v488
    %v529 = vunpack.c.l.b16 %v489
    %v530 = vunpack.c.l.b16 %v490
    %v531 = vunpack.c.l.b16 %v491
    %v532 = vunpack.c.l.b16 %v492
    %v533 = vunpack.c.l.b16 %v493
    %v534 = vunpack.c.l.b16 %v494
    %v535 = vunpack.c.l.b16 %v495
    %v536 = vunpack.c.l.b16 %v496
    %v537 = vunpack.c.l.b16 %v497
    %v538 = vunpack.c.l.b16 %v498
    %v539 = vunpack.c.l.b16 %v499
    %v540 = vunpack.c.l.b16 %v500
    %v541 = vunpack.c.l.b16 %v501
    %v542 = vpack.c.b16 %v527, %v526
    %v543 = vpack.c.b16 %v529, %v528
    %v544 = vpack.c.b16 %v531, %v530
    %v545 = vpack.c.b16 %v533, %v532
    %v546 = vpack.c.b16 %v535, %v534
    %v547 = vpack.c.b16 %v537, %v536
    %v548 = vpack.c.b16 %v539, %v538
    %v549 = vpack.c.b16 %v541, %v540
    %558 = vmatprep.subr.bf16.mxu0 0
    %559 = vmatpush1.bf16.msra.mxu0 %v542
    %560 = vmatprep.subr.bf16.mxu0 0
    %561 = vmatpush1.bf16.msra.mxu0 %v543
    %562 = vmatprep.subr.bf16.mxu0 0
    %563 = vmatpush1.bf16.msra.mxu0 %v544
    %564 = vmatprep.subr.bf16.mxu0 0
    %565 = vmatpush1.bf16.msra.mxu0 %v545
    %566 = vmatprep.subr.bf16.mxu0 0
    %567 = vmatpush1.bf16.msra.mxu0 %v546
    %568 = vmatprep.subr.bf16.mxu0 0
    %569 = vmatpush1.bf16.msra.mxu0 %v547
    %570 = vmatprep.subr.bf16.mxu0 0
    %571 = vmatpush1.bf16.msra.mxu0 %v548
    %572 = vmatprep.subr.bf16.mxu0 0
    %573 = vmatpush1.bf16.msra.mxu0 %v549
    %574 = vmatprep.subr.bf16.mxu0 0
    %575 = vmatpush1.bf16.msra.mxu0 0
    %576 = vmatprep.subr.bf16.mxu0 0
    %577 = vmatpush1.bf16.msra.mxu0 0
    %578 = vmatprep.subr.bf16.mxu0 0
    %579 = vmatpush1.bf16.msra.mxu0 0
    %580 = vmatprep.subr.bf16.mxu0 0
    %581 = vmatpush1.bf16.msra.mxu0 0
    %582 = vmatprep.subr.bf16.mxu0 0
    %583 = vmatpush1.bf16.msra.mxu0 0
    %584 = vmatprep.subr.bf16.mxu0 0
    %585 = vmatpush1.bf16.msra.mxu0 0
    %586 = vmatprep.subr.bf16.mxu0 0
    %587 = vmatpush1.bf16.msra.mxu0 0
    %588 = vmatprep.subr.bf16.mxu0 0
    %589 = vmatpush1.bf16.msra.mxu0 0
    %590 = vmatprep.mubr.bf16.mxu0 0
    %591 = vmatmul.mubr.bf16.gmra.mrb[0].mxu0 %v481
    %v592 = vpop.f32.mrb[0].mxu0
    %v593 = vadd.f32 %v508, %v592
    %v594 = vpop.f32.mrb[0].mxu0
    %v595 = vpop.f32.mrb[0].mxu0
    %v596 = vadd.f32 %v508, %v595
    %v597 = vpop.f32.mrb[0].mxu0
    %598 = vmatprep.mubr.bf16.mxu0 0
    %599 = vmatmul.mubr.bf16.gmra.mrb[0].mxu0 %v482
    %v600 = vpop.f32.mrb[0].mxu0
    %v601 = vadd.f32 %v508, %v600
    %v602 = vpop.f32.mrb[0].mxu0
    %v603 = vpop.f32.mrb[0].mxu0
    %v604 = vadd.f32 %v508, %v603
    %v605 = vpop.f32.mrb[0].mxu0
    %606 = vmatprep.mubr.bf16.mxu0 0
    %607 = vmatmul.mubr.bf16.gmra.mrb[0].mxu0 %v483
    %v608 = vpop.f32.mrb[0].mxu0
    %v609 = vadd.f32 %v508, %v608
    %v610 = vpop.f32.mrb[0].mxu0
    %v611 = vpop.f32.mrb[0].mxu0
    %v612 = vadd.f32 %v508, %v611
    %v613 = vpop.f32.mrb[0].mxu0
    %614 = vmatprep.mubr.bf16.mxu0 0
    %615 = vmatmul.mubr.bf16.gmra.mrb[0].mxu0 %v484
    %v616 = vpop.f32.mrb[0].mxu0
    %v617 = vadd.f32 %v508, %v616
    %v618 = vpop.f32.mrb[0].mxu0
    %v619 = vpop.f32.mrb[0].mxu0
    %v620 = vadd.f32 %v508, %v619
    %v621 = vpop.f32.mrb[0].mxu0
    %622 = vdwg.mxu0
    %v623 = vmax.f32 %v593, 0.0
    %v624 = vmax.f32 %v596, 0.0
    %v625 = vmax.f32 %v601, 0.0
    %v626 = vmax.f32 %v604, 0.0
    %v627 = vmax.f32 %v609, 0.0
    %v628 = vmax.f32 %v612, 0.0
    %v629 = vmax.f32 %v617, 0.0
    %v630 = vmax.f32 %v620, 0.0
    %v631 = vpack.c.bf16 %v624, %v623
    %v632 = vpack.c.bf16 %v626, %v625
    %v633 = vpack.c.bf16 %v628, %v627
    %v634 = vpack.c.bf16 %v630, %v629
    %s635 = scalar_lea.vmem [#allocation7], 192
    %v636 = vld [vmem:[%s635] sm:$0xf]
    %v637 = vld [vmem:[%s635 + $0x4] sm:$0xf]
    %v638 = vld [vmem:[%s635 + $0x8] sm:$0xf]
    %v639 = vld [vmem:[%s635 + $0xc] sm:$0xf]
    %v640 = vld [vmem:[%s635 + $0x10] sm:$0xf]
    %v641 = vld [vmem:[%s635 + $0x14] sm:$0xf]
    %v642 = vld [vmem:[%s635 + $0x18] sm:$0xf]
    %v643 = vld [vmem:[%s635 + $0x1c] sm:$0xf]
    %v644 = vld [vmem:[%s635 + $0x20] sm:$0xf]
    %v645 = vld [vmem:[%s635 + $0x24] sm:$0xf]
    %v646 = vld [vmem:[%s635 + $0x28] sm:$0xf]
    %v647 = vld [vmem:[%s635 + $0x2c] sm:$0xf]
    %v648 = vld [vmem:[%s635 + $0x30] sm:$0xf]
    %v649 = vld [vmem:[%s635 + $0x34] sm:$0xf]
    %v650 = vld [vmem:[%s635 + $0x38] sm:$0xf]
    %v651 = vld [vmem:[%s635 + $0x3c] sm:$0xf]
    %s652 = scalar_lea.vmem %s3, 3
    %v653 = vld [vmem:[%s652] sm:$0x1]
    %v655 = vlaneseq
    %v656 = vshrl.u32 %v655, 7
    %v657 = vsub.s32 0, %v656
    %v658 = vrot.slane %v653, %v657
    %v676 = vunpack.c.l.b16 %v636
    %v677 = vunpack.c.l.b16 %v637
    %v678 = vunpack.c.l.b16 %v638
    %v679 = vunpack.c.l.b16 %v639
    %v680 = vunpack.c.l.b16 %v640
    %v681 = vunpack.c.l.b16 %v641
    %v682 = vunpack.c.l.b16 %v642
    %v683 = vunpack.c.l.b16 %v643
    %v684 = vunpack.c.l.b16 %v644
    %v685 = vunpack.c.l.b16 %v645
    %v686 = vunpack.c.l.b16 %v646
    %v687 = vunpack.c.l.b16 %v647
    %v688 = vunpack.c.l.b16 %v648
    %v689 = vunpack.c.l.b16 %v649
    %v690 = vunpack.c.l.b16 %v650
    %v691 = vunpack.c.l.b16 %v651
    %v692 = vpack.c.b16 %v677, %v676
    %v693 = vpack.c.b16 %v679, %v678
    %v694 = vpack.c.b16 %v681, %v680
    %v695 = vpack.c.b16 %v683, %v682
    %v696 = vpack.c.b16 %v685, %v684
    %v697 = vpack.c.b16 %v687, %v686
    %v698 = vpack.c.b16 %v689, %v688
    %v699 = vpack.c.b16 %v691, %v690
    %708 = vmatprep.subr.bf16.mxu0 0
    %709 = vmatpush1.bf16.msra.mxu0 %v692
    %710 = vmatprep.subr.bf16.mxu0 0
    %711 = vmatpush1.bf16.msra.mxu0 %v693
    %712 = vmatprep.subr.bf16.mxu0 0
    %713 = vmatpush1.bf16.msra.mxu0 %v694
    %714 = vmatprep.subr.bf16.mxu0 0
    %715 = vmatpush1.bf16.msra.mxu0 %v695
    %716 = vmatprep.subr.bf16.mxu0 0
    %717 = vmatpush1.bf16.msra.mxu0 %v696
    %718 = vmatprep.subr.bf16.mxu0 0
    %719 = vmatpush1.bf16.msra.mxu0 %v697
    %720 = vmatprep.subr.bf16.mxu0 0
    %721 = vmatpush1.bf16.msra.mxu0 %v698
    %722 = vmatprep.subr.bf16.mxu0 0
    %723 = vmatpush1.bf16.msra.mxu0 %v699
    %724 = vmatprep.subr.bf16.mxu0 0
    %725 = vmatpush1.bf16.msra.mxu0 0
    %726 = vmatprep.subr.bf16.mxu0 0
    %727 = vmatpush1.bf16.msra.mxu0 0
    %728 = vmatprep.subr.bf16.mxu0 0
    %729 = vmatpush1.bf16.msra.mxu0 0
    %730 = vmatprep.subr.bf16.mxu0 0
    %731 = vmatpush1.bf16.msra.mxu0 0
    %732 = vmatprep.subr.bf16.mxu0 0
    %733 = vmatpush1.bf16.msra.mxu0 0
    %734 = vmatprep.subr.bf16.mxu0 0
    %735 = vmatpush1.bf16.msra.mxu0 0
    %736 = vmatprep.subr.bf16.mxu0 0
    %737 = vmatpush1.bf16.msra.mxu0 0
    %738 = vmatprep.subr.bf16.mxu0 0
    %739 = vmatpush1.bf16.msra.mxu0 0
    %740 = vmatprep.mubr.bf16.mxu0 0
    %741 = vmatmul.mubr.bf16.gmra.mrb[0].mxu0 %v631
    %v742 = vpop.f32.mrb[0].mxu0
    %v743 = vadd.f32 %v658, %v742
    %v744 = vpop.f32.mrb[0].mxu0
    %v745 = vpop.f32.mrb[0].mxu0
    %v746 = vadd.f32 %v658, %v745
    %v747 = vpop.f32.mrb[0].mxu0
    %748 = vmatprep.mubr.bf16.mxu0 0
    %749 = vmatmul.mubr.bf16.gmra.mrb[0].mxu0 %v632
    %v750 = vpop.f32.mrb[0].mxu0
    %v751 = vadd.f32 %v658, %v750
    %v752 = vpop.f32.mrb[0].mxu0
    %v753 = vpop.f32.mrb[0].mxu0
    %v754 = vadd.f32 %v658, %v753
    %v755 = vpop.f32.mrb[0].mxu0
    %756 = vmatprep.mubr.bf16.mxu0 0
    %757 = vmatmul.mubr.bf16.gmra.mrb[0].mxu0 %v633
    %v758 = vpop.f32.mrb[0].mxu0
    %v759 = vadd.f32 %v658, %v758
    %v760 = vpop.f32.mrb[0].mxu0
    %v761 = vpop.f32.mrb[0].mxu0
    %v762 = vadd.f32 %v658, %v761
    %v763 = vpop.f32.mrb[0].mxu0
    %764 = vmatprep.mubr.bf16.mxu0 0
    %765 = vmatmul.mubr.bf16.gmra.mrb[0].mxu0 %v634
    %v766 = vpop.f32.mrb[0].mxu0
    %v767 = vadd.f32 %v658, %v766
    %v768 = vpop.f32.mrb[0].mxu0
    %v769 = vpop.f32.mrb[0].mxu0
    %v770 = vadd.f32 %v658, %v769
    %v771 = vpop.f32.mrb[0].mxu0
    %772 = vdwg.mxu0
    %v773 = vpack.c.bf16 %v477, %v477
    %v774 = vpack.c.bf16 %v478, %v478
    %v775 = vpack.c.bf16 %v479, %v479
    %v776 = vpack.c.bf16 %v480, %v480
    %s777 = scalar_lea.vmem [#allocation8], 128
    %v778 = vld [vmem:[%s777] sm:$0xf]
    %v779 = vld [vmem:[%s777 + $0x4] sm:$0xf]
    %v780 = vld [vmem:[%s777 + $0x8] sm:$0xf]
    %v781 = vld [vmem:[%s777 + $0xc] sm:$0xf]
    %v782 = vld [vmem:[%s777 + $0x10] sm:$0xf]
    %v783 = vld [vmem:[%s777 + $0x14] sm:$0xf]
    %v784 = vld [vmem:[%s777 + $0x18] sm:$0xf]
    %v785 = vld [vmem:[%s777 + $0x1c] sm:$0xf]
    %v786 = vld [vmem:[%s777 + $0x20] sm:$0xf]
    %v787 = vld [vmem:[%s777 + $0x24] sm:$0xf]
    %v788 = vld [vmem:[%s777 + $0x28] sm:$0xf]
    %v789 = vld [vmem:[%s777 + $0x2c] sm:$0xf]
    %v790 = vld [vmem:[%s777 + $0x30] sm:$0xf]
    %v791 = vld [vmem:[%s777 + $0x34] sm:$0xf]
    %v792 = vld [vmem:[%s777 + $0x38] sm:$0xf]
    %v793 = vld [vmem:[%s777 + $0x3c] sm:$0xf]
    %s794 = scalar_lea.vmem %s5, 2
    %v795 = vld [vmem:[%s794] sm:$0x1]
    %v797 = vlaneseq
    %v798 = vshrl.u32 %v797, 7
    %v799 = vsub.s32 0, %v798
    %v800 = vrot.slane %v795, %v799
    %v806 = vunpack.c.l.b16 %v773
    %v807 = vunpack.c.l.b16 %v774
    %v808 = vunpack.c.l.b16 %v775
    %v809 = vunpack.c.l.b16 %v776
    %v810 = vrot.slane %v807, 7
    %vm811 = vcmask 1041409
    %v812 = vsel %vm811, %v810, %v806
    %v813 = vrot.slane %v808, 6
    %vm814 = vcmask 1042434
    %v815 = vsel %vm814, %v813, %v812
    %v816 = vrot.slane %v809, 5
    %vm817 = vcmask 1043459
    %v818 = vsel %vm817, %v816, %v815
    %v819 = vpack.c.b16 %v818, %v818
    %v837 = vunpack.c.l.b16 %v778
    %v838 = vunpack.c.l.b16 %v779
    %v839 = vunpack.c.l.b16 %v780
    %v840 = vunpack.c.l.b16 %v781
    %v841 = vunpack.c.l.b16 %v782
    %v842 = vunpack.c.l.b16 %v783
    %v843 = vunpack.c.l.b16 %v784
    %v844 = vunpack.c.l.b16 %v785
    %v845 = vunpack.c.l.b16 %v786
    %v846 = vunpack.c.l.b16 %v787
    %v847 = vunpack.c.l.b16 %v788
    %v848 = vunpack.c.l.b16 %v789
    %v849 = vunpack.c.l.b16 %v790
    %v850 = vunpack.c.l.b16 %v791
    %v851 = vunpack.c.l.b16 %v792
    %v852 = vunpack.c.l.b16 %v793
    %v853 = vpack.c.b16 %v838, %v837
    %v854 = vpack.c.b16 %v840, %v839
    %v855 = vpack.c.b16 %v842, %v841
    %v856 = vpack.c.b16 %v844, %v843
    %v857 = vpack.c.b16 %v846, %v845
    %v858 = vpack.c.b16 %v848, %v847
    %v859 = vpack.c.b16 %v850, %v849
    %v860 = vpack.c.b16 %v852, %v851
    %869 = vmatprep.subr.bf16.mxu0 0
    %870 = vmatpush1.bf16.msra.mxu0 %v853
    %871 = vmatprep.subr.bf16.mxu0 0
    %872 = vmatpush1.bf16.msra.mxu0 %v854
    %873 = vmatprep.subr.bf16.mxu0 0
    %874 = vmatpush1.bf16.msra.mxu0 %v855
    %875 = vmatprep.subr.bf16.mxu0 0
    %876 = vmatpush1.bf16.msra.mxu0 %v856
    %877 = vmatprep.subr.bf16.mxu0 0
    %878 = vmatpush1.bf16.msra.mxu0 %v857
    %879 = vmatprep.subr.bf16.mxu0 0
    %880 = vmatpush1.bf16.msra.mxu0 %v858
    %881 = vmatprep.subr.bf16.mxu0 0
    %882 = vmatpush1.bf16.msra.mxu0 %v859
    %883 = vmatprep.subr.bf16.mxu0 0
    %884 = vmatpush1.bf16.msra.mxu0 %v860
    %885 = vmatprep.subr.bf16.mxu0 0
    %886 = vmatpush1.bf16.msra.mxu0 0
    %887 = vmatprep.subr.bf16.mxu0 0
    %888 = vmatpush1.bf16.msra.mxu0 0
    %889 = vmatprep.subr.bf16.mxu0 0
    %890 = vmatpush1.bf16.msra.mxu0 0
    %891 = vmatprep.subr.bf16.mxu0 0
    %892 = vmatpush1.bf16.msra.mxu0 0
    %893 = vmatprep.subr.bf16.mxu0 0
    %894 = vmatpush1.bf16.msra.mxu0 0
    %895 = vmatprep.subr.bf16.mxu0 0
    %896 = vmatpush1.bf16.msra.mxu0 0
    %897 = vmatprep.subr.bf16.mxu0 0
    %898 = vmatpush1.bf16.msra.mxu0 0
    %899 = vmatprep.subr.bf16.mxu0 0
    %900 = vmatpush1.bf16.msra.mxu0 0
    %901 = vmatprep.mubr.bf16.mxu0 0
    %902 = vmatmul.mubr.bf16.gmra.mrb[0].mxu0 %v819
    %v903 = vpop.f32.mrb[0].mxu0
    %v904 = vadd.f32 %v800, %v903
    %v905 = vpop.f32.mrb[0].mxu0
    %v906 = vpop.f32.mrb[0].mxu0
    %v907 = vpop.f32.mrb[0].mxu0
    %908 = vdwg.mxu0
    %v909 = vmax.f32 %v904, 0.0
    %v910 = vpack.c.bf16 %v909, %v909
    %s911 = scalar_lea.vmem [#allocation8], 192
    %v912 = vld [vmem:[%s911] sm:$0xf]
    %v913 = vld [vmem:[%s911 + $0x4] sm:$0xf]
    %v914 = vld [vmem:[%s911 + $0x8] sm:$0xf]
    %v915 = vld [vmem:[%s911 + $0xc] sm:$0xf]
    %v916 = vld [vmem:[%s911 + $0x10] sm:$0xf]
    %v917 = vld [vmem:[%s911 + $0x14] sm:$0xf]
    %v918 = vld [vmem:[%s911 + $0x18] sm:$0xf]
    %v919 = vld [vmem:[%s911 + $0x1c] sm:$0xf]
    %v920 = vld [vmem:[%s911 + $0x20] sm:$0xf]
    %v921 = vld [vmem:[%s911 + $0x24] sm:$0xf]
    %v922 = vld [vmem:[%s911 + $0x28] sm:$0xf]
    %v923 = vld [vmem:[%s911 + $0x2c] sm:$0xf]
    %v924 = vld [vmem:[%s911 + $0x30] sm:$0xf]
    %v925 = vld [vmem:[%s911 + $0x34] sm:$0xf]
    %v926 = vld [vmem:[%s911 + $0x38] sm:$0xf]
    %v927 = vld [vmem:[%s911 + $0x3c] sm:$0xf]
    %s928 = scalar_lea.vmem %s5, 3
    %v929 = vld [vmem:[%s928] sm:$0x1]
    %v931 = vlaneseq
    %v932 = vshrl.u32 %v931, 7
    %v933 = vsub.s32 0, %v932
    %v934 = vrot.slane %v929, %v933
    %v952 = vunpack.c.l.b16 %v912
    %v953 = vunpack.c.l.b16 %v913
    %v954 = vunpack.c.l.b16 %v914
    %v955 = vunpack.c.l.b16 %v915
    %v956 = vunpack.c.l.b16 %v916
    %v957 = vunpack.c.l.b16 %v917
    %v958 = vunpack.c.l.b16 %v918
    %v959 = vunpack.c.l.b16 %v919
    %v960 = vunpack.c.l.b16 %v920
    %v961 = vunpack.c.l.b16 %v921
    %v962 = vunpack.c.l.b16 %v922
    %v963 = vunpack.c.l.b16 %v923
    %v964 = vunpack.c.l.b16 %v924
    %v965 = vunpack.c.l.b16 %v925
    %v966 = vunpack.c.l.b16 %v926
    %v967 = vunpack.c.l.b16 %v927
    %v968 = vpack.c.b16 %v953, %v952
    %v969 = vpack.c.b16 %v955, %v954
    %v970 = vpack.c.b16 %v957, %v956
    %v971 = vpack.c.b16 %v959, %v958
    %v972 = vpack.c.b16 %v961, %v960
    %v973 = vpack.c.b16 %v963, %v962
    %v974 = vpack.c.b16 %v965, %v964
    %v975 = vpack.c.b16 %v967, %v966
    %984 = vmatprep.subr.bf16.mxu0 0
    %985 = vmatpush1.bf16.msra.mxu0 %v968
    %986 = vmatprep.subr.bf16.mxu0 0
    %987 = vmatpush1.bf16.msra.mxu0 %v969
    %988 = vmatprep.subr.bf16.mxu0 0
    %989 = vmatpush1.bf16.msra.mxu0 %v970
    %990 = vmatprep.subr.bf16.mxu0 0
    %991 = vmatpush1.bf16.msra.mxu0 %v971
    %992 = vmatprep.subr.bf16.mxu0 0
    %993 = vmatpush1.bf16.msra.mxu0 %v972
    %994 = vmatprep.subr.bf16.mxu0 0
    %995 = vmatpush1.bf16.msra.mxu0 %v973
    %996 = vmatprep.subr.bf16.mxu0 0
    %997 = vmatpush1.bf16.msra.mxu0 %v974
    %998 = vmatprep.subr.bf16.mxu0 0
    %999 = vmatpush1.bf16.msra.mxu0 %v975
    %1000 = vmatprep.subr.bf16.mxu0 0
    %1001 = vmatpush1.bf16.msra.mxu0 0
    %1002 = vmatprep.subr.bf16.mxu0 0
    %1003 = vmatpush1.bf16.msra.mxu0 0
    %1004 = vmatprep.subr.bf16.mxu0 0
    %1005 = vmatpush1.bf16.msra.mxu0 0
    %1006 = vmatprep.subr.bf16.mxu0 0
    %1007 = vmatpush1.bf16.msra.mxu0 0
    %1008 = vmatprep.subr.bf16.mxu0 0
    %1009 = vmatpush1.bf16.msra.mxu0 0
    %1010 = vmatprep.subr.bf16.mxu0 0
    %1011 = vmatpush1.bf16.msra.mxu0 0
    %1012 = vmatprep.subr.bf16.mxu0 0
    %1013 = vmatpush1.bf16.msra.mxu0 0
    %1014 = vmatprep.subr.bf16.mxu0 0
    %1015 = vmatpush1.bf16.msra.mxu0 0
    %1016 = vmatprep.mubr.bf16.mxu0 0
    %1017 = vmatmul.mubr.bf16.gmra.mrb[0].mxu0 %v910
    %v1018 = vpop.f32.mrb[0].mxu0
    %v1019 = vadd.f32 %v934, %v1018
    %v1020 = vpop.f32.mrb[0].mxu0
    %v1021 = vpop.f32.mrb[0].mxu0
    %v1022 = vpop.f32.mrb[0].mxu0
    %1023 = vdwg.mxu0
    %v1026 = vunpack.c.l.s4 1966171168
    %v1027 = vunpack.c.0.s8 %v1026
    %v1028 = vlaneseq
    %v1029 = vshrl.u32 %v1028, 7
    %v1030 = vsub.s32 %v1027, %v1029
    %v1031 = vrot.slane %v1019, %v1030
    %v1032 = vcombine.high %v1031, %v1031
    %v1034 = vunpack.c.l.s4 1966171168
    %v1035 = vunpack.c.0.s8 %v1034
    %v1036 = vlaneseq
    %v1037 = vshrl.u32 %v1036, 7
    %v1038 = vsub.s32 %v1035, %v1037
    %v1039 = vrot.slane %v1031, %v1038
    %v1041 = vunpack.c.l.s4 1966171168
    %v1042 = vunpack.c.0.s8 %v1041
    %v1043 = vlaneseq
    %v1044 = vshrl.u32 %v1043, 7
    %v1045 = vsub.s32 %v1042, %v1044
    %v1046 = vrot.slane %v1032, %v1045
    %v1047 = vcombine.high %v1039, %v1039
    %v1048 = vcombine.high %v1046, %v1046
    %v1049 = vlaneseq
    %v1050 = vshrl.u32 %v1049, 7
    %v1051 = vsub.s32 0, %v1050
    %v1052 = vrot.slane %v1039, %v1051
    %v1053 = vlaneseq
    %v1054 = vshrl.u32 %v1053, 7
    %v1055 = vsub.s32 0, %v1054
    %v1056 = vrot.slane %v1046, %v1055
    %v1057 = vlaneseq
    %v1058 = vshrl.u32 %v1057, 7
    %v1059 = vsub.s32 0, %v1058
    %v1060 = vrot.slane %v1047, %v1059
    %v1061 = vlaneseq
    %v1062 = vshrl.u32 %v1061, 7
    %v1063 = vsub.s32 0, %v1062
    %v1064 = vrot.slane %v1048, %v1063
    %v1069 = vmul.f32 %v743, %v1052
    %v1070 = vmul.f32 %v746, %v1052
    %v1071 = vmul.f32 %v751, %v1056
    %v1072 = vmul.f32 %v754, %v1056
    %v1073 = vmul.f32 %v759, %v1060
    %v1074 = vmul.f32 %v762, %v1060
    %v1075 = vmul.f32 %v767, %v1064
    %v1076 = vmul.f32 %v770, %v1064
    %v1077 = vmax.f32 %v1069, %v1070
    %v1078 = vrot.slane %v1077, 4
    %v1079 = vmax.f32 %v1077, %v1078
    %v1080 = vrot.slane %v1079, 2
    %v1081 = vmax.f32 %v1079, %v1080
    %v1082 = vrot.slane %v1081, 1
    %v1083 = vmax.f32 %v1081, %v1082
    %v1084 = vmax.f32 %v1071, %v1072
    %v1085 = vrot.slane %v1084, 4
    %v1086 = vmax.f32 %v1084, %v1085
    %v1087 = vrot.slane %v1086, 2
    %v1088 = vmax.f32 %v1086, %v1087
    %v1089 = vrot.slane %v1088, 1
    %v1090 = vmax.f32 %v1088, %v1089
    %v1091 = vmax.f32 %v1073, %v1074
    %v1092 = vrot.slane %v1091, 4
    %v1093 = vmax.f32 %v1091, %v1092
    %v1094 = vrot.slane %v1093, 2
    %v1095 = vmax.f32 %v1093, %v1094
    %v1096 = vrot.slane %v1095, 1
    %v1097 = vmax.f32 %v1095, %v1096
    %v1098 = vmax.f32 %v1075, %v1076
    %v1099 = vrot.slane %v1098, 4
    %v1100 = vmax.f32 %v1098, %v1099
    %v1101 = vrot.slane %v1100, 2
    %v1102 = vmax.f32 %v1100, %v1101
    %v1103 = vrot.slane %v1102, 1
    %v1104 = vmax.f32 %v1102, %v1103
    %v1105 = vmul.f32 %v461, 0.5
    %v1106 = vmul.f32 %v462, 0.5
    %v1107 = vmul.f32 %v463, 0.5
    %v1108 = vmul.f32 %v464, 0.5
    %v1109 = vmul.f32 %v465, 0.5
    %v1110 = vmul.f32 %v466, 0.5
    %v1111 = vmul.f32 %v467, 0.5
    %v1112 = vmul.f32 %v468, 0.5
    %v1113 = vmul.f32 %v1069, 0.5
    %v1114 = vmul.f32 %v1070, 0.5
    %v1115 = vmul.f32 %v1071, 0.5
    %v1116 = vmul.f32 %v1072, 0.5
    %v1117 = vmul.f32 %v1073, 0.5
    %v1118 = vmul.f32 %v1074, 0.5
    %v1119 = vmul.f32 %v1075, 0.5
    %v1120 = vmul.f32 %v1076, 0.5
    %v1121 = vadd.f32 %v1105, %v1113
    %v1122 = vadd.f32 %v1106, %v1114
    %v1123 = vadd.f32 %v1107, %v1115
    %v1124 = vadd.f32 %v1108, %v1116
    %v1125 = vadd.f32 %v1109, %v1117
    %v1126 = vadd.f32 %v1110, %v1118
    %v1127 = vadd.f32 %v1111, %v1119
    %v1128 = vadd.f32 %v1112, %v1120
    %v1129 = vmul.f32 %v477, 0.5
    %v1130 = vmul.f32 %v478, 0.5
    %v1131 = vmul.f32 %v479, 0.5
    %v1132 = vmul.f32 %v480, 0.5
    %v1133 = vmul.f32 %v1083, 0.5
    %v1134 = vmul.f32 %v1090, 0.5
    %v1135 = vmul.f32 %v1097, 0.5
    %v1136 = vmul.f32 %v1104, 0.5
    %v1137 = vadd.f32 %v1129, %v1133
    %v1138 = vadd.f32 %v1130, %v1134
    %v1139 = vadd.f32 %v1131, %v1135
    %v1140 = vadd.f32 %v1132, %v1136
    %v1141 = vpack.c.bf16 %v1122, %v1121
    %v1142 = vpack.c.bf16 %v1124, %v1123
    %v1143 = vpack.c.bf16 %v1126, %v1125
    %v1144 = vpack.c.bf16 %v1128, %v1127
    %s1145 = scalar_lea.vmem [#allocation7], 256
    %v1146 = vld [vmem:[%s1145] sm:$0xf]
    %v1147 = vld [vmem:[%s1145 + $0x4] sm:$0xf]
    %v1148 = vld [vmem:[%s1145 + $0x8] sm:$0xf]
    %v1149 = vld [vmem:[%s1145 + $0xc] sm:$0xf]
    %v1150 = vld [vmem:[%s1145 + $0x10] sm:$0xf]
    %v1151 = vld [vmem:[%s1145 + $0x14] sm:$0xf]
    %v1152 = vld [vmem:[%s1145 + $0x18] sm:$0xf]
    %v1153 = vld [vmem:[%s1145 + $0x1c] sm:$0xf]
    %v1154 = vld [vmem:[%s1145 + $0x20] sm:$0xf]
    %v1155 = vld [vmem:[%s1145 + $0x24] sm:$0xf]
    %v1156 = vld [vmem:[%s1145 + $0x28] sm:$0xf]
    %v1157 = vld [vmem:[%s1145 + $0x2c] sm:$0xf]
    %v1158 = vld [vmem:[%s1145 + $0x30] sm:$0xf]
    %v1159 = vld [vmem:[%s1145 + $0x34] sm:$0xf]
    %v1160 = vld [vmem:[%s1145 + $0x38] sm:$0xf]
    %v1161 = vld [vmem:[%s1145 + $0x3c] sm:$0xf]
    %s1162 = scalar_lea.vmem %s3, 4
    %v1163 = vld [vmem:[%s1162] sm:$0x1]
    %v1165 = vlaneseq
    %v1166 = vshrl.u32 %v1165, 7
    %v1167 = vsub.s32 0, %v1166
    %v1168 = vrot.slane %v1163, %v1167
    %v1186 = vunpack.c.l.b16 %v1146
    %v1187 = vunpack.c.l.b16 %v1147
    %v1188 = vunpack.c.l.b16 %v1148
    %v1189 = vunpack.c.l.b16 %v1149
    %v1190 = vunpack.c.l.b16 %v1150
    %v1191 = vunpack.c.l.b16 %v1151
    %v1192 = vunpack.c.l.b16 %v1152
    %v1193 = vunpack.c.l.b16 %v1153
    %v1194 = vunpack.c.l.b16 %v1154
    %v1195 = vunpack.c.l.b16 %v1155
    %v1196 = vunpack.c.l.b16 %v1156
    %v1197 = vunpack.c.l.b16 %v1157
    %v1198 = vunpack.c.l.b16 %v1158
    %v1199 = vunpack.c.l.b16 %v1159
    %v1200 = vunpack.c.l.b16 %v1160
    %v1201 = vunpack.c.l.b16 %v1161
    %v1202 = vpack.c.b16 %v1187, %v1186
    %v1203 = vpack.c.b16 %v1189, %v1188
    %v1204 = vpack.c.b16 %v1191, %v1190
    %v1205 = vpack.c.b16 %v1193, %v1192
    %v1206 = vpack.c.b16 %v1195, %v1194
    %v1207 = vpack.c.b16 %v1197, %v1196
    %v1208 = vpack.c.b16 %v1199, %v1198
    %v1209 = vpack.c.b16 %v1201, %v1200
    %1218 = vmatprep.subr.bf16.mxu0 0
    %1219 = vmatpush1.bf16.msra.mxu0 %v1202
    %1220 = vmatprep.subr.bf16.mxu0 0
    %1221 = vmatpush1.bf16.msra.mxu0 %v1203
    %1222 = vmatprep.subr.bf16.mxu0 0
    %1223 = vmatpush1.bf16.msra.mxu0 %v1204
    %1224 = vmatprep.subr.bf16.mxu0 0
    %1225 = vmatpush1.bf16.msra.mxu0 %v1205
    %1226 = vmatprep.subr.bf16.mxu0 0
    %1227 = vmatpush1.bf16.msra.mxu0 %v1206
    %1228 = vmatprep.subr.bf16.mxu0 0
    %1229 = vmatpush1.bf16.msra.mxu0 %v1207
    %1230 = vmatprep.subr.bf16.mxu0 0
    %1231 = vmatpush1.bf16.msra.mxu0 %v1208
    %1232 = vmatprep.subr.bf16.mxu0 0
    %1233 = vmatpush1.bf16.msra.mxu0 %v1209
    %1234 = vmatprep.subr.bf16.mxu0 0
    %1235 = vmatpush1.bf16.msra.mxu0 0
    %1236 = vmatprep.subr.bf16.mxu0 0
    %1237 = vmatpush1.bf16.msra.mxu0 0
    %1238 = vmatprep.subr.bf16.mxu0 0
    %1239 = vmatpush1.bf16.msra.mxu0 0
    %1240 = vmatprep.subr.bf16.mxu0 0
    %1241 = vmatpush1.bf16.msra.mxu0 0
    %1242 = vmatprep.subr.bf16.mxu0 0
    %1243 = vmatpush1.bf16.msra.mxu0 0
    %1244 = vmatprep.subr.bf16.mxu0 0
    %1245 = vmatpush1.bf16.msra.mxu0 0
    %1246 = vmatprep.subr.bf16.mxu0 0
    %1247 = vmatpush1.bf16.msra.mxu0 0
    %1248 = vmatprep.subr.bf16.mxu0 0
    %1249 = vmatpush1.bf16.msra.mxu0 0
    %1250 = vmatprep.mubr.bf16.mxu0 0
    %1251 = vmatmul.mubr.bf16.gmra.mrb[0].mxu0 %v1141
    %v1252 = vpop.f32.mrb[0].mxu0
    %v1253 = vadd.f32 %v1168, %v1252
    %v1254 = vpop.f32.mrb[0].mxu0
    %v1255 = vpop.f32.mrb[0].mxu0
    %v1256 = vadd.f32 %v1168, %v1255
    %v1257 = vpop.f32.mrb[0].mxu0
    %1258 = vmatprep.mubr.bf16.mxu0 0
    %1259 = vmatmul.mubr.bf16.gmra.mrb[0].mxu0 %v1142
    %v1260 = vpop.f32.mrb[0].mxu0
    %v1261 = vadd.f32 %v1168, %v1260
    %v1262 = vpop.f32.mrb[0].mxu0
    %v1263 = vpop.f32.mrb[0].mxu0
    %v1264 = vadd.f32 %v1168, %v1263
    %v1265 = vpop.f32.mrb[0].mxu0
    %1266 = vmatprep.mubr.bf16.mxu0 0
    %1267 = vmatmul.mubr.bf16.gmra.mrb[0].mxu0 %v1143
    %v1268 = vpop.f32.mrb[0].mxu0
    %v1269 = vadd.f32 %v1168, %v1268
    %v1270 = vpop.f32.mrb[0].mxu0
    %v1271 = vpop.f32.mrb[0].mxu0
    %v1272 = vadd.f32 %v1168, %v1271
    %v1273 = vpop.f32.mrb[0].mxu0
    %1274 = vmatprep.mubr.bf16.mxu0 0
    %1275 = vmatmul.mubr.bf16.gmra.mrb[0].mxu0 %v1144
    %v1276 = vpop.f32.mrb[0].mxu0
    %v1277 = vadd.f32 %v1168, %v1276
    %v1278 = vpop.f32.mrb[0].mxu0
    %v1279 = vpop.f32.mrb[0].mxu0
    %v1280 = vadd.f32 %v1168, %v1279
    %v1281 = vpop.f32.mrb[0].mxu0
    %1282 = vdwg.mxu0
    %v1283 = vmax.f32 %v1253, 0.0
    %v1284 = vmax.f32 %v1256, 0.0
    %v1285 = vmax.f32 %v1261, 0.0
    %v1286 = vmax.f32 %v1264, 0.0
    %v1287 = vmax.f32 %v1269, 0.0
    %v1288 = vmax.f32 %v1272, 0.0
    %v1289 = vmax.f32 %v1277, 0.0
    %v1290 = vmax.f32 %v1280, 0.0
    %v1291 = vpack.c.bf16 %v1284, %v1283
    %v1292 = vpack.c.bf16 %v1286, %v1285
    %v1293 = vpack.c.bf16 %v1288, %v1287
    %v1294 = vpack.c.bf16 %v1290, %v1289
    %s1295 = scalar_lea.vmem [#allocation7], 320
    %v1296 = vld [vmem:[%s1295] sm:$0xf]
    %v1297 = vld [vmem:[%s1295 + $0x4] sm:$0xf]
    %v1298 = vld [vmem:[%s1295 + $0x8] sm:$0xf]
    %v1299 = vld [vmem:[%s1295 + $0xc] sm:$0xf]
    %v1300 = vld [vmem:[%s1295 + $0x10] sm:$0xf]
    %v1301 = vld [vmem:[%s1295 + $0x14] sm:$0xf]
    %v1302 = vld [vmem:[%s1295 + $0x18] sm:$0xf]
    %v1303 = vld [vmem:[%s1295 + $0x1c] sm:$0xf]
    %v1304 = vld [vmem:[%s1295 + $0x20] sm:$0xf]
    %v1305 = vld [vmem:[%s1295 + $0x24] sm:$0xf]
    %v1306 = vld [vmem:[%s1295 + $0x28] sm:$0xf]
    %v1307 = vld [vmem:[%s1295 + $0x2c] sm:$0xf]
    %v1308 = vld [vmem:[%s1295 + $0x30] sm:$0xf]
    %v1309 = vld [vmem:[%s1295 + $0x34] sm:$0xf]
    %v1310 = vld [vmem:[%s1295 + $0x38] sm:$0xf]
    %v1311 = vld [vmem:[%s1295 + $0x3c] sm:$0xf]
    %s1312 = scalar_lea.vmem %s3, 5
    %v1313 = vld [vmem:[%s1312] sm:$0x1]
    %v1315 = vlaneseq
    %v1316 = vshrl.u32 %v1315, 7
    %v1317 = vsub.s32 0, %v1316
    %v1318 = vrot.slane %v1313, %v1317
    %v1336 = vunpack.c.l.b16 %v1296
    %v1337 = vunpack.c.l.b16 %v1297
    %v1338 = vunpack.c.l.b16 %v1298
    %v1339 = vunpack.c.l.b16 %v1299
    %v1340 = vunpack.c.l.b16 %v1300
    %v1341 = vunpack.c.l.b16 %v1301
    %v1342 = vunpack.c.l.b16 %v1302
    %v1343 = vunpack.c.l.b16 %v1303
    %v1344 = vunpack.c.l.b16 %v1304
    %v1345 = vunpack.c.l.b16 %v1305
    %v1346 = vunpack.c.l.b16 %v1306
    %v1347 = vunpack.c.l.b16 %v1307
    %v1348 = vunpack.c.l.b16 %v1308
    %v1349 = vunpack.c.l.b16 %v1309
    %v1350 = vunpack.c.l.b16 %v1310
    %v1351 = vunpack.c.l.b16 %v1311
    %v1352 = vpack.c.b16 %v1337, %v1336
    %v1353 = vpack.c.b16 %v1339, %v1338
    %v1354 = vpack.c.b16 %v1341, %v1340
    %v1355 = vpack.c.b16 %v1343, %v1342
    %v1356 = vpack.c.b16 %v1345, %v1344
    %v1357 = vpack.c.b16 %v1347, %v1346
    %v1358 = vpack.c.b16 %v1349, %v1348
    %v1359 = vpack.c.b16 %v1351, %v1350
    %1368 = vmatprep.subr.bf16.mxu0 0
    %1369 = vmatpush1.bf16.msra.mxu0 %v1352
    %1370 = vmatprep.subr.bf16.mxu0 0
    %1371 = vmatpush1.bf16.msra.mxu0 %v1353
    %1372 = vmatprep.subr.bf16.mxu0 0
    %1373 = vmatpush1.bf16.msra.mxu0 %v1354
    %1374 = vmatprep.subr.bf16.mxu0 0
    %1375 = vmatpush1.bf16.msra.mxu0 %v1355
    %1376 = vmatprep.subr.bf16.mxu0 0
    %1377 = vmatpush1.bf16.msra.mxu0 %v1356
    %1378 = vmatprep.subr.bf16.mxu0 0
    %1379 = vmatpush1.bf16.msra.mxu0 %v1357
    %1380 = vmatprep.subr.bf16.mxu0 0
    %1381 = vmatpush1.bf16.msra.mxu0 %v1358
    %1382 = vmatprep.subr.bf16.mxu0 0
    %1383 = vmatpush1.bf16.msra.mxu0 %v1359
    %1384 = vmatprep.subr.bf16.mxu0 0
    %1385 = vmatpush1.bf16.msra.mxu0 0
    %1386 = vmatprep.subr.bf16.mxu0 0
    %1387 = vmatpush1.bf16.msra.mxu0 0
    %1388 = vmatprep.subr.bf16.mxu0 0
    %1389 = vmatpush1.bf16.msra.mxu0 0
    %1390 = vmatprep.subr.bf16.mxu0 0
    %1391 = vmatpush1.bf16.msra.mxu0 0
    %1392 = vmatprep.subr.bf16.mxu0 0
    %1393 = vmatpush1.bf16.msra.mxu0 0
    %1394 = vmatprep.subr.bf16.mxu0 0
    %1395 = vmatpush1.bf16.msra.mxu0 0
    %1396 = vmatprep.subr.bf16.mxu0 0
    %1397 = vmatpush1.bf16.msra.mxu0 0
    %1398 = vmatprep.subr.bf16.mxu0 0
    %1399 = vmatpush1.bf16.msra.mxu0 0
    %1400 = vmatprep.mubr.bf16.mxu0 0
    %1401 = vmatmul.mubr.bf16.gmra.mrb[0].mxu0 %v1291
    %v1402 = vpop.f32.mrb[0].mxu0
    %v1403 = vadd.f32 %v1318, %v1402
    %v1404 = vpop.f32.mrb[0].mxu0
    %v1405 = vpop.f32.mrb[0].mxu0
    %v1406 = vadd.f32 %v1318, %v1405
    %v1407 = vpop.f32.mrb[0].mxu0
    %1408 = vmatprep.mubr.bf16.mxu0 0
    %1409 = vmatmul.mubr.bf16.gmra.mrb[0].mxu0 %v1292
    %v1410 = vpop.f32.mrb[0].mxu0
    %v1411 = vadd.f32 %v1318, %v1410
    %v1412 = vpop.f32.mrb[0].mxu0
    %v1413 = vpop.f32.mrb[0].mxu0
    %v1414 = vadd.f32 %v1318, %v1413
    %v1415 = vpop.f32.mrb[0].mxu0
    %1416 = vmatprep.mubr.bf16.mxu0 0
    %1417 = vmatmul.mubr.bf16.gmra.mrb[0].mxu0 %v1293
    %v1418 = vpop.f32.mrb[0].mxu0
    %v1419 = vadd.f32 %v1318, %v1418
    %v1420 = vpop.f32.mrb[0].mxu0
    %v1421 = vpop.f32.mrb[0].mxu0
    %v1422 = vadd.f32 %v1318, %v1421
    %v1423 = vpop.f32.mrb[0].mxu0
    %1424 = vmatprep.mubr.bf16.mxu0 0
    %1425 = vmatmul.mubr.bf16.gmra.mrb[0].mxu0 %v1294
    %v1426 = vpop.f32.mrb[0].mxu0
    %v1427 = vadd.f32 %v1318, %v1426
    %v1428 = vpop.f32.mrb[0].mxu0
    %v1429 = vpop.f32.mrb[0].mxu0
    %v1430 = vadd.f32 %v1318, %v1429
    %v1431 = vpop.f32.mrb[0].mxu0
    %1432 = vdwg.mxu0
    %v1433 = vpack.c.bf16 %v1137, %v1137
    %v1434 = vpack.c.bf16 %v1138, %v1138
    %v1435 = vpack.c.bf16 %v1139, %v1139
    %v1436 = vpack.c.bf16 %v1140, %v1140
    %s1437 = scalar_lea.vmem [#allocation8], 256
    %v1438 = vld [vmem:[%s1437] sm:$0xf]
    %v1439 = vld [vmem:[%s1437 + $0x4] sm:$0xf]
    %v1440 = vld [vmem:[%s1437 + $0x8] sm:$0xf]
    %v1441 = vld [vmem:[%s1437 + $0xc] sm:$0xf]
    %v1442 = vld [vmem:[%s1437 + $0x10] sm:$0xf]
    %v1443 = vld [vmem:[%s1437 + $0x14] sm:$0xf]
    %v1444 = vld [vmem:[%s1437 + $0x18] sm:$0xf]
    %v1445 = vld [vmem:[%s1437 + $0x1c] sm:$0xf]
    %v1446 = vld [vmem:[%s1437 + $0x20] sm:$0xf]
    %v1447 = vld [vmem:[%s1437 + $0x24] sm:$0xf]
    %v1448 = vld [vmem:[%s1437 + $0x28] sm:$0xf]
    %v1449 = vld [vmem:[%s1437 + $0x2c] sm:$0xf]
    %v1450 = vld [vmem:[%s1437 + $0x30] sm:$0xf]
    %v1451 = vld [vmem:[%s1437 + $0x34] sm:$0xf]
    %v1452 = vld [vmem:[%s1437 + $0x38] sm:$0xf]
    %v1453 = vld [vmem:[%s1437 + $0x3c] sm:$0xf]
    %s1454 = scalar_lea.vmem %s5, 4
    %v1455 = vld [vmem:[%s1454] sm:$0x1]
    %v1457 = vlaneseq
    %v1458 = vshrl.u32 %v1457, 7
    %v1459 = vsub.s32 0, %v1458
    %v1460 = vrot.slane %v1455, %v1459
    %v1466 = vunpack.c.l.b16 %v1433
    %v1467 = vunpack.c.l.b16 %v1434
    %v1468 = vunpack.c.l.b16 %v1435
    %v1469 = vunpack.c.l.b16 %v1436
    %v1470 = vrot.slane %v1467, 7
    %v1471 = vsel %vm811, %v1470, %v1466
    %v1472 = vrot.slane %v1468, 6
    %v1473 = vsel %vm814, %v1472, %v1471
    %v1474 = vrot.slane %v1469, 5
    %v1475 = vsel %vm817, %v1474, %v1473
    %v1476 = vpack.c.b16 %v1475, %v1475
    %v1494 = vunpack.c.l.b16 %v1438
    %v1495 = vunpack.c.l.b16 %v1439
    %v1496 = vunpack.c.l.b16 %v1440
    %v1497 = vunpack.c.l.b16 %v1441
    %v1498 = vunpack.c.l.b16 %v1442
    %v1499 = vunpack.c.l.b16 %v1443
    %v1500 = vunpack.c.l.b16 %v1444
    %v1501 = vunpack.c.l.b16 %v1445
    %v1502 = vunpack.c.l.b16 %v1446
    %v1503 = vunpack.c.l.b16 %v1447
    %v1504 = vunpack.c.l.b16 %v1448
    %v1505 = vunpack.c.l.b16 %v1449
    %v1506 = vunpack.c.l.b16 %v1450
    %v1507 = vunpack.c.l.b16 %v1451
    %v1508 = vunpack.c.l.b16 %v1452
    %v1509 = vunpack.c.l.b16 %v1453
    %v1510 = vpack.c.b16 %v1495, %v1494
    %v1511 = vpack.c.b16 %v1497, %v1496
    %v1512 = vpack.c.b16 %v1499, %v1498
    %v1513 = vpack.c.b16 %v1501, %v1500
    %v1514 = vpack.c.b16 %v1503, %v1502
    %v1515 = vpack.c.b16 %v1505, %v1504
    %v1516 = vpack.c.b16 %v1507, %v1506
    %v1517 = vpack.c.b16 %v1509, %v1508
    %1526 = vmatprep.subr.bf16.mxu0 0
    %1527 = vmatpush1.bf16.msra.mxu0 %v1510
    %1528 = vmatprep.subr.bf16.mxu0 0
    %1529 = vmatpush1.bf16.msra.mxu0 %v1511
    %1530 = vmatprep.subr.bf16.mxu0 0
    %1531 = vmatpush1.bf16.msra.mxu0 %v1512
    %1532 = vmatprep.subr.bf16.mxu0 0
    %1533 = vmatpush1.bf16.msra.mxu0 %v1513
    %1534 = vmatprep.subr.bf16.mxu0 0
    %1535 = vmatpush1.bf16.msra.mxu0 %v1514
    %1536 = vmatprep.subr.bf16.mxu0 0
    %1537 = vmatpush1.bf16.msra.mxu0 %v1515
    %1538 = vmatprep.subr.bf16.mxu0 0
    %1539 = vmatpush1.bf16.msra.mxu0 %v1516
    %1540 = vmatprep.subr.bf16.mxu0 0
    %1541 = vmatpush1.bf16.msra.mxu0 %v1517
    %1542 = vmatprep.subr.bf16.mxu0 0
    %1543 = vmatpush1.bf16.msra.mxu0 0
    %1544 = vmatprep.subr.bf16.mxu0 0
    %1545 = vmatpush1.bf16.msra.mxu0 0
    %1546 = vmatprep.subr.bf16.mxu0 0
    %1547 = vmatpush1.bf16.msra.mxu0 0
    %1548 = vmatprep.subr.bf16.mxu0 0
    %1549 = vmatpush1.bf16.msra.mxu0 0
    %1550 = vmatprep.subr.bf16.mxu0 0
    %1551 = vmatpush1.bf16.msra.mxu0 0
    %1552 = vmatprep.subr.bf16.mxu0 0
    %1553 = vmatpush1.bf16.msra.mxu0 0
    %1554 = vmatprep.subr.bf16.mxu0 0
    %1555 = vmatpush1.bf16.msra.mxu0 0
    %1556 = vmatprep.subr.bf16.mxu0 0
    %1557 = vmatpush1.bf16.msra.mxu0 0
    %1558 = vmatprep.mubr.bf16.mxu0 0
    %1559 = vmatmul.mubr.bf16.gmra.mrb[0].mxu0 %v1476
    %v1560 = vpop.f32.mrb[0].mxu0
    %v1561 = vadd.f32 %v1460, %v1560
    %v1562 = vpop.f32.mrb[0].mxu0
    %v1563 = vpop.f32.mrb[0].mxu0
    %v1564 = vpop.f32.mrb[0].mxu0
    %1565 = vdwg.mxu0
    %v1566 = vmax.f32 %v1561, 0.0
    %v1567 = vpack.c.bf16 %v1566, %v1566
    %s1568 = scalar_lea.vmem [#allocation8], 320
    %v1569 = vld [vmem:[%s1568] sm:$0xf]
    %v1570 = vld [vmem:[%s1568 + $0x4] sm:$0xf]
    %v1571 = vld [vmem:[%s1568 + $0x8] sm:$0xf]
    %v1572 = vld [vmem:[%s1568 + $0xc] sm:$0xf]
    %v1573 = vld [vmem:[%s1568 + $0x10] sm:$0xf]
    %v1574 = vld [vmem:[%s1568 + $0x14] sm:$0xf]
    %v1575 = vld [vmem:[%s1568 + $0x18] sm:$0xf]
    %v1576 = vld [vmem:[%s1568 + $0x1c] sm:$0xf]
    %v1577 = vld [vmem:[%s1568 + $0x20] sm:$0xf]
    %v1578 = vld [vmem:[%s1568 + $0x24] sm:$0xf]
    %v1579 = vld [vmem:[%s1568 + $0x28] sm:$0xf]
    %v1580 = vld [vmem:[%s1568 + $0x2c] sm:$0xf]
    %v1581 = vld [vmem:[%s1568 + $0x30] sm:$0xf]
    %v1582 = vld [vmem:[%s1568 + $0x34] sm:$0xf]
    %v1583 = vld [vmem:[%s1568 + $0x38] sm:$0xf]
    %v1584 = vld [vmem:[%s1568 + $0x3c] sm:$0xf]
    %s1585 = scalar_lea.vmem %s5, 5
    %v1586 = vld [vmem:[%s1585] sm:$0x1]
    %v1588 = vlaneseq
    %v1589 = vshrl.u32 %v1588, 7
    %v1590 = vsub.s32 0, %v1589
    %v1591 = vrot.slane %v1586, %v1590
    %v1609 = vunpack.c.l.b16 %v1569
    %v1610 = vunpack.c.l.b16 %v1570
    %v1611 = vunpack.c.l.b16 %v1571
    %v1612 = vunpack.c.l.b16 %v1572
    %v1613 = vunpack.c.l.b16 %v1573
    %v1614 = vunpack.c.l.b16 %v1574
    %v1615 = vunpack.c.l.b16 %v1575
    %v1616 = vunpack.c.l.b16 %v1576
    %v1617 = vunpack.c.l.b16 %v1577
    %v1618 = vunpack.c.l.b16 %v1578
    %v1619 = vunpack.c.l.b16 %v1579
    %v1620 = vunpack.c.l.b16 %v1580
    %v1621 = vunpack.c.l.b16 %v1581
    %v1622 = vunpack.c.l.b16 %v1582
    %v1623 = vunpack.c.l.b16 %v1583
    %v1624 = vunpack.c.l.b16 %v1584
    %v1625 = vpack.c.b16 %v1610, %v1609
    %v1626 = vpack.c.b16 %v1612, %v1611
    %v1627 = vpack.c.b16 %v1614, %v1613
    %v1628 = vpack.c.b16 %v1616, %v1615
    %v1629 = vpack.c.b16 %v1618, %v1617
    %v1630 = vpack.c.b16 %v1620, %v1619
    %v1631 = vpack.c.b16 %v1622, %v1621
    %v1632 = vpack.c.b16 %v1624, %v1623
    %1641 = vmatprep.subr.bf16.mxu0 0
    %1642 = vmatpush1.bf16.msra.mxu0 %v1625
    %1643 = vmatprep.subr.bf16.mxu0 0
    %1644 = vmatpush1.bf16.msra.mxu0 %v1626
    %1645 = vmatprep.subr.bf16.mxu0 0
    %1646 = vmatpush1.bf16.msra.mxu0 %v1627
    %1647 = vmatprep.subr.bf16.mxu0 0
    %1648 = vmatpush1.bf16.msra.mxu0 %v1628
    %1649 = vmatprep.subr.bf16.mxu0 0
    %1650 = vmatpush1.bf16.msra.mxu0 %v1629
    %1651 = vmatprep.subr.bf16.mxu0 0
    %1652 = vmatpush1.bf16.msra.mxu0 %v1630
    %1653 = vmatprep.subr.bf16.mxu0 0
    %1654 = vmatpush1.bf16.msra.mxu0 %v1631
    %1655 = vmatprep.subr.bf16.mxu0 0
    %1656 = vmatpush1.bf16.msra.mxu0 %v1632
    %1657 = vmatprep.subr.bf16.mxu0 0
    %1658 = vmatpush1.bf16.msra.mxu0 0
    %1659 = vmatprep.subr.bf16.mxu0 0
    %1660 = vmatpush1.bf16.msra.mxu0 0
    %1661 = vmatprep.subr.bf16.mxu0 0
    %1662 = vmatpush1.bf16.msra.mxu0 0
    %1663 = vmatprep.subr.bf16.mxu0 0
    %1664 = vmatpush1.bf16.msra.mxu0 0
    %1665 = vmatprep.subr.bf16.mxu0 0
    %1666 = vmatpush1.bf16.msra.mxu0 0
    %1667 = vmatprep.subr.bf16.mxu0 0
    %1668 = vmatpush1.bf16.msra.mxu0 0
    %1669 = vmatprep.subr.bf16.mxu0 0
    %1670 = vmatpush1.bf16.msra.mxu0 0
    %1671 = vmatprep.subr.bf16.mxu0 0
    %1672 = vmatpush1.bf16.msra.mxu0 0
    %1673 = vmatprep.mubr.bf16.mxu0 0
    %1674 = vmatmul.mubr.bf16.gmra.mrb[0].mxu0 %v1567
    %v1675 = vpop.f32.mrb[0].mxu0
    %v1676 = vadd.f32 %v1591, %v1675
    %v1677 = vpop.f32.mrb[0].mxu0
    %v1678 = vpop.f32.mrb[0].mxu0
    %v1679 = vpop.f32.mrb[0].mxu0
    %1680 = vdwg.mxu0
    %v1683 = vunpack.c.l.s4 1966171168
    %v1684 = vunpack.c.0.s8 %v1683
    %v1685 = vlaneseq
    %v1686 = vshrl.u32 %v1685, 7
    %v1687 = vsub.s32 %v1684, %v1686
    %v1688 = vrot.slane %v1676, %v1687
    %v1689 = vcombine.high %v1688, %v1688
    %v1691 = vunpack.c.l.s4 1966171168
    %v1692 = vunpack.c.0.s8 %v1691
    %v1693 = vlaneseq
    %v1694 = vshrl.u32 %v1693, 7
    %v1695 = vsub.s32 %v1692, %v1694
    %v1696 = vrot.slane %v1688, %v1695
    %v1698 = vunpack.c.l.s4 1966171168
    %v1699 = vunpack.c.0.s8 %v1698
    %v1700 = vlaneseq
    %v1701 = vshrl.u32 %v1700, 7
    %v1702 = vsub.s32 %v1699, %v1701
    %v1703 = vrot.slane %v1689, %v1702
    %v1704 = vcombine.high %v1696, %v1696
    %v1705 = vcombine.high %v1703, %v1703
    %v1706 = vlaneseq
    %v1707 = vshrl.u32 %v1706, 7
    %v1708 = vsub.s32 0, %v1707
    %v1709 = vrot.slane %v1696, %v1708
    %v1710 = vlaneseq
    %v1711 = vshrl.u32 %v1710, 7
    %v1712 = vsub.s32 0, %v1711
    %v1713 = vrot.slane %v1703, %v1712
    %v1714 = vlaneseq
    %v1715 = vshrl.u32 %v1714, 7
    %v1716 = vsub.s32 0, %v1715
    %v1717 = vrot.slane %v1704, %v1716
    %v1718 = vlaneseq
    %v1719 = vshrl.u32 %v1718, 7
    %v1720 = vsub.s32 0, %v1719
    %v1721 = vrot.slane %v1705, %v1720
    %v1726 = vmul.f32 %v1403, %v1709
    %v1727 = vmul.f32 %v1406, %v1709
    %v1728 = vmul.f32 %v1411, %v1713
    %v1729 = vmul.f32 %v1414, %v1713
    %v1730 = vmul.f32 %v1419, %v1717
    %v1731 = vmul.f32 %v1422, %v1717
    %v1732 = vmul.f32 %v1427, %v1721
    %v1733 = vmul.f32 %v1430, %v1721
    %v1734 = vmax.f32 %v1726, %v1727
    %v1735 = vrot.slane %v1734, 4
    %v1736 = vmax.f32 %v1734, %v1735
    %v1737 = vrot.slane %v1736, 2
    %v1738 = vmax.f32 %v1736, %v1737
    %v1739 = vrot.slane %v1738, 1
    %v1740 = vmax.f32 %v1738, %v1739
    %v1741 = vmax.f32 %v1728, %v1729
    %v1742 = vrot.slane %v1741, 4
    %v1743 = vmax.f32 %v1741, %v1742
    %v1744 = vrot.slane %v1743, 2
    %v1745 = vmax.f32 %v1743, %v1744
    %v1746 = vrot.slane %v1745, 1
    %v1747 = vmax.f32 %v1745, %v1746
    %v1748 = vmax.f32 %v1730, %v1731
    %v1749 = vrot.slane %v1748, 4
    %v1750 = vmax.f32 %v1748, %v1749
    %v1751 = vrot.slane %v1750, 2
    %v1752 = vmax.f32 %v1750, %v1751
    %v1753 = vrot.slane %v1752, 1
    %v1754 = vmax.f32 %v1752, %v1753
    %v1755 = vmax.f32 %v1732, %v1733
    %v1756 = vrot.slane %v1755, 4
    %v1757 = vmax.f32 %v1755, %v1756
    %v1758 = vrot.slane %v1757, 2
    %v1759 = vmax.f32 %v1757, %v1758
    %v1760 = vrot.slane %v1759, 1
    %v1761 = vmax.f32 %v1759, %v1760
    %v1762 = vmul.f32 %v1121, 0.5
    %v1763 = vmul.f32 %v1122, 0.5
    %v1764 = vmul.f32 %v1123, 0.5
    %v1765 = vmul.f32 %v1124, 0.5
    %v1766 = vmul.f32 %v1125, 0.5
    %v1767 = vmul.f32 %v1126, 0.5
    %v1768 = vmul.f32 %v1127, 0.5
    %v1769 = vmul.f32 %v1128, 0.5
    %v1770 = vmul.f32 %v1726, 0.5
    %v1771 = vmul.f32 %v1727, 0.5
    %v1772 = vmul.f32 %v1728, 0.5
    %v1773 = vmul.f32 %v1729, 0.5
    %v1774 = vmul.f32 %v1730, 0.5
    %v1775 = vmul.f32 %v1731, 0.5
    %v1776 = vmul.f32 %v1732, 0.5
    %v1777 = vmul.f32 %v1733, 0.5
    %v1778 = vadd.f32 %v1762, %v1770
    %v1779 = vadd.f32 %v1763, %v1771
    %v1780 = vadd.f32 %v1764, %v1772
    %v1781 = vadd.f32 %v1765, %v1773
    %v1782 = vadd.f32 %v1766, %v1774
    %v1783 = vadd.f32 %v1767, %v1775
    %v1784 = vadd.f32 %v1768, %v1776
    %v1785 = vadd.f32 %v1769, %v1777
    %v1786 = vmul.f32 %v1137, 0.5
    %v1787 = vmul.f32 %v1138, 0.5
    %v1788 = vmul.f32 %v1139, 0.5
    %v1789 = vmul.f32 %v1140, 0.5
    %v1790 = vmul.f32 %v1740, 0.5
    %v1791 = vmul.f32 %v1747, 0.5
    %v1792 = vmul.f32 %v1754, 0.5
    %v1793 = vmul.f32 %v1761, 0.5
    %v1794 = vadd.f32 %v1786, %v1790
    %v1795 = vadd.f32 %v1787, %v1791
    %v1796 = vadd.f32 %v1788, %v1792
    %v1797 = vadd.f32 %v1789, %v1793
    %1798 = vst [vmem:[#allocation10] sm:$0xff] %v1778
    %1799 = vst [vmem:[#allocation10 + $0x8] sm:$0xff] %v1779
    %1800 = vst [vmem:[#allocation10 + $0x10] sm:$0xff] %v1780
    %1801 = vst [vmem:[#allocation10 + $0x18] sm:$0xff] %v1781
    %1802 = vst [vmem:[#allocation10 + $0x20] sm:$0xff] %v1782
    %1803 = vst [vmem:[#allocation10 + $0x28] sm:$0xff] %v1783
    %1804 = vst [vmem:[#allocation10 + $0x30] sm:$0xff] %v1784
    %1805 = vst [vmem:[#allocation10 + $0x38] sm:$0xff] %v1785
    %1806 = vst [vmem:[#allocation11] sm:$0x1] %v1794
    %1807 = vst [vmem:[#allocation11 + $0x1] sm:$0x1] %v1795
    %1808 = vst [vmem:[#allocation11 + $0x2] sm:$0x1] %v1796
    %1809 = vst [vmem:[#allocation11 + $0x3] sm:$0x1] %v1797
    // Predicated region
    $region42: #{tpu_custom_call.1} parent=1 // pred_check
      _
    $region43: #{tpu_custom_call.1} parent=1 // pred_check_branch
      %1811 = sbr.rel (0) target = $region45
    $region44: #{tpu_custom_call.1} parent=1 // pred_region
      %s1813 = ssub.s32 1024, 1024
      %1814 = vsyncadd [#allocation4], %s1813
      %s1815 = sshll.u32 [#allocation10], 4
      %s1816 = int_to_ptr.vmem [resolvable:$true] %s1815
      %1821 = dma.vmem_to_hbm [thread:$0]  %s1816, 1024, %s6, [#allocation4], 128, 128, 8
    $region45: #{tpu_custom_call.1} parent=1 // pred_fallthru
      _
    // Predicated region
    $region46: #{tpu_custom_call.1} parent=1 // pred_check
      _
    $region47: #{tpu_custom_call.1} parent=1 // pred_check_branch
      %1823 = sbr.rel (0) target = $region49
    $region48: #{tpu_custom_call.1} parent=1 // pred_region
      %s1825 = ssub.s32 64, 64
      %1826 = vsyncadd [#allocation12], %s1825
      %s1827 = sshll.u32 [#allocation11], 4
      %s1828 = int_to_ptr.vmem [resolvable:$true] %s1827
      %1833 = dma.vmem_to_hbm [thread:$0]  %s1828, 64, %s7, [#allocation12], 16, 16, 1
    $region49: #{tpu_custom_call.1} parent=1 // pred_fallthru
      _
    // Predicated region
    $region50: #{tpu_custom_call.1} parent=1 // pred_check
      _
    $region51: #{tpu_custom_call.1} parent=1 // pred_check_branch
      %1835 = sbr.rel (0) target = $region53
    $region52: #{tpu_custom_call.1} parent=1 // pred_region
      %1836 = dma.done [#allocation4], 1024
    $region53: #{tpu_custom_call.1} parent=1 // pred_fallthru
      _
    // Predicated region
    $region54: #{tpu_custom_call.1} parent=1 // pred_check
      _
    $region55: #{tpu_custom_call.1} parent=1 // pred_check_branch
      %1838 = sbr.rel (0) target = $region57
    $region56: #{tpu_custom_call.1} parent=1 // pred_region
      %1839 = dma.done [#allocation12], 64
    $region57: #{tpu_custom_call.1} parent=1 // pred_fallthru
      _
    %1840 = vsyncpa [#allocation3], 1
    %1841 = vsyncpa [#allocation6], 1
    %1842 = vsyncpa [#allocation9], 1
    %1843 = vsyncpa [#allocation4], 1
    %1844 = vsyncpa [#allocation12], 1

</llo_original>
